<compile_context>
chip_gen: v6e
topology: v6e:2x2x1
jax: 0.10.0
libtpu: 0.0.40
codegen_flags: <defaults>
</compile_context>

<pallas_src>
import numpy as np
import jax
import jax.numpy as jnp
from jax.experimental import pallas as pl

# ----------------------------- configuration -------------------------------
B = 2                # batch (folded into sublanes inside the kernel)
IMG = 32
PATCH = 16
IN_CH = 3
EMBED = 32           # encoder embed dim (codebook dim == EMBED, as in torch)
DEPTH = 2
HEADS = 4
DEC_EMBED = 32
DEC_DEPTH = 2
DEC_HEADS = 4        # == HEADS in this scaled config (same lane masks reused)
MLP_RATIO = 4
HIDDEN = EMBED * MLP_RATIO
K_CODES = 64
GRID = IMG // PATCH            # 2
NUM_PATCHES = GRID * GRID      # 4
SEQ = NUM_PATCHES + 1          # 5 (cls token + patches)
LN_EPS = 1e-6
PATCH_DIM = IN_CH * PATCH * PATCH   # 768 (lane-dense)

BS = B * SEQ                   # 10 folded rows
HBS = HEADS * BS               # 40 head-stacked rows
N_BLOCKS = DEPTH + DEC_DEPTH   # 4 (encoder blocks 0..1, decoder blocks 2..3)

# MXU operand dtype (accumulation is always f32).
MATMUL_DTYPE = jnp.bfloat16

# ------------------------- f32 vector-slab layout ---------------------------
# One [N_VEC_ROWS, 128] f32 slab holds every small vector parameter; rows are
# addressed with the static offsets below both when packing (host) and when
# slicing (kernel).
VEC_W = 128
R_PATCH_B = 0
R_CLS = 1
R_POS = 2                       # SEQ rows
R_NORM_G = R_POS + SEQ          # 7
R_NORM_B = R_NORM_G + 1         # 8
R_DEC_EMB_B = R_NORM_B + 1      # 9
R_DEC_POS = R_DEC_EMB_B + 1     # 10, SEQ rows
R_DEC_NORM_G = R_DEC_POS + SEQ  # 15
R_DEC_NORM_B = R_DEC_NORM_G + 1 # 16
R_CB_SQ = R_DEC_NORM_B + 1      # 17  (||codebook||^2, K lanes)
R_BLOCKS = R_CB_SQ + 1          # 18
# per-block rows
BR_N1_G, BR_N1_B, BR_QKV_B, BR_PROJ_B, BR_N2_G, BR_N2_B, BR_FC1_B, BR_FC2_B = range(8)
ROWS_PER_BLOCK = 8
N_VEC_ROWS = R_BLOCKS + N_BLOCKS * ROWS_PER_BLOCK   # 50


# --------------------------- in-kernel helpers ------------------------------
def _mm(a, b, trans_b=False):
    """MXU matmul, bf16 operands (weights already bf16 -> cast is a no-op),
    f32 accumulation."""
    dims = (((1,), (1,)), ((), ())) if trans_b else (((1,), (0,)), ((), ()))
    return jax.lax.dot_general(a.astype(MATMUL_DTYPE), b.astype(MATMUL_DTYPE),
                               dims, preferred_element_type=jnp.float32)


def _mm_f32(a, b, trans_b=False):
    """Full-precision f32 matmul (VQ distance / exact codebook gather)."""
    dims = (((1,), (1,)), ((), ())) if trans_b else (((1,), (0,)), ((), ()))
    return jax.lax.dot_general(a, b, dims,
                               precision=jax.lax.Precision.HIGHEST,
                               preferred_element_type=jnp.float32)


def _ln(x, g, b):
    mu = jnp.mean(x, axis=-1, keepdims=True)
    xc = x - mu
    var = jnp.mean(xc * xc, axis=-1, keepdims=True)   # biased var (torch LayerNorm)
    return xc * jax.lax.rsqrt(var + LN_EPS) * g + b


# ------------------------------ fused kernel --------------------------------
def _fused_vqvae_kernel(patches_ref, w_qkv_ref, w_proj_ref, w_fc1_ref, w_fc2_ref,
                        w_wide_ref, vec_ref, cb_ref, dec_pred_b_ref,
                        pred_ref, zezq_ref):
    D = EMBED
    dh = D // HEADS
    scale = dh ** -0.5

    def row(r, width):
        # static [1, width] slice of the f32 vector slab
        return vec_ref[r:r + 1, :width]

    # ---- hoisted constants (compile-time; built once, reused by all blocks) ----
    col_i = jax.lax.broadcasted_iota(jnp.int32, (BS, D), 1)
    head_mask = jnp.concatenate(
        [jnp.logical_and(col_i >= hh * dh, col_i < (hh + 1) * dh).astype(jnp.float32)
         for hh in range(HEADS)], axis=0)                              # [H*BS, D]
    kcol = jax.lax.broadcasted_iota(jnp.int32, (SEQ, BS), 1)
    bb = jnp.concatenate(
        [jnp.where(jnp.logical_and(kcol >= b * SEQ, kcol < (b + 1) * SEQ),
                   0.0, -1e9).astype(jnp.float32)
         for b in range(B)], axis=0)                                   # [BS, BS]
    batch_bias = jnp.concatenate([bb] * HEADS, axis=0)                 # [H*BS, BS]

    def block(x, i):
        """One ViT block on batch-folded rows x: [B*SEQ, D]."""
        r = R_BLOCKS + i * ROWS_PER_BLOCK
        h = _ln(x, row(r + BR_N1_G, D), row(r + BR_N1_B, D))
        qkv = _mm(h, w_qkv_ref[i]) + row(r + BR_QKV_B, 3 * D)          # [BS, 3D]
        q = qkv[:, :D]
        k = qkv[:, D:2 * D]
        v = qkv[:, 2 * D:]
        # all heads stacked along sublanes -> the whole attention is 2 MXU ops
        q_stack = jnp.concatenate([q] * HEADS, axis=0) * head_mask     # [H*BS, D]
        s = _mm(q_stack, k, trans_b=True) * scale + batch_bias         # [H*BS, BS]
        s_max = jnp.max(s, axis=-1, keepdims=True)
        p = jnp.exp(s - s_max)
        p = p * pl.reciprocal(jnp.sum(p, axis=-1, keepdims=True), approx=True)
        ctx = _mm(p, v) * head_mask                                    # [H*BS, D]
        attn = ctx[0:BS]
        for hh in range(1, HEADS):                                     # head concat
            attn = attn + ctx[hh * BS:(hh + 1) * BS]                   # [BS, D]
        x = x + _mm(attn, w_proj_ref[i]) + row(r + BR_PROJ_B, D)
        h = _ln(x, row(r + BR_N2_G, D), row(r + BR_N2_B, D))
        # TODO(synk): torch nn.GELU defaults to erf; tanh approximation used for
        # Mosaic-safe lowering (small numeric drift).
        h = jax.nn.gelu(_mm(h, w_fc1_ref[i]) + row(r + BR_FC1_B, HIDDEN),
                        approximate=True)
        x = x + _mm(h, w_fc2_ref[i]) + row(r + BR_FC2_B, D)
        return x

    # ---------------- encoder ----------------
    patches = patches_ref[...]                                         # [B*NP, 768]
    pe = _mm(patches, w_wide_ref[0]) + row(R_PATCH_B, D)               # [B*NP, E]
    pos_p = vec_ref[R_POS + 1:R_POS + SEQ, :D]                         # [NP, E]
    pe = pe + jnp.concatenate([pos_p] * B, axis=0)
    cls_row = row(R_CLS, D) + row(R_POS, D)                            # [1, E]
    parts = []
    for b in range(B):                                                 # interleave cls
        parts.append(cls_row)
        parts.append(pe[b * NUM_PATCHES:(b + 1) * NUM_PATCHES, :])
    x = jnp.concatenate(parts, axis=0)                                 # [B*SEQ, E]
    for i in range(DEPTH):
        x = block(x, i)
    z_e = _ln(x, row(R_NORM_G, D), row(R_NORM_B, D))

    # ---------------- vector quantization ----------------
    # TODO(synk): straight-through estimator (vq_st) is autograd-only; forward
    # values of z_q_x_st and z_q_x are identical, so a single z_q is produced.
    cb = cb_ref[...]                                                   # [K, E] f32
    cross = _mm_f32(z_e, cb, trans_b=True)                             # [BS, K]
    # ||z||^2 dropped: constant per row, does not affect the argmin.
    d = row(R_CB_SQ, K_CODES) - 2.0 * cross
    min_d = jnp.min(d, axis=-1, keepdims=True)
    kidx = jax.lax.broadcasted_iota(jnp.int32, d.shape, 1)
    first = jnp.min(jnp.where(d <= min_d, kidx, jnp.int32(K_CODES)),
                    axis=-1, keepdims=True)                            # torch argmin ties
    onehot = (kidx == first).astype(jnp.float32)                       # [BS, K]
    z_q = _mm_f32(onehot, cb)                                          # exact codebook rows

    # single packed z_e / z_q output slab
    zezq_ref[...] = jnp.concatenate([z_e, z_q], axis=-1).astype(zezq_ref.dtype)

    # ---------------- decoder ----------------
    x = _mm(z_q, w_proj_ref[N_BLOCKS]) + row(R_DEC_EMB_B, D)           # decoder_embed
    dec_pos = vec_ref[R_DEC_POS:R_DEC_POS + SEQ, :D]                   # [SEQ, E]
    x = x + jnp.concatenate([dec_pos] * B, axis=0)  # cat([x[:,:1],x[:,1:]]) is identity
    for i in range(DEC_DEPTH):
        x = block(x, DEPTH + i)
    x = _ln(x, row(R_DEC_NORM_G, D), row(R_DEC_NORM_B, D))
    pred = _mm(x, w_wide_ref[1], trans_b=True) + dec_pred_b_ref[...]   # [B*SEQ, 768]
    pred_ref[...] = pred.astype(pred_ref.dtype)   # full lane-dense slab; cls dropped in wrapper


# --------------------------- sincos pos-embedding ---------------------------
def get_1d_sincos_pos_embed_from_grid(embed_dim, pos):
    omega = np.arange(embed_dim // 2, dtype=np.float32)
    omega /= embed_dim / 2.0
    omega = 1.0 / 10000 ** omega
    out = np.einsum("m,d->md", pos.reshape(-1), omega)
    return np.concatenate([np.sin(out), np.cos(out)], axis=1)


def get_2d_sincos_pos_embed(embed_dim, grid_size, cls_token=False):
    grid_h = np.arange(grid_size, dtype=np.float32)
    grid_w = np.arange(grid_size, dtype=np.float32)
    grid = np.stack(np.meshgrid(grid_w, grid_h), axis=0).reshape([2, 1, grid_size, grid_size])
    emb_h = get_1d_sincos_pos_embed_from_grid(embed_dim // 2, grid[0])
    emb_w = get_1d_sincos_pos_embed_from_grid(embed_dim // 2, grid[1])
    pos = np.concatenate([emb_h, emb_w], axis=1)
    if cls_token:
        pos = np.concatenate([np.zeros([1, embed_dim], dtype=np.float32), pos], axis=0)
    return pos.astype(np.float32)


# ------------------------------ parameter init ------------------------------
def _xavier(key, shape):
    fan_in, fan_out = shape
    limit = float(np.sqrt(6.0 / (fan_in + fan_out)))
    return np.asarray(jax.random.uniform(key, shape, jnp.float32, -limit, limit))


def init_params(key):
    """Torch-equivalent init, packed into a handful of lane-dense slabs."""
    keys = jax.random.split(key, 8)

    patch_w = _xavier(keys[0], (PATCH_DIM, EMBED))
    cls_token = 0.02 * np.asarray(jax.random.normal(keys[1], (EMBED,), jnp.float32))
    pos_embed = get_2d_sincos_pos_embed(EMBED, GRID, cls_token=True)           # [SEQ, E]
    dec_pos_embed = get_2d_sincos_pos_embed(DEC_EMBED, GRID, cls_token=True)   # [SEQ, E]
    dec_embed_w = _xavier(keys[2], (EMBED, DEC_EMBED))
    dec_pred_w = _xavier(keys[3], (DEC_EMBED, PATCH_DIM))
    codebook = np.asarray(jax.random.uniform(keys[4], (K_CODES, EMBED), jnp.float32,
                                             -1.0 / K_CODES, 1.0 / K_CODES))

    qkv_ws, proj_ws, fc1_ws, fc2_ws = [], [], [], []
    for bk in jax.random.split(keys[5], N_BLOCKS):
        k0, k1, k2, k3 = jax.random.split(bk, 4)
        qkv_ws.append(_xavier(k0, (EMBED, 3 * EMBED)))     # fused-qkv xavier (torch)
        proj_ws.append(_xavier(k1, (EMBED, EMBED)))
        fc1_ws.append(_xavier(k2, (EMBED, HIDDEN)))
        fc2_ws.append(_xavier(k3, (HIDDEN, EMBED)))

    # ---- bf16 weight slabs (host-side cast; blocks 0..1 encoder, 2..3 decoder) ----
    w_qkv = jnp.asarray(np.stack(qkv_ws), jnp.bfloat16)                        # [4, E, 3E]
    w_proj = jnp.asarray(np.stack(proj_ws + [dec_embed_w]), jnp.bfloat16)      # [5, E, E]
    w_fc1 = jnp.asarray(np.stack(fc1_ws), jnp.bfloat16)                        # [4, E, H]
    w_fc2 = jnp.asarray(np.stack(fc2_ws), jnp.bfloat16)                        # [4, H, E]
    w_wide = jnp.asarray(np.stack([patch_w, np.ascontiguousarray(dec_pred_w.T)]),
                         jnp.bfloat16)                                         # [2, 768, E]

    # ---- f32 vector slab: biases / LN / pos-embeds / cls / ||codebook||^2 ----
    vec = np.zeros((N_VEC_ROWS, VEC_W), np.float32)
    vec[R_CLS, :EMBED] = cls_token
    vec[R_POS:R_POS + SEQ, :EMBED] = pos_embed
    vec[R_NORM_G, :EMBED] = 1.0
    vec[R_DEC_POS:R_DEC_POS + SEQ, :DEC_EMBED] = dec_pos_embed
    vec[R_DEC_NORM_G, :DEC_EMBED] = 1.0
    vec[R_CB_SQ, :K_CODES] = np.sum(codebook * codebook, axis=-1)
    for i in range(N_BLOCKS):
        r = R_BLOCKS + i * ROWS_PER_BLOCK
        vec[r + BR_N1_G, :EMBED] = 1.0
        vec[r + BR_N2_G, :EMBED] = 1.0
        # all linear / LN biases are zero at init (torch nn.init.constant_(0))

    return dict(
        w_qkv=w_qkv, w_proj=w_proj, w_fc1=w_fc1, w_fc2=w_fc2, w_wide=w_wide,
        vec=jnp.asarray(vec),
        codebook=jnp.asarray(codebook, jnp.float32),
        dec_pred_b=jnp.zeros((1, PATCH_DIM), jnp.float32),
    )


# ------------------------------- model glue ---------------------------------
@jax.jit
def vqvae_forward(imgs, params):
    # patchify (layout-only plumbing; Conv2d(patch,stride=patch) == per-patch
    # linear over the flattened (c, ph, pw) pixels).
    patches = imgs.reshape(B, IN_CH, GRID, PATCH, GRID, PATCH).transpose(0, 2, 4, 1, 3, 5)
    patches = patches.reshape(B * NUM_PATCHES, PATCH_DIM)

    # Single fused kernel, no grid: everything is VMEM-resident for one step,
    # so there is no double-buffering waste and only 9 input DMAs.
    pred, zezq = pl.pallas_call(
        _fused_vqvae_kernel,
        out_shape=(
            jax.ShapeDtypeStruct((B * SEQ, PATCH_DIM), jnp.float32),   # full pred slab
            jax.ShapeDtypeStruct((B * SEQ, 2 * EMBED), jnp.float32),   # packed z_e|z_q
        ),
    )(patches,
      params["w_qkv"], params["w_proj"], params["w_fc1"], params["w_fc2"],
      params["w_wide"], params["vec"], params["codebook"], params["dec_pred_b"])

    # drop cls row + unpatchify (layout-only): 'nhwpqc->nchpwq'
    pred = pred.reshape(B, SEQ, PATCH_DIM)[:, 1:, :]
    x = pred.reshape(B, GRID, GRID, PATCH, PATCH, IN_CH).transpose(0, 5, 1, 3, 2, 4)
    x_recon = x.reshape(B, IN_CH, IMG, IMG)

    zezq = zezq.reshape(B, SEQ, 2 * EMBED)
    z_e_x = zezq[..., :EMBED]
    z_q_x = zezq[..., EMBED:]
    return x_recon, z_e_x, z_q_x


# ---------------------------------- main -------------------------------------
if __name__ == "__main__":
    key = jax.random.PRNGKey(0)
    k_img, k_par = jax.random.split(key)
    imgs = jax.random.normal(k_img, (B, IN_CH, IMG, IMG), jnp.float32)
    params = init_params(k_par)

    x_recon, z_e_x, z_q_x = vqvae_forward(imgs, params)
    jax.block_until_ready((x_recon, z_e_x, z_q_x))

    assert x_recon.shape == (B, IN_CH, IMG, IMG)
    assert z_e_x.shape == (B, SEQ, EMBED)
    assert z_q_x.shape == (B, SEQ, EMBED)
    assert bool(jnp.all(jnp.isfinite(x_recon)))
    assert bool(jnp.all(jnp.isfinite(z_e_x)))
    assert bool(jnp.all(jnp.isfinite(z_q_x)))
    print("KERNEL_OK")
</pallas_src>

<mosaic_0001>
module attributes {stable_mosaic.version = 11 : i64} {
  func.func @_fused_vqvae_kernel(%arg0: memref<8x768xf32, #tpu.memory_space<vmem>>, %arg1: memref<4x32x96xbf16, #tpu.memory_space<vmem>>, %arg2: memref<5x32x32xbf16, #tpu.memory_space<vmem>>, %arg3: memref<4x32x128xbf16, #tpu.memory_space<vmem>>, %arg4: memref<4x128x32xbf16, #tpu.memory_space<vmem>>, %arg5: memref<2x768x32xbf16, #tpu.memory_space<vmem>>, %arg6: memref<50x128xf32, #tpu.memory_space<vmem>>, %arg7: memref<64x32xf32, #tpu.memory_space<vmem>>, %arg8: memref<1x768xf32, #tpu.memory_space<vmem>>, %arg9: memref<10x768xf32, #tpu.memory_space<vmem>>, %arg10: memref<10x64xf32, #tpu.memory_space<vmem>>) attributes {dimension_semantics = [], scalar_prefetch = 0 : i64, scratch_operands = 0 : i64, tpu.core_type = #tpu.core_type<tc>} {
    %0 = tpu.iota {dimensions = array<i32: 1>} : vector<10x32xi32>
    %c0_i32 = arith.constant 0 : i32
    %1 = vector.broadcast %c0_i32 : i32 to vector<10x32xi32>
    %2 = arith.cmpi sge, %0, %1 : vector<10x32xi32>
    %c8_i32 = arith.constant 8 : i32
    %3 = vector.broadcast %c8_i32 : i32 to vector<10x32xi32>
    %4 = arith.cmpi slt, %0, %3 : vector<10x32xi32>
    %5 = arith.andi %2, %4 : vector<10x32xi1>
    %6 = arith.extui %5 : vector<10x32xi1> to vector<10x32xi32>
    %7 = arith.sitofp %6 : vector<10x32xi32> to vector<10x32xf32>
    %c8_i32_0 = arith.constant 8 : i32
    %8 = vector.broadcast %c8_i32_0 : i32 to vector<10x32xi32>
    %9 = arith.cmpi sge, %0, %8 : vector<10x32xi32>
    %c16_i32 = arith.constant 16 : i32
    %10 = vector.broadcast %c16_i32 : i32 to vector<10x32xi32>
    %11 = arith.cmpi slt, %0, %10 : vector<10x32xi32>
    %12 = arith.andi %9, %11 : vector<10x32xi1>
    %13 = arith.extui %12 : vector<10x32xi1> to vector<10x32xi32>
    %14 = arith.sitofp %13 : vector<10x32xi32> to vector<10x32xf32>
    %c16_i32_1 = arith.constant 16 : i32
    %15 = vector.broadcast %c16_i32_1 : i32 to vector<10x32xi32>
    %16 = arith.cmpi sge, %0, %15 : vector<10x32xi32>
    %c24_i32 = arith.constant 24 : i32
    %17 = vector.broadcast %c24_i32 : i32 to vector<10x32xi32>
    %18 = arith.cmpi slt, %0, %17 : vector<10x32xi32>
    %19 = arith.andi %16, %18 : vector<10x32xi1>
    %20 = arith.extui %19 : vector<10x32xi1> to vector<10x32xi32>
    %21 = arith.sitofp %20 : vector<10x32xi32> to vector<10x32xf32>
    %c24_i32_2 = arith.constant 24 : i32
    %22 = vector.broadcast %c24_i32_2 : i32 to vector<10x32xi32>
    %23 = arith.cmpi sge, %0, %22 : vector<10x32xi32>
    %c32_i32 = arith.constant 32 : i32
    %24 = vector.broadcast %c32_i32 : i32 to vector<10x32xi32>
    %25 = arith.cmpi slt, %0, %24 : vector<10x32xi32>
    %26 = arith.andi %23, %25 : vector<10x32xi1>
    %27 = arith.extui %26 : vector<10x32xi1> to vector<10x32xi32>
    %28 = arith.sitofp %27 : vector<10x32xi32> to vector<10x32xf32>
    %29 = tpu.concatenate %7, %14, %21, %28 in 0 : vector<10x32xf32>, vector<10x32xf32>, vector<10x32xf32>, vector<10x32xf32> -> vector<40x32xf32>
    %30 = tpu.iota {dimensions = array<i32: 1>} : vector<5x10xi32>
    %c0_i32_3 = arith.constant 0 : i32
    %31 = vector.broadcast %c0_i32_3 : i32 to vector<5x10xi32>
    %32 = arith.cmpi sge, %30, %31 : vector<5x10xi32>
    %c5_i32 = arith.constant 5 : i32
    %33 = vector.broadcast %c5_i32 : i32 to vector<5x10xi32>
    %34 = arith.cmpi slt, %30, %33 : vector<5x10xi32>
    %35 = arith.andi %32, %34 : vector<5x10xi1>
    %cst = arith.constant 0.000000e+00 : f32
    %cst_4 = arith.constant -1.000000e+09 : f32
    %36 = vector.broadcast %cst : f32 to vector<5x10xf32>
    %37 = vector.broadcast %cst_4 : f32 to vector<5x10xf32>
    %38 = arith.select %35, %36, %37 : vector<5x10xi1>, vector<5x10xf32>
    %c5_i32_5 = arith.constant 5 : i32
    %39 = vector.broadcast %c5_i32_5 : i32 to vector<5x10xi32>
    %40 = arith.cmpi sge, %30, %39 : vector<5x10xi32>
    %c10_i32 = arith.constant 10 : i32
    %41 = vector.broadcast %c10_i32 : i32 to vector<5x10xi32>
    %42 = arith.cmpi slt, %30, %41 : vector<5x10xi32>
    %43 = arith.andi %40, %42 : vector<5x10xi1>
    %cst_6 = arith.constant 0.000000e+00 : f32
    %cst_7 = arith.constant -1.000000e+09 : f32
    %44 = vector.broadcast %cst_6 : f32 to vector<5x10xf32>
    %45 = vector.broadcast %cst_7 : f32 to vector<5x10xf32>
    %46 = arith.select %43, %44, %45 : vector<5x10xi1>, vector<5x10xf32>
    %47 = tpu.concatenate %38, %46 in 0 : vector<5x10xf32>, vector<5x10xf32> -> vector<10x10xf32>
    %48 = tpu.concatenate %47, %47, %47, %47 in 0 : vector<10x10xf32>, vector<10x10xf32>, vector<10x10xf32>, vector<10x10xf32> -> vector<40x10xf32>
    %c0 = arith.constant 0 : index
    %c0_8 = arith.constant 0 : index
    %49 = vector.load %arg0[%c0, %c0_8] : memref<8x768xf32, #tpu.memory_space<vmem>>, vector<8x768xf32>
    %c0_9 = arith.constant 0 : index
    %c0_10 = arith.constant 0 : index
    %c0_11 = arith.constant 0 : index
    %50 = vector.load %arg5[%c0_9, %c0_10, %c0_11] : memref<2x768x32xbf16, #tpu.memory_space<vmem>>, vector<1x768x32xbf16>
    %51 = vector.shape_cast %50 : vector<1x768x32xbf16> to vector<768x32xbf16>
    %52 = arith.truncf %49 : vector<8x768xf32> to vector<8x768xbf16>
    %cst_12 = arith.constant dense<0.000000e+00> : vector<8x32xf32>
    %53 = tpu.matmul %52, %51, %cst_12 {dimension_numbers = #tpu.dot_dimension_numbers<[1], [0], [0], [1], [0, 0, 1, 1], [], []>} : vector<8x768xbf16>, vector<768x32xbf16>, vector<8x32xf32> -> vector<8x32xf32>
    %c0_13 = arith.constant 0 : index
    %c0_14 = arith.constant 0 : index
    %54 = vector.load %arg6[%c0_13, %c0_14] : memref<50x128xf32, #tpu.memory_space<vmem>>, vector<1x32xf32>
    %55 = vector.broadcast %54 : vector<1x32xf32> to vector<8x32xf32>
    %56 = arith.addf %53, %55 : vector<8x32xf32>
    %c3 = arith.constant 3 : index
    %c0_15 = arith.constant 0 : index
    %57 = vector.load %arg6[%c3, %c0_15] : memref<50x128xf32, #tpu.memory_space<vmem>>, vector<4x32xf32>
    %58 = tpu.concatenate %57, %57 in 0 : vector<4x32xf32>, vector<4x32xf32> -> vector<8x32xf32>
    %59 = arith.addf %56, %58 : vector<8x32xf32>
    %c1 = arith.constant 1 : index
    %c0_16 = arith.constant 0 : index
    %60 = vector.load %arg6[%c1, %c0_16] : memref<50x128xf32, #tpu.memory_space<vmem>>, vector<1x32xf32>
    %c2 = arith.constant 2 : index
    %c0_17 = arith.constant 0 : index
    %61 = vector.load %arg6[%c2, %c0_17] : memref<50x128xf32, #tpu.memory_space<vmem>>, vector<1x32xf32>
    %62 = arith.addf %60, %61 : vector<1x32xf32>
    %63 = vector.extract_strided_slice %59 {offsets = [0, 0], sizes = [4, 32], strides = [1, 1]} : vector<8x32xf32> to vector<4x32xf32>
    %64 = vector.extract_strided_slice %59 {offsets = [4, 0], sizes = [4, 32], strides = [1, 1]} : vector<8x32xf32> to vector<4x32xf32>
    %65 = tpu.concatenate %62, %63, %62, %64 in 0 : vector<1x32xf32>, vector<4x32xf32>, vector<1x32xf32>, vector<4x32xf32> -> vector<10x32xf32>
    %c18 = arith.constant 18 : index
    %c0_18 = arith.constant 0 : index
    %66 = vector.load %arg6[%c18, %c0_18] : memref<50x128xf32, #tpu.memory_space<vmem>>, vector<1x32xf32>
    %c19 = arith.constant 19 : index
    %c0_19 = arith.constant 0 : index
    %67 = vector.load %arg6[%c19, %c0_19] : memref<50x128xf32, #tpu.memory_space<vmem>>, vector<1x32xf32>
    %cst_20 = arith.constant dense<0.000000e+00> : vector<10xf32>
    %68 = vector.multi_reduction <add>, %65, %cst_20 [1] : vector<10x32xf32> to vector<10xf32>
    %69 = vector.shape_cast %68 : vector<10xf32> to vector<10x1xf32>
    %cst_21 = arith.constant 3.200000e+01 : f32
    %70 = vector.broadcast %cst_21 : f32 to vector<10x1xf32>
    %71 = arith.divf %69, %70 : vector<10x1xf32>
    %72 = vector.broadcast %71 : vector<10x1xf32> to vector<10x32xf32>
    %73 = arith.subf %65, %72 : vector<10x32xf32>
    %74 = arith.mulf %73, %73 : vector<10x32xf32>
    %cst_22 = arith.constant dense<0.000000e+00> : vector<10xf32>
    %75 = vector.multi_reduction <add>, %74, %cst_22 [1] : vector<10x32xf32> to vector<10xf32>
    %76 = vector.shape_cast %75 : vector<10xf32> to vector<10x1xf32>
    %cst_23 = arith.constant 3.200000e+01 : f32
    %77 = vector.broadcast %cst_23 : f32 to vector<10x1xf32>
    %78 = arith.divf %76, %77 : vector<10x1xf32>
    %cst_24 = arith.constant 9.99999997E-7 : f32
    %79 = vector.broadcast %cst_24 : f32 to vector<10x1xf32>
    %80 = arith.addf %78, %79 : vector<10x1xf32>
    %81 = math.rsqrt %80 : vector<10x1xf32>
    %82 = vector.broadcast %81 : vector<10x1xf32> to vector<10x32xf32>
    %83 = arith.mulf %73, %82 : vector<10x32xf32>
    %84 = vector.broadcast %66 : vector<1x32xf32> to vector<10x32xf32>
    %85 = arith.mulf %83, %84 : vector<10x32xf32>
    %86 = vector.broadcast %67 : vector<1x32xf32> to vector<10x32xf32>
    %87 = arith.addf %85, %86 : vector<10x32xf32>
    %c0_25 = arith.constant 0 : index
    %c0_26 = arith.constant 0 : index
    %c0_27 = arith.constant 0 : index
    %88 = vector.load %arg1[%c0_25, %c0_26, %c0_27] : memref<4x32x96xbf16, #tpu.memory_space<vmem>>, vector<1x32x96xbf16>
    %89 = vector.shape_cast %88 : vector<1x32x96xbf16> to vector<32x96xbf16>
    %90 = arith.truncf %87 : vector<10x32xf32> to vector<10x32xbf16>
    %cst_28 = arith.constant dense<0.000000e+00> : vector<10x96xf32>
    %91 = tpu.matmul %90, %89, %cst_28 {dimension_numbers = #tpu.dot_dimension_numbers<[1], [0], [0], [1], [0, 0, 1, 1], [], []>} : vector<10x32xbf16>, vector<32x96xbf16>, vector<10x96xf32> -> vector<10x96xf32>
    %c20 = arith.constant 20 : index
    %c0_29 = arith.constant 0 : index
    %92 = vector.load %arg6[%c20, %c0_29] : memref<50x128xf32, #tpu.memory_space<vmem>>, vector<1x96xf32>
    %93 = vector.broadcast %92 : vector<1x96xf32> to vector<10x96xf32>
    %94 = arith.addf %91, %93 : vector<10x96xf32>
    %95 = vector.extract_strided_slice %94 {offsets = [0, 0], sizes = [10, 32], strides = [1, 1]} : vector<10x96xf32> to vector<10x32xf32>
    %96 = vector.extract_strided_slice %94 {offsets = [0, 32], sizes = [10, 32], strides = [1, 1]} : vector<10x96xf32> to vector<10x32xf32>
    %97 = vector.extract_strided_slice %94 {offsets = [0, 64], sizes = [10, 32], strides = [1, 1]} : vector<10x96xf32> to vector<10x32xf32>
    %98 = tpu.concatenate %95, %95, %95, %95 in 0 : vector<10x32xf32>, vector<10x32xf32>, vector<10x32xf32>, vector<10x32xf32> -> vector<40x32xf32>
    %99 = arith.mulf %98, %29 : vector<40x32xf32>
    %100 = arith.truncf %99 : vector<40x32xf32> to vector<40x32xbf16>
    %101 = arith.truncf %96 : vector<10x32xf32> to vector<10x32xbf16>
    %cst_30 = arith.constant dense<0.000000e+00> : vector<40x10xf32>
    %102 = tpu.matmul %100, %101, %cst_30 {dimension_numbers = #tpu.dot_dimension_numbers<[1], [1], [0], [0], [0, 0, 1, 0], [], []>} : vector<40x32xbf16>, vector<10x32xbf16>, vector<40x10xf32> -> vector<40x10xf32>
    %cst_31 = arith.constant 0.353553385 : f32
    %103 = vector.broadcast %cst_31 : f32 to vector<40x10xf32>
    %104 = arith.mulf %102, %103 : vector<40x10xf32>
    %105 = arith.addf %104, %48 : vector<40x10xf32>
    %cst_32 = arith.constant dense<0xFF800000> : vector<40xf32>
    %106 = vector.multi_reduction <maximumf>, %105, %cst_32 [1] : vector<40x10xf32> to vector<40xf32>
    %107 = vector.shape_cast %106 : vector<40xf32> to vector<40x1xf32>
    %108 = vector.broadcast %107 : vector<40x1xf32> to vector<40x10xf32>
    %109 = arith.subf %105, %108 : vector<40x10xf32>
    %110 = math.exp %109 : vector<40x10xf32>
    %cst_33 = arith.constant dense<0.000000e+00> : vector<40xf32>
    %111 = vector.multi_reduction <add>, %110, %cst_33 [1] : vector<40x10xf32> to vector<40xf32>
    %112 = vector.shape_cast %111 : vector<40xf32> to vector<40x1xf32>
    %113 = tpu.reciprocal %112 {approx = true} : vector<40x1xf32> -> vector<40x1xf32>
    %114 = vector.broadcast %113 : vector<40x1xf32> to vector<40x10xf32>
    %115 = arith.mulf %110, %114 : vector<40x10xf32>
    %116 = arith.truncf %115 : vector<40x10xf32> to vector<40x10xbf16>
    %117 = arith.truncf %97 : vector<10x32xf32> to vector<10x32xbf16>
    %cst_34 = arith.constant dense<0.000000e+00> : vector<40x32xf32>
    %118 = tpu.matmul %116, %117, %cst_34 {dimension_numbers = #tpu.dot_dimension_numbers<[1], [0], [0], [1], [0, 0, 1, 1], [], []>} : vector<40x10xbf16>, vector<10x32xbf16>, vector<40x32xf32> -> vector<40x32xf32>
    %119 = arith.mulf %118, %29 : vector<40x32xf32>
    %120 = vector.extract_strided_slice %119 {offsets = [0, 0], sizes = [10, 32], strides = [1, 1]} : vector<40x32xf32> to vector<10x32xf32>
    %121 = vector.extract_strided_slice %119 {offsets = [10, 0], sizes = [10, 32], strides = [1, 1]} : vector<40x32xf32> to vector<10x32xf32>
    %122 = arith.addf %120, %121 : vector<10x32xf32>
    %123 = vector.extract_strided_slice %119 {offsets = [20, 0], sizes = [10, 32], strides = [1, 1]} : vector<40x32xf32> to vector<10x32xf32>
    %124 = arith.addf %122, %123 : vector<10x32xf32>
    %125 = vector.extract_strided_slice %119 {offsets = [30, 0], sizes = [10, 32], strides = [1, 1]} : vector<40x32xf32> to vector<10x32xf32>
    %126 = arith.addf %124, %125 : vector<10x32xf32>
    %c0_35 = arith.constant 0 : index
    %c0_36 = arith.constant 0 : index
    %c0_37 = arith.constant 0 : index
    %127 = vector.load %arg2[%c0_35, %c0_36, %c0_37] : memref<5x32x32xbf16, #tpu.memory_space<vmem>>, vector<1x32x32xbf16>
    %128 = vector.shape_cast %127 : vector<1x32x32xbf16> to vector<32x32xbf16>
    %129 = arith.truncf %126 : vector<10x32xf32> to vector<10x32xbf16>
    %cst_38 = arith.constant dense<0.000000e+00> : vector<10x32xf32>
    %130 = tpu.matmul %129, %128, %cst_38 {dimension_numbers = #tpu.dot_dimension_numbers<[1], [0], [0], [1], [0, 0, 1, 1], [], []>} : vector<10x32xbf16>, vector<32x32xbf16>, vector<10x32xf32> -> vector<10x32xf32>
    %131 = arith.addf %65, %130 : vector<10x32xf32>
    %c21 = arith.constant 21 : index
    %c0_39 = arith.constant 0 : index
    %132 = vector.load %arg6[%c21, %c0_39] : memref<50x128xf32, #tpu.memory_space<vmem>>, vector<1x32xf32>
    %133 = vector.broadcast %132 : vector<1x32xf32> to vector<10x32xf32>
    %134 = arith.addf %131, %133 : vector<10x32xf32>
    %c22 = arith.constant 22 : index
    %c0_40 = arith.constant 0 : index
    %135 = vector.load %arg6[%c22, %c0_40] : memref<50x128xf32, #tpu.memory_space<vmem>>, vector<1x32xf32>
    %c23 = arith.constant 23 : index
    %c0_41 = arith.constant 0 : index
    %136 = vector.load %arg6[%c23, %c0_41] : memref<50x128xf32, #tpu.memory_space<vmem>>, vector<1x32xf32>
    %cst_42 = arith.constant dense<0.000000e+00> : vector<10xf32>
    %137 = vector.multi_reduction <add>, %134, %cst_42 [1] : vector<10x32xf32> to vector<10xf32>
    %138 = vector.shape_cast %137 : vector<10xf32> to vector<10x1xf32>
    %cst_43 = arith.constant 3.200000e+01 : f32
    %139 = vector.broadcast %cst_43 : f32 to vector<10x1xf32>
    %140 = arith.divf %138, %139 : vector<10x1xf32>
    %141 = vector.broadcast %140 : vector<10x1xf32> to vector<10x32xf32>
    %142 = arith.subf %134, %141 : vector<10x32xf32>
    %143 = arith.mulf %142, %142 : vector<10x32xf32>
    %cst_44 = arith.constant dense<0.000000e+00> : vector<10xf32>
    %144 = vector.multi_reduction <add>, %143, %cst_44 [1] : vector<10x32xf32> to vector<10xf32>
    %145 = vector.shape_cast %144 : vector<10xf32> to vector<10x1xf32>
    %cst_45 = arith.constant 3.200000e+01 : f32
    %146 = vector.broadcast %cst_45 : f32 to vector<10x1xf32>
    %147 = arith.divf %145, %146 : vector<10x1xf32>
    %cst_46 = arith.constant 9.99999997E-7 : f32
    %148 = vector.broadcast %cst_46 : f32 to vector<10x1xf32>
    %149 = arith.addf %147, %148 : vector<10x1xf32>
    %150 = math.rsqrt %149 : vector<10x1xf32>
    %151 = vector.broadcast %150 : vector<10x1xf32> to vector<10x32xf32>
    %152 = arith.mulf %142, %151 : vector<10x32xf32>
    %153 = vector.broadcast %135 : vector<1x32xf32> to vector<10x32xf32>
    %154 = arith.mulf %152, %153 : vector<10x32xf32>
    %155 = vector.broadcast %136 : vector<1x32xf32> to vector<10x32xf32>
    %156 = arith.addf %154, %155 : vector<10x32xf32>
    %c0_47 = arith.constant 0 : index
    %c0_48 = arith.constant 0 : index
    %c0_49 = arith.constant 0 : index
    %157 = vector.load %arg3[%c0_47, %c0_48, %c0_49] : memref<4x32x128xbf16, #tpu.memory_space<vmem>>, vector<1x32x128xbf16>
    %158 = vector.shape_cast %157 : vector<1x32x128xbf16> to vector<32x128xbf16>
    %159 = arith.truncf %156 : vector<10x32xf32> to vector<10x32xbf16>
    %cst_50 = arith.constant dense<0.000000e+00> : vector<10x128xf32>
    %160 = tpu.matmul %159, %158, %cst_50 {dimension_numbers = #tpu.dot_dimension_numbers<[1], [0], [0], [1], [0, 0, 1, 1], [], []>} : vector<10x32xbf16>, vector<32x128xbf16>, vector<10x128xf32> -> vector<10x128xf32>
    %c24 = arith.constant 24 : index
    %c0_51 = arith.constant 0 : index
    %161 = vector.load %arg6[%c24, %c0_51] : memref<50x128xf32, #tpu.memory_space<vmem>>, vector<1x128xf32>
    %162 = vector.broadcast %161 : vector<1x128xf32> to vector<10x128xf32>
    %163 = arith.addf %160, %162 : vector<10x128xf32>
    %164 = arith.mulf %163, %163 : vector<10x128xf32>
    %165 = arith.mulf %163, %164 : vector<10x128xf32>
    %cst_52 = arith.constant 4.471500e-02 : f32
    %166 = vector.broadcast %cst_52 : f32 to vector<10x128xf32>
    %167 = arith.mulf %166, %165 : vector<10x128xf32>
    %168 = arith.addf %163, %167 : vector<10x128xf32>
    %cst_53 = arith.constant 0.797884583 : f32
    %169 = vector.broadcast %cst_53 : f32 to vector<10x128xf32>
    %170 = arith.mulf %169, %168 : vector<10x128xf32>
    %171 = math.tanh %170 : vector<10x128xf32>
    %cst_54 = arith.constant 1.000000e+00 : f32
    %172 = vector.broadcast %cst_54 : f32 to vector<10x128xf32>
    %173 = arith.addf %172, %171 : vector<10x128xf32>
    %cst_55 = arith.constant 5.000000e-01 : f32
    %174 = vector.broadcast %cst_55 : f32 to vector<10x128xf32>
    %175 = arith.mulf %174, %173 : vector<10x128xf32>
    %176 = arith.mulf %163, %175 : vector<10x128xf32>
    %c0_56 = arith.constant 0 : index
    %c0_57 = arith.constant 0 : index
    %c0_58 = arith.constant 0 : index
    %177 = vector.load %arg4[%c0_56, %c0_57, %c0_58] : memref<4x128x32xbf16, #tpu.memory_space<vmem>>, vector<1x128x32xbf16>
    %178 = vector.shape_cast %177 : vector<1x128x32xbf16> to vector<128x32xbf16>
    %179 = arith.truncf %176 : vector<10x128xf32> to vector<10x128xbf16>
    %cst_59 = arith.constant dense<0.000000e+00> : vector<10x32xf32>
    %180 = tpu.matmul %179, %178, %cst_59 {dimension_numbers = #tpu.dot_dimension_numbers<[1], [0], [0], [1], [0, 0, 1, 1], [], []>} : vector<10x128xbf16>, vector<128x32xbf16>, vector<10x32xf32> -> vector<10x32xf32>
    %181 = arith.addf %134, %180 : vector<10x32xf32>
    %c25 = arith.constant 25 : index
    %c0_60 = arith.constant 0 : index
    %182 = vector.load %arg6[%c25, %c0_60] : memref<50x128xf32, #tpu.memory_space<vmem>>, vector<1x32xf32>
    %183 = vector.broadcast %182 : vector<1x32xf32> to vector<10x32xf32>
    %184 = arith.addf %181, %183 : vector<10x32xf32>
    %c26 = arith.constant 26 : index
    %c0_61 = arith.constant 0 : index
    %185 = vector.load %arg6[%c26, %c0_61] : memref<50x128xf32, #tpu.memory_space<vmem>>, vector<1x32xf32>
    %c27 = arith.constant 27 : index
    %c0_62 = arith.constant 0 : index
    %186 = vector.load %arg6[%c27, %c0_62] : memref<50x128xf32, #tpu.memory_space<vmem>>, vector<1x32xf32>
    %cst_63 = arith.constant dense<0.000000e+00> : vector<10xf32>
    %187 = vector.multi_reduction <add>, %184, %cst_63 [1] : vector<10x32xf32> to vector<10xf32>
    %188 = vector.shape_cast %187 : vector<10xf32> to vector<10x1xf32>
    %cst_64 = arith.constant 3.200000e+01 : f32
    %189 = vector.broadcast %cst_64 : f32 to vector<10x1xf32>
    %190 = arith.divf %188, %189 : vector<10x1xf32>
    %191 = vector.broadcast %190 : vector<10x1xf32> to vector<10x32xf32>
    %192 = arith.subf %184, %191 : vector<10x32xf32>
    %193 = arith.mulf %192, %192 : vector<10x32xf32>
    %cst_65 = arith.constant dense<0.000000e+00> : vector<10xf32>
    %194 = vector.multi_reduction <add>, %193, %cst_65 [1] : vector<10x32xf32> to vector<10xf32>
    %195 = vector.shape_cast %194 : vector<10xf32> to vector<10x1xf32>
    %cst_66 = arith.constant 3.200000e+01 : f32
    %196 = vector.broadcast %cst_66 : f32 to vector<10x1xf32>
    %197 = arith.divf %195, %196 : vector<10x1xf32>
    %cst_67 = arith.constant 9.99999997E-7 : f32
    %198 = vector.broadcast %cst_67 : f32 to vector<10x1xf32>
    %199 = arith.addf %197, %198 : vector<10x1xf32>
    %200 = math.rsqrt %199 : vector<10x1xf32>
    %201 = vector.broadcast %200 : vector<10x1xf32> to vector<10x32xf32>
    %202 = arith.mulf %192, %201 : vector<10x32xf32>
    %203 = vector.broadcast %185 : vector<1x32xf32> to vector<10x32xf32>
    %204 = arith.mulf %202, %203 : vector<10x32xf32>
    %205 = vector.broadcast %186 : vector<1x32xf32> to vector<10x32xf32>
    %206 = arith.addf %204, %205 : vector<10x32xf32>
    %c1_68 = arith.constant 1 : index
    %c0_69 = arith.constant 0 : index
    %c0_70 = arith.constant 0 : index
    %207 = vector.load %arg1[%c1_68, %c0_69, %c0_70] : memref<4x32x96xbf16, #tpu.memory_space<vmem>>, vector<1x32x96xbf16>
    %208 = vector.shape_cast %207 : vector<1x32x96xbf16> to vector<32x96xbf16>
    %209 = arith.truncf %206 : vector<10x32xf32> to vector<10x32xbf16>
    %cst_71 = arith.constant dense<0.000000e+00> : vector<10x96xf32>
    %210 = tpu.matmul %209, %208, %cst_71 {dimension_numbers = #tpu.dot_dimension_numbers<[1], [0], [0], [1], [0, 0, 1, 1], [], []>} : vector<10x32xbf16>, vector<32x96xbf16>, vector<10x96xf32> -> vector<10x96xf32>
    %c28 = arith.constant 28 : index
    %c0_72 = arith.constant 0 : index
    %211 = vector.load %arg6[%c28, %c0_72] : memref<50x128xf32, #tpu.memory_space<vmem>>, vector<1x96xf32>
    %212 = vector.broadcast %211 : vector<1x96xf32> to vector<10x96xf32>
    %213 = arith.addf %210, %212 : vector<10x96xf32>
    %214 = vector.extract_strided_slice %213 {offsets = [0, 0], sizes = [10, 32], strides = [1, 1]} : vector<10x96xf32> to vector<10x32xf32>
    %215 = vector.extract_strided_slice %213 {offsets = [0, 32], sizes = [10, 32], strides = [1, 1]} : vector<10x96xf32> to vector<10x32xf32>
    %216 = vector.extract_strided_slice %213 {offsets = [0, 64], sizes = [10, 32], strides = [1, 1]} : vector<10x96xf32> to vector<10x32xf32>
    %217 = tpu.concatenate %214, %214, %214, %214 in 0 : vector<10x32xf32>, vector<10x32xf32>, vector<10x32xf32>, vector<10x32xf32> -> vector<40x32xf32>
    %218 = arith.mulf %217, %29 : vector<40x32xf32>
    %219 = arith.truncf %218 : vector<40x32xf32> to vector<40x32xbf16>
    %220 = arith.truncf %215 : vector<10x32xf32> to vector<10x32xbf16>
    %cst_73 = arith.constant dense<0.000000e+00> : vector<40x10xf32>
    %221 = tpu.matmul %219, %220, %cst_73 {dimension_numbers = #tpu.dot_dimension_numbers<[1], [1], [0], [0], [0, 0, 1, 0], [], []>} : vector<40x32xbf16>, vector<10x32xbf16>, vector<40x10xf32> -> vector<40x10xf32>
    %cst_74 = arith.constant 0.353553385 : f32
    %222 = vector.broadcast %cst_74 : f32 to vector<40x10xf32>
    %223 = arith.mulf %221, %222 : vector<40x10xf32>
    %224 = arith.addf %223, %48 : vector<40x10xf32>
    %cst_75 = arith.constant dense<0xFF800000> : vector<40xf32>
    %225 = vector.multi_reduction <maximumf>, %224, %cst_75 [1] : vector<40x10xf32> to vector<40xf32>
    %226 = vector.shape_cast %225 : vector<40xf32> to vector<40x1xf32>
    %227 = vector.broadcast %226 : vector<40x1xf32> to vector<40x10xf32>
    %228 = arith.subf %224, %227 : vector<40x10xf32>
    %229 = math.exp %228 : vector<40x10xf32>
    %cst_76 = arith.constant dense<0.000000e+00> : vector<40xf32>
    %230 = vector.multi_reduction <add>, %229, %cst_76 [1] : vector<40x10xf32> to vector<40xf32>
    %231 = vector.shape_cast %230 : vector<40xf32> to vector<40x1xf32>
    %232 = tpu.reciprocal %231 {approx = true} : vector<40x1xf32> -> vector<40x1xf32>
    %233 = vector.broadcast %232 : vector<40x1xf32> to vector<40x10xf32>
    %234 = arith.mulf %229, %233 : vector<40x10xf32>
    %235 = arith.truncf %234 : vector<40x10xf32> to vector<40x10xbf16>
    %236 = arith.truncf %216 : vector<10x32xf32> to vector<10x32xbf16>
    %cst_77 = arith.constant dense<0.000000e+00> : vector<40x32xf32>
    %237 = tpu.matmul %235, %236, %cst_77 {dimension_numbers = #tpu.dot_dimension_numbers<[1], [0], [0], [1], [0, 0, 1, 1], [], []>} : vector<40x10xbf16>, vector<10x32xbf16>, vector<40x32xf32> -> vector<40x32xf32>
    %238 = arith.mulf %237, %29 : vector<40x32xf32>
    %239 = vector.extract_strided_slice %238 {offsets = [0, 0], sizes = [10, 32], strides = [1, 1]} : vector<40x32xf32> to vector<10x32xf32>
    %240 = vector.extract_strided_slice %238 {offsets = [10, 0], sizes = [10, 32], strides = [1, 1]} : vector<40x32xf32> to vector<10x32xf32>
    %241 = arith.addf %239, %240 : vector<10x32xf32>
    %242 = vector.extract_strided_slice %238 {offsets = [20, 0], sizes = [10, 32], strides = [1, 1]} : vector<40x32xf32> to vector<10x32xf32>
    %243 = arith.addf %241, %242 : vector<10x32xf32>
    %244 = vector.extract_strided_slice %238 {offsets = [30, 0], sizes = [10, 32], strides = [1, 1]} : vector<40x32xf32> to vector<10x32xf32>
    %245 = arith.addf %243, %244 : vector<10x32xf32>
    %c1_78 = arith.constant 1 : index
    %c0_79 = arith.constant 0 : index
    %c0_80 = arith.constant 0 : index
    %246 = vector.load %arg2[%c1_78, %c0_79, %c0_80] : memref<5x32x32xbf16, #tpu.memory_space<vmem>>, vector<1x32x32xbf16>
    %247 = vector.shape_cast %246 : vector<1x32x32xbf16> to vector<32x32xbf16>
    %248 = arith.truncf %245 : vector<10x32xf32> to vector<10x32xbf16>
    %cst_81 = arith.constant dense<0.000000e+00> : vector<10x32xf32>
    %249 = tpu.matmul %248, %247, %cst_81 {dimension_numbers = #tpu.dot_dimension_numbers<[1], [0], [0], [1], [0, 0, 1, 1], [], []>} : vector<10x32xbf16>, vector<32x32xbf16>, vector<10x32xf32> -> vector<10x32xf32>
    %250 = arith.addf %184, %249 : vector<10x32xf32>
    %c29 = arith.constant 29 : index
    %c0_82 = arith.constant 0 : index
    %251 = vector.load %arg6[%c29, %c0_82] : memref<50x128xf32, #tpu.memory_space<vmem>>, vector<1x32xf32>
    %252 = vector.broadcast %251 : vector<1x32xf32> to vector<10x32xf32>
    %253 = arith.addf %250, %252 : vector<10x32xf32>
    %c30 = arith.constant 30 : index
    %c0_83 = arith.constant 0 : index
    %254 = vector.load %arg6[%c30, %c0_83] : memref<50x128xf32, #tpu.memory_space<vmem>>, vector<1x32xf32>
    %c31 = arith.constant 31 : index
    %c0_84 = arith.constant 0 : index
    %255 = vector.load %arg6[%c31, %c0_84] : memref<50x128xf32, #tpu.memory_space<vmem>>, vector<1x32xf32>
    %cst_85 = arith.constant dense<0.000000e+00> : vector<10xf32>
    %256 = vector.multi_reduction <add>, %253, %cst_85 [1] : vector<10x32xf32> to vector<10xf32>
    %257 = vector.shape_cast %256 : vector<10xf32> to vector<10x1xf32>
    %cst_86 = arith.constant 3.200000e+01 : f32
    %258 = vector.broadcast %cst_86 : f32 to vector<10x1xf32>
    %259 = arith.divf %257, %258 : vector<10x1xf32>
    %260 = vector.broadcast %259 : vector<10x1xf32> to vector<10x32xf32>
    %261 = arith.subf %253, %260 : vector<10x32xf32>
    %262 = arith.mulf %261, %261 : vector<10x32xf32>
    %cst_87 = arith.constant dense<0.000000e+00> : vector<10xf32>
    %263 = vector.multi_reduction <add>, %262, %cst_87 [1] : vector<10x32xf32> to vector<10xf32>
    %264 = vector.shape_cast %263 : vector<10xf32> to vector<10x1xf32>
    %cst_88 = arith.constant 3.200000e+01 : f32
    %265 = vector.broadcast %cst_88 : f32 to vector<10x1xf32>
    %266 = arith.divf %264, %265 : vector<10x1xf32>
    %cst_89 = arith.constant 9.99999997E-7 : f32
    %267 = vector.broadcast %cst_89 : f32 to vector<10x1xf32>
    %268 = arith.addf %266, %267 : vector<10x1xf32>
    %269 = math.rsqrt %268 : vector<10x1xf32>
    %270 = vector.broadcast %269 : vector<10x1xf32> to vector<10x32xf32>
    %271 = arith.mulf %261, %270 : vector<10x32xf32>
    %272 = vector.broadcast %254 : vector<1x32xf32> to vector<10x32xf32>
    %273 = arith.mulf %271, %272 : vector<10x32xf32>
    %274 = vector.broadcast %255 : vector<1x32xf32> to vector<10x32xf32>
    %275 = arith.addf %273, %274 : vector<10x32xf32>
    %c1_90 = arith.constant 1 : index
    %c0_91 = arith.constant 0 : index
    %c0_92 = arith.constant 0 : index
    %276 = vector.load %arg3[%c1_90, %c0_91, %c0_92] : memref<4x32x128xbf16, #tpu.memory_space<vmem>>, vector<1x32x128xbf16>
    %277 = vector.shape_cast %276 : vector<1x32x128xbf16> to vector<32x128xbf16>
    %278 = arith.truncf %275 : vector<10x32xf32> to vector<10x32xbf16>
    %cst_93 = arith.constant dense<0.000000e+00> : vector<10x128xf32>
    %279 = tpu.matmul %278, %277, %cst_93 {dimension_numbers = #tpu.dot_dimension_numbers<[1], [0], [0], [1], [0, 0, 1, 1], [], []>} : vector<10x32xbf16>, vector<32x128xbf16>, vector<10x128xf32> -> vector<10x128xf32>
    %c32 = arith.constant 32 : index
    %c0_94 = arith.constant 0 : index
    %280 = vector.load %arg6[%c32, %c0_94] : memref<50x128xf32, #tpu.memory_space<vmem>>, vector<1x128xf32>
    %281 = vector.broadcast %280 : vector<1x128xf32> to vector<10x128xf32>
    %282 = arith.addf %279, %281 : vector<10x128xf32>
    %283 = arith.mulf %282, %282 : vector<10x128xf32>
    %284 = arith.mulf %282, %283 : vector<10x128xf32>
    %cst_95 = arith.constant 4.471500e-02 : f32
    %285 = vector.broadcast %cst_95 : f32 to vector<10x128xf32>
    %286 = arith.mulf %285, %284 : vector<10x128xf32>
    %287 = arith.addf %282, %286 : vector<10x128xf32>
    %cst_96 = arith.constant 0.797884583 : f32
    %288 = vector.broadcast %cst_96 : f32 to vector<10x128xf32>
    %289 = arith.mulf %288, %287 : vector<10x128xf32>
    %290 = math.tanh %289 : vector<10x128xf32>
    %cst_97 = arith.constant 1.000000e+00 : f32
    %291 = vector.broadcast %cst_97 : f32 to vector<10x128xf32>
    %292 = arith.addf %291, %290 : vector<10x128xf32>
    %cst_98 = arith.constant 5.000000e-01 : f32
    %293 = vector.broadcast %cst_98 : f32 to vector<10x128xf32>
    %294 = arith.mulf %293, %292 : vector<10x128xf32>
    %295 = arith.mulf %282, %294 : vector<10x128xf32>
    %c1_99 = arith.constant 1 : index
    %c0_100 = arith.constant 0 : index
    %c0_101 = arith.constant 0 : index
    %296 = vector.load %arg4[%c1_99, %c0_100, %c0_101] : memref<4x128x32xbf16, #tpu.memory_space<vmem>>, vector<1x128x32xbf16>
    %297 = vector.shape_cast %296 : vector<1x128x32xbf16> to vector<128x32xbf16>
    %298 = arith.truncf %295 : vector<10x128xf32> to vector<10x128xbf16>
    %cst_102 = arith.constant dense<0.000000e+00> : vector<10x32xf32>
    %299 = tpu.matmul %298, %297, %cst_102 {dimension_numbers = #tpu.dot_dimension_numbers<[1], [0], [0], [1], [0, 0, 1, 1], [], []>} : vector<10x128xbf16>, vector<128x32xbf16>, vector<10x32xf32> -> vector<10x32xf32>
    %300 = arith.addf %253, %299 : vector<10x32xf32>
    %c33 = arith.constant 33 : index
    %c0_103 = arith.constant 0 : index
    %301 = vector.load %arg6[%c33, %c0_103] : memref<50x128xf32, #tpu.memory_space<vmem>>, vector<1x32xf32>
    %302 = vector.broadcast %301 : vector<1x32xf32> to vector<10x32xf32>
    %303 = arith.addf %300, %302 : vector<10x32xf32>
    %c7 = arith.constant 7 : index
    %c0_104 = arith.constant 0 : index
    %304 = vector.load %arg6[%c7, %c0_104] : memref<50x128xf32, #tpu.memory_space<vmem>>, vector<1x32xf32>
    %c8 = arith.constant 8 : index
    %c0_105 = arith.constant 0 : index
    %305 = vector.load %arg6[%c8, %c0_105] : memref<50x128xf32, #tpu.memory_space<vmem>>, vector<1x32xf32>
    %cst_106 = arith.constant dense<0.000000e+00> : vector<10xf32>
    %306 = vector.multi_reduction <add>, %303, %cst_106 [1] : vector<10x32xf32> to vector<10xf32>
    %307 = vector.shape_cast %306 : vector<10xf32> to vector<10x1xf32>
    %cst_107 = arith.constant 3.200000e+01 : f32
    %308 = vector.broadcast %cst_107 : f32 to vector<10x1xf32>
    %309 = arith.divf %307, %308 : vector<10x1xf32>
    %310 = vector.broadcast %309 : vector<10x1xf32> to vector<10x32xf32>
    %311 = arith.subf %303, %310 : vector<10x32xf32>
    %312 = arith.mulf %311, %311 : vector<10x32xf32>
    %cst_108 = arith.constant dense<0.000000e+00> : vector<10xf32>
    %313 = vector.multi_reduction <add>, %312, %cst_108 [1] : vector<10x32xf32> to vector<10xf32>
    %314 = vector.shape_cast %313 : vector<10xf32> to vector<10x1xf32>
    %cst_109 = arith.constant 3.200000e+01 : f32
    %315 = vector.broadcast %cst_109 : f32 to vector<10x1xf32>
    %316 = arith.divf %314, %315 : vector<10x1xf32>
    %cst_110 = arith.constant 9.99999997E-7 : f32
    %317 = vector.broadcast %cst_110 : f32 to vector<10x1xf32>
    %318 = arith.addf %316, %317 : vector<10x1xf32>
    %319 = math.rsqrt %318 : vector<10x1xf32>
    %320 = vector.broadcast %319 : vector<10x1xf32> to vector<10x32xf32>
    %321 = arith.mulf %311, %320 : vector<10x32xf32>
    %322 = vector.broadcast %304 : vector<1x32xf32> to vector<10x32xf32>
    %323 = arith.mulf %321, %322 : vector<10x32xf32>
    %324 = vector.broadcast %305 : vector<1x32xf32> to vector<10x32xf32>
    %325 = arith.addf %323, %324 : vector<10x32xf32>
    %c0_111 = arith.constant 0 : index
    %c0_112 = arith.constant 0 : index
    %326 = vector.load %arg7[%c0_111, %c0_112] : memref<64x32xf32, #tpu.memory_space<vmem>>, vector<64x32xf32>
    %cst_113 = arith.constant dense<0.000000e+00> : vector<10x64xf32>
    %327 = tpu.matmul %325, %326, %cst_113 {dimension_numbers = #tpu.dot_dimension_numbers<[1], [1], [0], [0], [0, 0, 1, 0], [], []>, precision = #tpu.contract_precision<fp32>} : vector<10x32xf32>, vector<64x32xf32>, vector<10x64xf32> -> vector<10x64xf32>
    %c17 = arith.constant 17 : index
    %c0_114 = arith.constant 0 : index
    %328 = vector.load %arg6[%c17, %c0_114] : memref<50x128xf32, #tpu.memory_space<vmem>>, vector<1x64xf32>
    %cst_115 = arith.constant 2.000000e+00 : f32
    %329 = vector.broadcast %cst_115 : f32 to vector<10x64xf32>
    %330 = arith.mulf %329, %327 : vector<10x64xf32>
    %331 = vector.broadcast %328 : vector<1x64xf32> to vector<10x64xf32>
    %332 = arith.subf %331, %330 : vector<10x64xf32>
    %cst_116 = arith.constant dense<0x7F800000> : vector<10xf32>
    %333 = vector.multi_reduction <minimumf>, %332, %cst_116 [1] : vector<10x64xf32> to vector<10xf32>
    %334 = vector.shape_cast %333 : vector<10xf32> to vector<10x1xf32>
    %335 = tpu.iota {dimensions = array<i32: 1>} : vector<10x64xi32>
    %336 = vector.broadcast %334 : vector<10x1xf32> to vector<10x64xf32>
    %337 = arith.cmpf ole, %332, %336 : vector<10x64xf32>
    %c64_i32 = arith.constant 64 : i32
    %338 = vector.broadcast %c64_i32 : i32 to vector<10x64xi32>
    %339 = arith.select %337, %335, %338 : vector<10x64xi1>, vector<10x64xi32>
    %cst_117 = arith.constant dense<2147483647> : vector<10xi32>
    %340 = vector.multi_reduction <minsi>, %339, %cst_117 [1] : vector<10x64xi32> to vector<10xi32>
    %341 = vector.shape_cast %340 : vector<10xi32> to vector<10x1xi32>
    %342 = vector.broadcast %341 : vector<10x1xi32> to vector<10x64xi32>
    %343 = arith.cmpi eq, %335, %342 : vector<10x64xi32>
    %344 = arith.extui %343 : vector<10x64xi1> to vector<10x64xi32>
    %345 = arith.sitofp %344 : vector<10x64xi32> to vector<10x64xf32>
    %cst_118 = arith.constant dense<0.000000e+00> : vector<10x32xf32>
    %346 = tpu.matmul %345, %326, %cst_118 {dimension_numbers = #tpu.dot_dimension_numbers<[1], [0], [0], [1], [0, 0, 1, 1], [], []>, precision = #tpu.contract_precision<fp32>} : vector<10x64xf32>, vector<64x32xf32>, vector<10x32xf32> -> vector<10x32xf32>
    %347 = tpu.concatenate %325, %346 in 1 : vector<10x32xf32>, vector<10x32xf32> -> vector<10x64xf32>
    %c0_119 = arith.constant 0 : index
    %c0_120 = arith.constant 0 : index
    %348 = vector.load %arg10[%c0_119, %c0_120] : memref<10x64xf32, #tpu.memory_space<vmem>>, vector<10x64xf32>
    tpu.vector_store %arg10[%c0_119, %c0_120], %347 {strides = array<i32>} : memref<10x64xf32, #tpu.memory_space<vmem>>, vector<10x64xf32>,
    %c4 = arith.constant 4 : index
    %c0_121 = arith.constant 0 : index
    %c0_122 = arith.constant 0 : index
    %349 = vector.load %arg2[%c4, %c0_121, %c0_122] : memref<5x32x32xbf16, #tpu.memory_space<vmem>>, vector<1x32x32xbf16>
    %350 = vector.shape_cast %349 : vector<1x32x32xbf16> to vector<32x32xbf16>
    %351 = arith.truncf %346 : vector<10x32xf32> to vector<10x32xbf16>
    %cst_123 = arith.constant dense<0.000000e+00> : vector<10x32xf32>
    %352 = tpu.matmul %351, %350, %cst_123 {dimension_numbers = #tpu.dot_dimension_numbers<[1], [0], [0], [1], [0, 0, 1, 1], [], []>} : vector<10x32xbf16>, vector<32x32xbf16>, vector<10x32xf32> -> vector<10x32xf32>
    %c9 = arith.constant 9 : index
    %c0_124 = arith.constant 0 : index
    %353 = vector.load %arg6[%c9, %c0_124] : memref<50x128xf32, #tpu.memory_space<vmem>>, vector<1x32xf32>
    %354 = vector.broadcast %353 : vector<1x32xf32> to vector<10x32xf32>
    %355 = arith.addf %352, %354 : vector<10x32xf32>
    %c10 = arith.constant 10 : index
    %c0_125 = arith.constant 0 : index
    %356 = vector.load %arg6[%c10, %c0_125] : memref<50x128xf32, #tpu.memory_space<vmem>>, vector<5x32xf32>
    %357 = tpu.concatenate %356, %356 in 0 : vector<5x32xf32>, vector<5x32xf32> -> vector<10x32xf32>
    %358 = arith.addf %355, %357 : vector<10x32xf32>
    %c34 = arith.constant 34 : index
    %c0_126 = arith.constant 0 : index
    %359 = vector.load %arg6[%c34, %c0_126] : memref<50x128xf32, #tpu.memory_space<vmem>>, vector<1x32xf32>
    %c35 = arith.constant 35 : index
    %c0_127 = arith.constant 0 : index
    %360 = vector.load %arg6[%c35, %c0_127] : memref<50x128xf32, #tpu.memory_space<vmem>>, vector<1x32xf32>
    %cst_128 = arith.constant dense<0.000000e+00> : vector<10xf32>
    %361 = vector.multi_reduction <add>, %358, %cst_128 [1] : vector<10x32xf32> to vector<10xf32>
    %362 = vector.shape_cast %361 : vector<10xf32> to vector<10x1xf32>
    %cst_129 = arith.constant 3.200000e+01 : f32
    %363 = vector.broadcast %cst_129 : f32 to vector<10x1xf32>
    %364 = arith.divf %362, %363 : vector<10x1xf32>
    %365 = vector.broadcast %364 : vector<10x1xf32> to vector<10x32xf32>
    %366 = arith.subf %358, %365 : vector<10x32xf32>
    %367 = arith.mulf %366, %366 : vector<10x32xf32>
    %cst_130 = arith.constant dense<0.000000e+00> : vector<10xf32>
    %368 = vector.multi_reduction <add>, %367, %cst_130 [1] : vector<10x32xf32> to vector<10xf32>
    %369 = vector.shape_cast %368 : vector<10xf32> to vector<10x1xf32>
    %cst_131 = arith.constant 3.200000e+01 : f32
    %370 = vector.broadcast %cst_131 : f32 to vector<10x1xf32>
    %371 = arith.divf %369, %370 : vector<10x1xf32>
    %cst_132 = arith.constant 9.99999997E-7 : f32
    %372 = vector.broadcast %cst_132 : f32 to vector<10x1xf32>
    %373 = arith.addf %371, %372 : vector<10x1xf32>
    %374 = math.rsqrt %373 : vector<10x1xf32>
    %375 = vector.broadcast %374 : vector<10x1xf32> to vector<10x32xf32>
    %376 = arith.mulf %366, %375 : vector<10x32xf32>
    %377 = vector.broadcast %359 : vector<1x32xf32> to vector<10x32xf32>
    %378 = arith.mulf %376, %377 : vector<10x32xf32>
    %379 = vector.broadcast %360 : vector<1x32xf32> to vector<10x32xf32>
    %380 = arith.addf %378, %379 : vector<10x32xf32>
    %c2_133 = arith.constant 2 : index
    %c0_134 = arith.constant 0 : index
    %c0_135 = arith.constant 0 : index
    %381 = vector.load %arg1[%c2_133, %c0_134, %c0_135] : memref<4x32x96xbf16, #tpu.memory_space<vmem>>, vector<1x32x96xbf16>
    %382 = vector.shape_cast %381 : vector<1x32x96xbf16> to vector<32x96xbf16>
    %383 = arith.truncf %380 : vector<10x32xf32> to vector<10x32xbf16>
    %cst_136 = arith.constant dense<0.000000e+00> : vector<10x96xf32>
    %384 = tpu.matmul %383, %382, %cst_136 {dimension_numbers = #tpu.dot_dimension_numbers<[1], [0], [0], [1], [0, 0, 1, 1], [], []>} : vector<10x32xbf16>, vector<32x96xbf16>, vector<10x96xf32> -> vector<10x96xf32>
    %c36 = arith.constant 36 : index
    %c0_137 = arith.constant 0 : index
    %385 = vector.load %arg6[%c36, %c0_137] : memref<50x128xf32, #tpu.memory_space<vmem>>, vector<1x96xf32>
    %386 = vector.broadcast %385 : vector<1x96xf32> to vector<10x96xf32>
    %387 = arith.addf %384, %386 : vector<10x96xf32>
    %388 = vector.extract_strided_slice %387 {offsets = [0, 0], sizes = [10, 32], strides = [1, 1]} : vector<10x96xf32> to vector<10x32xf32>
    %389 = vector.extract_strided_slice %387 {offsets = [0, 32], sizes = [10, 32], strides = [1, 1]} : vector<10x96xf32> to vector<10x32xf32>
    %390 = vector.extract_strided_slice %387 {offsets = [0, 64], sizes = [10, 32], strides = [1, 1]} : vector<10x96xf32> to vector<10x32xf32>
    %391 = tpu.concatenate %388, %388, %388, %388 in 0 : vector<10x32xf32>, vector<10x32xf32>, vector<10x32xf32>, vector<10x32xf32> -> vector<40x32xf32>
    %392 = arith.mulf %391, %29 : vector<40x32xf32>
    %393 = arith.truncf %392 : vector<40x32xf32> to vector<40x32xbf16>
    %394 = arith.truncf %389 : vector<10x32xf32> to vector<10x32xbf16>
    %cst_138 = arith.constant dense<0.000000e+00> : vector<40x10xf32>
    %395 = tpu.matmul %393, %394, %cst_138 {dimension_numbers = #tpu.dot_dimension_numbers<[1], [1], [0], [0], [0, 0, 1, 0], [], []>} : vector<40x32xbf16>, vector<10x32xbf16>, vector<40x10xf32> -> vector<40x10xf32>
    %cst_139 = arith.constant 0.353553385 : f32
    %396 = vector.broadcast %cst_139 : f32 to vector<40x10xf32>
    %397 = arith.mulf %395, %396 : vector<40x10xf32>
    %398 = arith.addf %397, %48 : vector<40x10xf32>
    %cst_140 = arith.constant dense<0xFF800000> : vector<40xf32>
    %399 = vector.multi_reduction <maximumf>, %398, %cst_140 [1] : vector<40x10xf32> to vector<40xf32>
    %400 = vector.shape_cast %399 : vector<40xf32> to vector<40x1xf32>
    %401 = vector.broadcast %400 : vector<40x1xf32> to vector<40x10xf32>
    %402 = arith.subf %398, %401 : vector<40x10xf32>
    %403 = math.exp %402 : vector<40x10xf32>
    %cst_141 = arith.constant dense<0.000000e+00> : vector<40xf32>
    %404 = vector.multi_reduction <add>, %403, %cst_141 [1] : vector<40x10xf32> to vector<40xf32>
    %405 = vector.shape_cast %404 : vector<40xf32> to vector<40x1xf32>
    %406 = tpu.reciprocal %405 {approx = true} : vector<40x1xf32> -> vector<40x1xf32>
    %407 = vector.broadcast %406 : vector<40x1xf32> to vector<40x10xf32>
    %408 = arith.mulf %403, %407 : vector<40x10xf32>
    %409 = arith.truncf %408 : vector<40x10xf32> to vector<40x10xbf16>
    %410 = arith.truncf %390 : vector<10x32xf32> to vector<10x32xbf16>
    %cst_142 = arith.constant dense<0.000000e+00> : vector<40x32xf32>
    %411 = tpu.matmul %409, %410, %cst_142 {dimension_numbers = #tpu.dot_dimension_numbers<[1], [0], [0], [1], [0, 0, 1, 1], [], []>} : vector<40x10xbf16>, vector<10x32xbf16>, vector<40x32xf32> -> vector<40x32xf32>
    %412 = arith.mulf %411, %29 : vector<40x32xf32>
    %413 = vector.extract_strided_slice %412 {offsets = [0, 0], sizes = [10, 32], strides = [1, 1]} : vector<40x32xf32> to vector<10x32xf32>
    %414 = vector.extract_strided_slice %412 {offsets = [10, 0], sizes = [10, 32], strides = [1, 1]} : vector<40x32xf32> to vector<10x32xf32>
    %415 = arith.addf %413, %414 : vector<10x32xf32>
    %416 = vector.extract_strided_slice %412 {offsets = [20, 0], sizes = [10, 32], strides = [1, 1]} : vector<40x32xf32> to vector<10x32xf32>
    %417 = arith.addf %415, %416 : vector<10x32xf32>
    %418 = vector.extract_strided_slice %412 {offsets = [30, 0], sizes = [10, 32], strides = [1, 1]} : vector<40x32xf32> to vector<10x32xf32>
    %419 = arith.addf %417, %418 : vector<10x32xf32>
    %c2_143 = arith.constant 2 : index
    %c0_144 = arith.constant 0 : index
    %c0_145 = arith.constant 0 : index
    %420 = vector.load %arg2[%c2_143, %c0_144, %c0_145] : memref<5x32x32xbf16, #tpu.memory_space<vmem>>, vector<1x32x32xbf16>
    %421 = vector.shape_cast %420 : vector<1x32x32xbf16> to vector<32x32xbf16>
    %422 = arith.truncf %419 : vector<10x32xf32> to vector<10x32xbf16>
    %cst_146 = arith.constant dense<0.000000e+00> : vector<10x32xf32>
    %423 = tpu.matmul %422, %421, %cst_146 {dimension_numbers = #tpu.dot_dimension_numbers<[1], [0], [0], [1], [0, 0, 1, 1], [], []>} : vector<10x32xbf16>, vector<32x32xbf16>, vector<10x32xf32> -> vector<10x32xf32>
    %424 = arith.addf %358, %423 : vector<10x32xf32>
    %c37 = arith.constant 37 : index
    %c0_147 = arith.constant 0 : index
    %425 = vector.load %arg6[%c37, %c0_147] : memref<50x128xf32, #tpu.memory_space<vmem>>, vector<1x32xf32>
    %426 = vector.broadcast %425 : vector<1x32xf32> to vector<10x32xf32>
    %427 = arith.addf %424, %426 : vector<10x32xf32>
    %c38 = arith.constant 38 : index
    %c0_148 = arith.constant 0 : index
    %428 = vector.load %arg6[%c38, %c0_148] : memref<50x128xf32, #tpu.memory_space<vmem>>, vector<1x32xf32>
    %c39 = arith.constant 39 : index
    %c0_149 = arith.constant 0 : index
    %429 = vector.load %arg6[%c39, %c0_149] : memref<50x128xf32, #tpu.memory_space<vmem>>, vector<1x32xf32>
    %cst_150 = arith.constant dense<0.000000e+00> : vector<10xf32>
    %430 = vector.multi_reduction <add>, %427, %cst_150 [1] : vector<10x32xf32> to vector<10xf32>
    %431 = vector.shape_cast %430 : vector<10xf32> to vector<10x1xf32>
    %cst_151 = arith.constant 3.200000e+01 : f32
    %432 = vector.broadcast %cst_151 : f32 to vector<10x1xf32>
    %433 = arith.divf %431, %432 : vector<10x1xf32>
    %434 = vector.broadcast %433 : vector<10x1xf32> to vector<10x32xf32>
    %435 = arith.subf %427, %434 : vector<10x32xf32>
    %436 = arith.mulf %435, %435 : vector<10x32xf32>
    %cst_152 = arith.constant dense<0.000000e+00> : vector<10xf32>
    %437 = vector.multi_reduction <add>, %436, %cst_152 [1] : vector<10x32xf32> to vector<10xf32>
    %438 = vector.shape_cast %437 : vector<10xf32> to vector<10x1xf32>
    %cst_153 = arith.constant 3.200000e+01 : f32
    %439 = vector.broadcast %cst_153 : f32 to vector<10x1xf32>
    %440 = arith.divf %438, %439 : vector<10x1xf32>
    %cst_154 = arith.constant 9.99999997E-7 : f32
    %441 = vector.broadcast %cst_154 : f32 to vector<10x1xf32>
    %442 = arith.addf %440, %441 : vector<10x1xf32>
    %443 = math.rsqrt %442 : vector<10x1xf32>
    %444 = vector.broadcast %443 : vector<10x1xf32> to vector<10x32xf32>
    %445 = arith.mulf %435, %444 : vector<10x32xf32>
    %446 = vector.broadcast %428 : vector<1x32xf32> to vector<10x32xf32>
    %447 = arith.mulf %445, %446 : vector<10x32xf32>
    %448 = vector.broadcast %429 : vector<1x32xf32> to vector<10x32xf32>
    %449 = arith.addf %447, %448 : vector<10x32xf32>
    %c2_155 = arith.constant 2 : index
    %c0_156 = arith.constant 0 : index
    %c0_157 = arith.constant 0 : index
    %450 = vector.load %arg3[%c2_155, %c0_156, %c0_157] : memref<4x32x128xbf16, #tpu.memory_space<vmem>>, vector<1x32x128xbf16>
    %451 = vector.shape_cast %450 : vector<1x32x128xbf16> to vector<32x128xbf16>
    %452 = arith.truncf %449 : vector<10x32xf32> to vector<10x32xbf16>
    %cst_158 = arith.constant dense<0.000000e+00> : vector<10x128xf32>
    %453 = tpu.matmul %452, %451, %cst_158 {dimension_numbers = #tpu.dot_dimension_numbers<[1], [0], [0], [1], [0, 0, 1, 1], [], []>} : vector<10x32xbf16>, vector<32x128xbf16>, vector<10x128xf32> -> vector<10x128xf32>
    %c40 = arith.constant 40 : index
    %c0_159 = arith.constant 0 : index
    %454 = vector.load %arg6[%c40, %c0_159] : memref<50x128xf32, #tpu.memory_space<vmem>>, vector<1x128xf32>
    %455 = vector.broadcast %454 : vector<1x128xf32> to vector<10x128xf32>
    %456 = arith.addf %453, %455 : vector<10x128xf32>
    %457 = arith.mulf %456, %456 : vector<10x128xf32>
    %458 = arith.mulf %456, %457 : vector<10x128xf32>
    %cst_160 = arith.constant 4.471500e-02 : f32
    %459 = vector.broadcast %cst_160 : f32 to vector<10x128xf32>
    %460 = arith.mulf %459, %458 : vector<10x128xf32>
    %461 = arith.addf %456, %460 : vector<10x128xf32>
    %cst_161 = arith.constant 0.797884583 : f32
    %462 = vector.broadcast %cst_161 : f32 to vector<10x128xf32>
    %463 = arith.mulf %462, %461 : vector<10x128xf32>
    %464 = math.tanh %463 : vector<10x128xf32>
    %cst_162 = arith.constant 1.000000e+00 : f32
    %465 = vector.broadcast %cst_162 : f32 to vector<10x128xf32>
    %466 = arith.addf %465, %464 : vector<10x128xf32>
    %cst_163 = arith.constant 5.000000e-01 : f32
    %467 = vector.broadcast %cst_163 : f32 to vector<10x128xf32>
    %468 = arith.mulf %467, %466 : vector<10x128xf32>
    %469 = arith.mulf %456, %468 : vector<10x128xf32>
    %c2_164 = arith.constant 2 : index
    %c0_165 = arith.constant 0 : index
    %c0_166 = arith.constant 0 : index
    %470 = vector.load %arg4[%c2_164, %c0_165, %c0_166] : memref<4x128x32xbf16, #tpu.memory_space<vmem>>, vector<1x128x32xbf16>
    %471 = vector.shape_cast %470 : vector<1x128x32xbf16> to vector<128x32xbf16>
    %472 = arith.truncf %469 : vector<10x128xf32> to vector<10x128xbf16>
    %cst_167 = arith.constant dense<0.000000e+00> : vector<10x32xf32>
    %473 = tpu.matmul %472, %471, %cst_167 {dimension_numbers = #tpu.dot_dimension_numbers<[1], [0], [0], [1], [0, 0, 1, 1], [], []>} : vector<10x128xbf16>, vector<128x32xbf16>, vector<10x32xf32> -> vector<10x32xf32>
    %474 = arith.addf %427, %473 : vector<10x32xf32>
    %c41 = arith.constant 41 : index
    %c0_168 = arith.constant 0 : index
    %475 = vector.load %arg6[%c41, %c0_168] : memref<50x128xf32, #tpu.memory_space<vmem>>, vector<1x32xf32>
    %476 = vector.broadcast %475 : vector<1x32xf32> to vector<10x32xf32>
    %477 = arith.addf %474, %476 : vector<10x32xf32>
    %c42 = arith.constant 42 : index
    %c0_169 = arith.constant 0 : index
    %478 = vector.load %arg6[%c42, %c0_169] : memref<50x128xf32, #tpu.memory_space<vmem>>, vector<1x32xf32>
    %c43 = arith.constant 43 : index
    %c0_170 = arith.constant 0 : index
    %479 = vector.load %arg6[%c43, %c0_170] : memref<50x128xf32, #tpu.memory_space<vmem>>, vector<1x32xf32>
    %cst_171 = arith.constant dense<0.000000e+00> : vector<10xf32>
    %480 = vector.multi_reduction <add>, %477, %cst_171 [1] : vector<10x32xf32> to vector<10xf32>
    %481 = vector.shape_cast %480 : vector<10xf32> to vector<10x1xf32>
    %cst_172 = arith.constant 3.200000e+01 : f32
    %482 = vector.broadcast %cst_172 : f32 to vector<10x1xf32>
    %483 = arith.divf %481, %482 : vector<10x1xf32>
    %484 = vector.broadcast %483 : vector<10x1xf32> to vector<10x32xf32>
    %485 = arith.subf %477, %484 : vector<10x32xf32>
    %486 = arith.mulf %485, %485 : vector<10x32xf32>
    %cst_173 = arith.constant dense<0.000000e+00> : vector<10xf32>
    %487 = vector.multi_reduction <add>, %486, %cst_173 [1] : vector<10x32xf32> to vector<10xf32>
    %488 = vector.shape_cast %487 : vector<10xf32> to vector<10x1xf32>
    %cst_174 = arith.constant 3.200000e+01 : f32
    %489 = vector.broadcast %cst_174 : f32 to vector<10x1xf32>
    %490 = arith.divf %488, %489 : vector<10x1xf32>
    %cst_175 = arith.constant 9.99999997E-7 : f32
    %491 = vector.broadcast %cst_175 : f32 to vector<10x1xf32>
    %492 = arith.addf %490, %491 : vector<10x1xf32>
    %493 = math.rsqrt %492 : vector<10x1xf32>
    %494 = vector.broadcast %493 : vector<10x1xf32> to vector<10x32xf32>
    %495 = arith.mulf %485, %494 : vector<10x32xf32>
    %496 = vector.broadcast %478 : vector<1x32xf32> to vector<10x32xf32>
    %497 = arith.mulf %495, %496 : vector<10x32xf32>
    %498 = vector.broadcast %479 : vector<1x32xf32> to vector<10x32xf32>
    %499 = arith.addf %497, %498 : vector<10x32xf32>
    %c3_176 = arith.constant 3 : index
    %c0_177 = arith.constant 0 : index
    %c0_178 = arith.constant 0 : index
    %500 = vector.load %arg1[%c3_176, %c0_177, %c0_178] : memref<4x32x96xbf16, #tpu.memory_space<vmem>>, vector<1x32x96xbf16>
    %501 = vector.shape_cast %500 : vector<1x32x96xbf16> to vector<32x96xbf16>
    %502 = arith.truncf %499 : vector<10x32xf32> to vector<10x32xbf16>
    %cst_179 = arith.constant dense<0.000000e+00> : vector<10x96xf32>
    %503 = tpu.matmul %502, %501, %cst_179 {dimension_numbers = #tpu.dot_dimension_numbers<[1], [0], [0], [1], [0, 0, 1, 1], [], []>} : vector<10x32xbf16>, vector<32x96xbf16>, vector<10x96xf32> -> vector<10x96xf32>
    %c44 = arith.constant 44 : index
    %c0_180 = arith.constant 0 : index
    %504 = vector.load %arg6[%c44, %c0_180] : memref<50x128xf32, #tpu.memory_space<vmem>>, vector<1x96xf32>
    %505 = vector.broadcast %504 : vector<1x96xf32> to vector<10x96xf32>
    %506 = arith.addf %503, %505 : vector<10x96xf32>
    %507 = vector.extract_strided_slice %506 {offsets = [0, 0], sizes = [10, 32], strides = [1, 1]} : vector<10x96xf32> to vector<10x32xf32>
    %508 = vector.extract_strided_slice %506 {offsets = [0, 32], sizes = [10, 32], strides = [1, 1]} : vector<10x96xf32> to vector<10x32xf32>
    %509 = vector.extract_strided_slice %506 {offsets = [0, 64], sizes = [10, 32], strides = [1, 1]} : vector<10x96xf32> to vector<10x32xf32>
    %510 = tpu.concatenate %507, %507, %507, %507 in 0 : vector<10x32xf32>, vector<10x32xf32>, vector<10x32xf32>, vector<10x32xf32> -> vector<40x32xf32>
    %511 = arith.mulf %510, %29 : vector<40x32xf32>
    %512 = arith.truncf %511 : vector<40x32xf32> to vector<40x32xbf16>
    %513 = arith.truncf %508 : vector<10x32xf32> to vector<10x32xbf16>
    %cst_181 = arith.constant dense<0.000000e+00> : vector<40x10xf32>
    %514 = tpu.matmul %512, %513, %cst_181 {dimension_numbers = #tpu.dot_dimension_numbers<[1], [1], [0], [0], [0, 0, 1, 0], [], []>} : vector<40x32xbf16>, vector<10x32xbf16>, vector<40x10xf32> -> vector<40x10xf32>
    %cst_182 = arith.constant 0.353553385 : f32
    %515 = vector.broadcast %cst_182 : f32 to vector<40x10xf32>
    %516 = arith.mulf %514, %515 : vector<40x10xf32>
    %517 = arith.addf %516, %48 : vector<40x10xf32>
    %cst_183 = arith.constant dense<0xFF800000> : vector<40xf32>
    %518 = vector.multi_reduction <maximumf>, %517, %cst_183 [1] : vector<40x10xf32> to vector<40xf32>
    %519 = vector.shape_cast %518 : vector<40xf32> to vector<40x1xf32>
    %520 = vector.broadcast %519 : vector<40x1xf32> to vector<40x10xf32>
    %521 = arith.subf %517, %520 : vector<40x10xf32>
    %522 = math.exp %521 : vector<40x10xf32>
    %cst_184 = arith.constant dense<0.000000e+00> : vector<40xf32>
    %523 = vector.multi_reduction <add>, %522, %cst_184 [1] : vector<40x10xf32> to vector<40xf32>
    %524 = vector.shape_cast %523 : vector<40xf32> to vector<40x1xf32>
    %525 = tpu.reciprocal %524 {approx = true} : vector<40x1xf32> -> vector<40x1xf32>
    %526 = vector.broadcast %525 : vector<40x1xf32> to vector<40x10xf32>
    %527 = arith.mulf %522, %526 : vector<40x10xf32>
    %528 = arith.truncf %527 : vector<40x10xf32> to vector<40x10xbf16>
    %529 = arith.truncf %509 : vector<10x32xf32> to vector<10x32xbf16>
    %cst_185 = arith.constant dense<0.000000e+00> : vector<40x32xf32>
    %530 = tpu.matmul %528, %529, %cst_185 {dimension_numbers = #tpu.dot_dimension_numbers<[1], [0], [0], [1], [0, 0, 1, 1], [], []>} : vector<40x10xbf16>, vector<10x32xbf16>, vector<40x32xf32> -> vector<40x32xf32>
    %531 = arith.mulf %530, %29 : vector<40x32xf32>
    %532 = vector.extract_strided_slice %531 {offsets = [0, 0], sizes = [10, 32], strides = [1, 1]} : vector<40x32xf32> to vector<10x32xf32>
    %533 = vector.extract_strided_slice %531 {offsets = [10, 0], sizes = [10, 32], strides = [1, 1]} : vector<40x32xf32> to vector<10x32xf32>
    %534 = arith.addf %532, %533 : vector<10x32xf32>
    %535 = vector.extract_strided_slice %531 {offsets = [20, 0], sizes = [10, 32], strides = [1, 1]} : vector<40x32xf32> to vector<10x32xf32>
    %536 = arith.addf %534, %535 : vector<10x32xf32>
    %537 = vector.extract_strided_slice %531 {offsets = [30, 0], sizes = [10, 32], strides = [1, 1]} : vector<40x32xf32> to vector<10x32xf32>
    %538 = arith.addf %536, %537 : vector<10x32xf32>
    %c3_186 = arith.constant 3 : index
    %c0_187 = arith.constant 0 : index
    %c0_188 = arith.constant 0 : index
    %539 = vector.load %arg2[%c3_186, %c0_187, %c0_188] : memref<5x32x32xbf16, #tpu.memory_space<vmem>>, vector<1x32x32xbf16>
    %540 = vector.shape_cast %539 : vector<1x32x32xbf16> to vector<32x32xbf16>
    %541 = arith.truncf %538 : vector<10x32xf32> to vector<10x32xbf16>
    %cst_189 = arith.constant dense<0.000000e+00> : vector<10x32xf32>
    %542 = tpu.matmul %541, %540, %cst_189 {dimension_numbers = #tpu.dot_dimension_numbers<[1], [0], [0], [1], [0, 0, 1, 1], [], []>} : vector<10x32xbf16>, vector<32x32xbf16>, vector<10x32xf32> -> vector<10x32xf32>
    %543 = arith.addf %477, %542 : vector<10x32xf32>
    %c45 = arith.constant 45 : index
    %c0_190 = arith.constant 0 : index
    %544 = vector.load %arg6[%c45, %c0_190] : memref<50x128xf32, #tpu.memory_space<vmem>>, vector<1x32xf32>
    %545 = vector.broadcast %544 : vector<1x32xf32> to vector<10x32xf32>
    %546 = arith.addf %543, %545 : vector<10x32xf32>
    %c46 = arith.constant 46 : index
    %c0_191 = arith.constant 0 : index
    %547 = vector.load %arg6[%c46, %c0_191] : memref<50x128xf32, #tpu.memory_space<vmem>>, vector<1x32xf32>
    %c47 = arith.constant 47 : index
    %c0_192 = arith.constant 0 : index
    %548 = vector.load %arg6[%c47, %c0_192] : memref<50x128xf32, #tpu.memory_space<vmem>>, vector<1x32xf32>
    %cst_193 = arith.constant dense<0.000000e+00> : vector<10xf32>
    %549 = vector.multi_reduction <add>, %546, %cst_193 [1] : vector<10x32xf32> to vector<10xf32>
    %550 = vector.shape_cast %549 : vector<10xf32> to vector<10x1xf32>
    %cst_194 = arith.constant 3.200000e+01 : f32
    %551 = vector.broadcast %cst_194 : f32 to vector<10x1xf32>
    %552 = arith.divf %550, %551 : vector<10x1xf32>
    %553 = vector.broadcast %552 : vector<10x1xf32> to vector<10x32xf32>
    %554 = arith.subf %546, %553 : vector<10x32xf32>
    %555 = arith.mulf %554, %554 : vector<10x32xf32>
    %cst_195 = arith.constant dense<0.000000e+00> : vector<10xf32>
    %556 = vector.multi_reduction <add>, %555, %cst_195 [1] : vector<10x32xf32> to vector<10xf32>
    %557 = vector.shape_cast %556 : vector<10xf32> to vector<10x1xf32>
    %cst_196 = arith.constant 3.200000e+01 : f32
    %558 = vector.broadcast %cst_196 : f32 to vector<10x1xf32>
    %559 = arith.divf %557, %558 : vector<10x1xf32>
    %cst_197 = arith.constant 9.99999997E-7 : f32
    %560 = vector.broadcast %cst_197 : f32 to vector<10x1xf32>
    %561 = arith.addf %559, %560 : vector<10x1xf32>
    %562 = math.rsqrt %561 : vector<10x1xf32>
    %563 = vector.broadcast %562 : vector<10x1xf32> to vector<10x32xf32>
    %564 = arith.mulf %554, %563 : vector<10x32xf32>
    %565 = vector.broadcast %547 : vector<1x32xf32> to vector<10x32xf32>
    %566 = arith.mulf %564, %565 : vector<10x32xf32>
    %567 = vector.broadcast %548 : vector<1x32xf32> to vector<10x32xf32>
    %568 = arith.addf %566, %567 : vector<10x32xf32>
    %c3_198 = arith.constant 3 : index
    %c0_199 = arith.constant 0 : index
    %c0_200 = arith.constant 0 : index
    %569 = vector.load %arg3[%c3_198, %c0_199, %c0_200] : memref<4x32x128xbf16, #tpu.memory_space<vmem>>, vector<1x32x128xbf16>
    %570 = vector.shape_cast %569 : vector<1x32x128xbf16> to vector<32x128xbf16>
    %571 = arith.truncf %568 : vector<10x32xf32> to vector<10x32xbf16>
    %cst_201 = arith.constant dense<0.000000e+00> : vector<10x128xf32>
    %572 = tpu.matmul %571, %570, %cst_201 {dimension_numbers = #tpu.dot_dimension_numbers<[1], [0], [0], [1], [0, 0, 1, 1], [], []>} : vector<10x32xbf16>, vector<32x128xbf16>, vector<10x128xf32> -> vector<10x128xf32>
    %c48 = arith.constant 48 : index
    %c0_202 = arith.constant 0 : index
    %573 = vector.load %arg6[%c48, %c0_202] : memref<50x128xf32, #tpu.memory_space<vmem>>, vector<1x128xf32>
    %574 = vector.broadcast %573 : vector<1x128xf32> to vector<10x128xf32>
    %575 = arith.addf %572, %574 : vector<10x128xf32>
    %576 = arith.mulf %575, %575 : vector<10x128xf32>
    %577 = arith.mulf %575, %576 : vector<10x128xf32>
    %cst_203 = arith.constant 4.471500e-02 : f32
    %578 = vector.broadcast %cst_203 : f32 to vector<10x128xf32>
    %579 = arith.mulf %578, %577 : vector<10x128xf32>
    %580 = arith.addf %575, %579 : vector<10x128xf32>
    %cst_204 = arith.constant 0.797884583 : f32
    %581 = vector.broadcast %cst_204 : f32 to vector<10x128xf32>
    %582 = arith.mulf %581, %580 : vector<10x128xf32>
    %583 = math.tanh %582 : vector<10x128xf32>
    %cst_205 = arith.constant 1.000000e+00 : f32
    %584 = vector.broadcast %cst_205 : f32 to vector<10x128xf32>
    %585 = arith.addf %584, %583 : vector<10x128xf32>
    %cst_206 = arith.constant 5.000000e-01 : f32
    %586 = vector.broadcast %cst_206 : f32 to vector<10x128xf32>
    %587 = arith.mulf %586, %585 : vector<10x128xf32>
    %588 = arith.mulf %575, %587 : vector<10x128xf32>
    %c3_207 = arith.constant 3 : index
    %c0_208 = arith.constant 0 : index
    %c0_209 = arith.constant 0 : index
    %589 = vector.load %arg4[%c3_207, %c0_208, %c0_209] : memref<4x128x32xbf16, #tpu.memory_space<vmem>>, vector<1x128x32xbf16>
    %590 = vector.shape_cast %589 : vector<1x128x32xbf16> to vector<128x32xbf16>
    %591 = arith.truncf %588 : vector<10x128xf32> to vector<10x128xbf16>
    %cst_210 = arith.constant dense<0.000000e+00> : vector<10x32xf32>
    %592 = tpu.matmul %591, %590, %cst_210 {dimension_numbers = #tpu.dot_dimension_numbers<[1], [0], [0], [1], [0, 0, 1, 1], [], []>} : vector<10x128xbf16>, vector<128x32xbf16>, vector<10x32xf32> -> vector<10x32xf32>
    %593 = arith.addf %546, %592 : vector<10x32xf32>
    %c49 = arith.constant 49 : index
    %c0_211 = arith.constant 0 : index
    %594 = vector.load %arg6[%c49, %c0_211] : memref<50x128xf32, #tpu.memory_space<vmem>>, vector<1x32xf32>
    %595 = vector.broadcast %594 : vector<1x32xf32> to vector<10x32xf32>
    %596 = arith.addf %593, %595 : vector<10x32xf32>
    %c15 = arith.constant 15 : index
    %c0_212 = arith.constant 0 : index
    %597 = vector.load %arg6[%c15, %c0_212] : memref<50x128xf32, #tpu.memory_space<vmem>>, vector<1x32xf32>
    %c16 = arith.constant 16 : index
    %c0_213 = arith.constant 0 : index
    %598 = vector.load %arg6[%c16, %c0_213] : memref<50x128xf32, #tpu.memory_space<vmem>>, vector<1x32xf32>
    %cst_214 = arith.constant dense<0.000000e+00> : vector<10xf32>
    %599 = vector.multi_reduction <add>, %596, %cst_214 [1] : vector<10x32xf32> to vector<10xf32>
    %600 = vector.shape_cast %599 : vector<10xf32> to vector<10x1xf32>
    %cst_215 = arith.constant 3.200000e+01 : f32
    %601 = vector.broadcast %cst_215 : f32 to vector<10x1xf32>
    %602 = arith.divf %600, %601 : vector<10x1xf32>
    %603 = vector.broadcast %602 : vector<10x1xf32> to vector<10x32xf32>
    %604 = arith.subf %596, %603 : vector<10x32xf32>
    %605 = arith.mulf %604, %604 : vector<10x32xf32>
    %cst_216 = arith.constant dense<0.000000e+00> : vector<10xf32>
    %606 = vector.multi_reduction <add>, %605, %cst_216 [1] : vector<10x32xf32> to vector<10xf32>
    %607 = vector.shape_cast %606 : vector<10xf32> to vector<10x1xf32>
    %cst_217 = arith.constant 3.200000e+01 : f32
    %608 = vector.broadcast %cst_217 : f32 to vector<10x1xf32>
    %609 = arith.divf %607, %608 : vector<10x1xf32>
    %cst_218 = arith.constant 9.99999997E-7 : f32
    %610 = vector.broadcast %cst_218 : f32 to vector<10x1xf32>
    %611 = arith.addf %609, %610 : vector<10x1xf32>
    %612 = math.rsqrt %611 : vector<10x1xf32>
    %613 = vector.broadcast %612 : vector<10x1xf32> to vector<10x32xf32>
    %614 = arith.mulf %604, %613 : vector<10x32xf32>
    %615 = vector.broadcast %597 : vector<1x32xf32> to vector<10x32xf32>
    %616 = arith.mulf %614, %615 : vector<10x32xf32>
    %617 = vector.broadcast %598 : vector<1x32xf32> to vector<10x32xf32>
    %618 = arith.addf %616, %617 : vector<10x32xf32>
    %c1_219 = arith.constant 1 : index
    %c0_220 = arith.constant 0 : index
    %c0_221 = arith.constant 0 : index
    %619 = vector.load %arg5[%c1_219, %c0_220, %c0_221] : memref<2x768x32xbf16, #tpu.memory_space<vmem>>, vector<1x768x32xbf16>
    %620 = vector.shape_cast %619 : vector<1x768x32xbf16> to vector<768x32xbf16>
    %621 = arith.truncf %618 : vector<10x32xf32> to vector<10x32xbf16>
    %cst_222 = arith.constant dense<0.000000e+00> : vector<10x768xf32>
    %622 = tpu.matmul %621, %620, %cst_222 {dimension_numbers = #tpu.dot_dimension_numbers<[1], [1], [0], [0], [0, 0, 1, 0], [], []>} : vector<10x32xbf16>, vector<768x32xbf16>, vector<10x768xf32> -> vector<10x768xf32>
    %c0_223 = arith.constant 0 : index
    %c0_224 = arith.constant 0 : index
    %623 = vector.load %arg8[%c0_223, %c0_224] : memref<1x768xf32, #tpu.memory_space<vmem>>, vector<1x768xf32>
    %624 = vector.broadcast %623 : vector<1x768xf32> to vector<10x768xf32>
    %625 = arith.addf %622, %624 : vector<10x768xf32>
    %c0_225 = arith.constant 0 : index
    %c0_226 = arith.constant 0 : index
    %626 = vector.load %arg9[%c0_225, %c0_226] : memref<10x768xf32, #tpu.memory_space<vmem>>, vector<10x768xf32>
    tpu.vector_store %arg9[%c0_225, %c0_226], %625 {strides = array<i32>} : memref<10x768xf32, #tpu.memory_space<vmem>>, vector<10x768xf32>,
    return
  }
}

</mosaic_0001>

<llo_original>
// kernel: vqvae_forward.1
$region0: #{vqvae_forward.1}
  #allocation0 [shape = 'u32[]', space=smem, size = 0x4, offset = 0x4, fixed_abs, tag = 'smem constant byte address 0x4 - core index']
  #allocation1 [shape = 'u32[144,128]{1,0:T(1,128)}', space=vmem, size = 0x12000, scoped, tag = 'internal scratch']
  %s0 = inlined_call_operand.vmem [shape: f32[8,768], index: 0, kind: input, shape index: {}]
  %s1 = inlined_call_operand.vmem [shape: bf16[4,32,96], index: 1, kind: input, shape index: {}]
  %s2 = inlined_call_operand.vmem [shape: bf16[5,32,32], index: 2, kind: input, shape index: {}]
  %s3 = inlined_call_operand.vmem [shape: bf16[4,32,128], index: 3, kind: input, shape index: {}]
  %s4 = inlined_call_operand.vmem [shape: bf16[4,128,32], index: 4, kind: input, shape index: {}]
  %s5 = inlined_call_operand.vmem [shape: bf16[2,768,32], index: 5, kind: input, shape index: {}]
  %s6 = inlined_call_operand.vmem [shape: f32[50,128], index: 6, kind: input, shape index: {}]
  %s7 = inlined_call_operand.vmem [shape: f32[64,32], index: 7, kind: input, shape index: {}]
  %s8 = inlined_call_operand.vmem [shape: f32[1,768], index: 8, kind: input, shape index: {}]
  %s9 = inlined_call_operand.vmem [shape: f32[10,768], index: 9, kind: output, shape index: {0}]
  %s10 = inlined_call_operand.vmem [shape: f32[10,64], index: 10, kind: output, shape index: {1}]
  %11 = xla_tuple %s9, %s10
  %s12 = sld [smem:[#allocation0]]
  $region54: #{vqvae_forward.1} parent=0
    _
  %s14 = ssub.s32 1, %s12
  %s15 = scalar_select 0, %s14, %s12
  // Predicated region
  $region2: #{vqvae_forward.1} parent=0 // pred_check
    _
  $region3: #{vqvae_forward.1} parent=0 // pred_check_branch
    %17 = sbr.rel (0) target = $region5
  $region4: #{vqvae_forward.1} parent=0 // pred_region
    _
  $region5: #{vqvae_forward.1} parent=0 // pred_fallthru
    _
  // Predicated region
  $region6: #{vqvae_forward.1} parent=0 // pred_check
    _
  $region7: #{vqvae_forward.1} parent=0 // pred_check_branch
    %19 = sbr.rel (0) target = $region9
  $region8: #{vqvae_forward.1} parent=0 // pred_region
    _
  $region9: #{vqvae_forward.1} parent=0 // pred_fallthru
    _
  // Predicated region
  $region10: #{vqvae_forward.1} parent=0 // pred_check
    _
  $region11: #{vqvae_forward.1} parent=0 // pred_check_branch
    %21 = sbr.rel (0) target = $region13
  $region12: #{vqvae_forward.1} parent=0 // pred_region
    _
  $region13: #{vqvae_forward.1} parent=0 // pred_fallthru
    _
  // Predicated region
  $region14: #{vqvae_forward.1} parent=0 // pred_check
    _
  $region15: #{vqvae_forward.1} parent=0 // pred_check_branch
    %23 = sbr.rel (0) target = $region17
  $region16: #{vqvae_forward.1} parent=0 // pred_region
    _
  $region17: #{vqvae_forward.1} parent=0 // pred_fallthru
    _
  // Predicated region
  $region18: #{vqvae_forward.1} parent=0 // pred_check
    _
  $region19: #{vqvae_forward.1} parent=0 // pred_check_branch
    %25 = sbr.rel (0) target = $region21
  $region20: #{vqvae_forward.1} parent=0 // pred_region
    _
  $region21: #{vqvae_forward.1} parent=0 // pred_fallthru
    _
  // Predicated region
  $region22: #{vqvae_forward.1} parent=0 // pred_check
    _
  $region23: #{vqvae_forward.1} parent=0 // pred_check_branch
    %27 = sbr.rel (0) target = $region25
  $region24: #{vqvae_forward.1} parent=0 // pred_region
    _
  $region25: #{vqvae_forward.1} parent=0 // pred_fallthru
    _
  // Predicated region
  $region26: #{vqvae_forward.1} parent=0 // pred_check
    _
  $region27: #{vqvae_forward.1} parent=0 // pred_check_branch
    %29 = sbr.rel (0) target = $region29
  $region28: #{vqvae_forward.1} parent=0 // pred_region
    _
  $region29: #{vqvae_forward.1} parent=0 // pred_fallthru
    _
  // Predicated region
  $region30: #{vqvae_forward.1} parent=0 // pred_check
    _
  $region31: #{vqvae_forward.1} parent=0 // pred_check_branch
    %31 = sbr.rel (0) target = $region33
  $region32: #{vqvae_forward.1} parent=0 // pred_region
    _
  $region33: #{vqvae_forward.1} parent=0 // pred_fallthru
    _
  // Predicated region
  $region34: #{vqvae_forward.1} parent=0 // pred_check
    _
  $region35: #{vqvae_forward.1} parent=0 // pred_check_branch
    %33 = sbr.rel (0) target = $region37
  $region36: #{vqvae_forward.1} parent=0 // pred_region
    _
  $region37: #{vqvae_forward.1} parent=0 // pred_fallthru
    _
  %v35 = vlaneseq
  %v36 = vand.u32 %v35, 127
  %vm37 = vcmp.ge.s32.totalorder %v36, 0
  %vm38 = vcmp.lt.s32.totalorder %v36, 8
  %vm39 = vmand %vm37, %vm38
  %v40 = vsel %vm39, 1, 0
  %v41 = vcvt.s32.f32 %v40
  %vm42 = vcmp.ge.s32.totalorder %v36, 8
  %vm43 = vcmp.lt.s32.totalorder %v36, 16
  %vm44 = vmand %vm42, %vm43
  %v45 = vsel %vm44, 1, 0
  %v46 = vcvt.s32.f32 %v45
  %vm47 = vcmp.ge.s32.totalorder %v36, 16
  %vm48 = vcmp.lt.s32.totalorder %v36, 24
  %vm49 = vmand %vm47, %vm48
  %v50 = vsel %vm49, 1, 0
  %v51 = vcvt.s32.f32 %v50
  %vm52 = vcmp.ge.s32.totalorder %v36, 24
  %vm53 = vcmp.lt.s32.totalorder %v36, 32
  %vm54 = vmand %vm52, %vm53
  %v55 = vsel %vm54, 1, 0
  %v56 = vcvt.s32.f32 %v55
  %vm57 = vcmask 1041408
  %v58 = vsel %vm57, %v41, %v46
  %vm59 = vcmask 1043456
  %v60 = vsel %vm59, %v46, %v51
  %vm61 = vcmask 1045504
  %v62 = vsel %vm61, %v51, %v56
  %vm63 = vcmp.lt.s32.totalorder %v36, 5
  %vm64 = vmand %vm37, %vm63
  %v65 = vsel %vm64, 0.0, -1e+09
  %vm66 = vcmp.ge.s32.totalorder %v36, 5
  %vm67 = vcmp.lt.s32.totalorder %v36, 10
  %vm68 = vmand %vm66, %vm67
  %v69 = vsel %vm68, 0.0, -1e+09
  %vm71 = vcmask 1044480
  %v72 = vsel %vm71, %v65, %v69
  %v74 = vrot.slane %v72, 6
  %v75 = vrot.slane %v69, 6
  %v76 = vsel %vm57, %v74, %v75
  %v79 = vrot.slane %v72, 4
  %v80 = vrot.slane %v69, 4
  %v81 = vsel %vm59, %v79, %v80
  %v84 = vrot.slane %v72, 2
  %v85 = vrot.slane %v69, 2
  %v86 = vsel %vm61, %v84, %v85
  %v89 = vsel %vm57, %v69, %v74
  %v90 = vsel %vm59, %v76, %v79
  %v91 = vsel %vm61, %v81, %v84
  %v92 = vld [vmem:[%s0] sm:$0xff]
  %v93 = vld [vmem:[%s0 + $0x8] sm:$0xff]
  %v94 = vld [vmem:[%s0 + $0x10] sm:$0xff]
  %v95 = vld [vmem:[%s0 + $0x18] sm:$0xff]
  %v96 = vld [vmem:[%s0 + $0x20] sm:$0xff]
  %v97 = vld [vmem:[%s0 + $0x28] sm:$0xff]
  %v98 = vld [vmem:[%s5] sm:$0xf]
  %v99 = vld [vmem:[%s5 + $0x4] sm:$0xf]
  %v100 = vld [vmem:[%s5 + $0x8] sm:$0xf]
  %v101 = vld [vmem:[%s5 + $0xc] sm:$0xf]
  %v102 = vld [vmem:[%s5 + $0x10] sm:$0xf]
  %v103 = vld [vmem:[%s5 + $0x14] sm:$0xf]
  %v104 = vld [vmem:[%s5 + $0x18] sm:$0xf]
  %v105 = vld [vmem:[%s5 + $0x1c] sm:$0xf]
  %v106 = vld [vmem:[%s5 + $0x20] sm:$0xf]
  %v107 = vld [vmem:[%s5 + $0x24] sm:$0xf]
  %v108 = vld [vmem:[%s5 + $0x28] sm:$0xf]
  %v109 = vld [vmem:[%s5 + $0x2c] sm:$0xf]
  %v110 = vld [vmem:[%s5 + $0x30] sm:$0xf]
  %v111 = vld [vmem:[%s5 + $0x34] sm:$0xf]
  %v112 = vld [vmem:[%s5 + $0x38] sm:$0xf]
  %v113 = vld [vmem:[%s5 + $0x3c] sm:$0xf]
  %v114 = vld [vmem:[%s5 + $0x40] sm:$0xf]
  %v115 = vld [vmem:[%s5 + $0x44] sm:$0xf]
  %v116 = vld [vmem:[%s5 + $0x48] sm:$0xf]
  %v117 = vld [vmem:[%s5 + $0x4c] sm:$0xf]
  %v118 = vld [vmem:[%s5 + $0x50] sm:$0xf]
  %v119 = vld [vmem:[%s5 + $0x54] sm:$0xf]
  %v120 = vld [vmem:[%s5 + $0x58] sm:$0xf]
  %v121 = vld [vmem:[%s5 + $0x5c] sm:$0xf]
  %v122 = vld [vmem:[%s5 + $0x60] sm:$0xf]
  %v123 = vld [vmem:[%s5 + $0x64] sm:$0xf]
  %v124 = vld [vmem:[%s5 + $0x68] sm:$0xf]
  %v125 = vld [vmem:[%s5 + $0x6c] sm:$0xf]
  %v126 = vld [vmem:[%s5 + $0x70] sm:$0xf]
  %v127 = vld [vmem:[%s5 + $0x74] sm:$0xf]
  %v128 = vld [vmem:[%s5 + $0x78] sm:$0xf]
  %v129 = vld [vmem:[%s5 + $0x7c] sm:$0xf]
  %v130 = vld [vmem:[%s5 + $0x80] sm:$0xf]
  %v131 = vld [vmem:[%s5 + $0x84] sm:$0xf]
  %v132 = vld [vmem:[%s5 + $0x88] sm:$0xf]
  %v133 = vld [vmem:[%s5 + $0x8c] sm:$0xf]
  %v134 = vld [vmem:[%s5 + $0x90] sm:$0xf]
  %v135 = vld [vmem:[%s5 + $0x94] sm:$0xf]
  %v136 = vld [vmem:[%s5 + $0x98] sm:$0xf]
  %v137 = vld [vmem:[%s5 + $0x9c] sm:$0xf]
  %v138 = vld [vmem:[%s5 + $0xa0] sm:$0xf]
  %v139 = vld [vmem:[%s5 + $0xa4] sm:$0xf]
  %v140 = vld [vmem:[%s5 + $0xa8] sm:$0xf]
  %v141 = vld [vmem:[%s5 + $0xac] sm:$0xf]
  %v142 = vld [vmem:[%s5 + $0xb0] sm:$0xf]
  %v143 = vld [vmem:[%s5 + $0xb4] sm:$0xf]
  %v144 = vld [vmem:[%s5 + $0xb8] sm:$0xf]
  %v145 = vld [vmem:[%s5 + $0xbc] sm:$0xf]
  %v146 = vld [vmem:[%s5 + $0xc0] sm:$0xf]
  %v147 = vld [vmem:[%s5 + $0xc4] sm:$0xf]
  %v148 = vld [vmem:[%s5 + $0xc8] sm:$0xf]
  %v149 = vld [vmem:[%s5 + $0xcc] sm:$0xf]
  %v150 = vld [vmem:[%s5 + $0xd0] sm:$0xf]
  %v151 = vld [vmem:[%s5 + $0xd4] sm:$0xf]
  %v152 = vld [vmem:[%s5 + $0xd8] sm:$0xf]
  %v153 = vld [vmem:[%s5 + $0xdc] sm:$0xf]
  %v154 = vld [vmem:[%s5 + $0xe0] sm:$0xf]
  %v155 = vld [vmem:[%s5 + $0xe4] sm:$0xf]
  %v156 = vld [vmem:[%s5 + $0xe8] sm:$0xf]
  %v157 = vld [vmem:[%s5 + $0xec] sm:$0xf]
  %v158 = vld [vmem:[%s5 + $0xf0] sm:$0xf]
  %v159 = vld [vmem:[%s5 + $0xf4] sm:$0xf]
  %v160 = vld [vmem:[%s5 + $0xf8] sm:$0xf]
  %v161 = vld [vmem:[%s5 + $0xfc] sm:$0xf]
  %v162 = vld [vmem:[%s5 + $0x100] sm:$0xf]
  %v163 = vld [vmem:[%s5 + $0x104] sm:$0xf]
  %v164 = vld [vmem:[%s5 + $0x108] sm:$0xf]
  %v165 = vld [vmem:[%s5 + $0x10c] sm:$0xf]
  %v166 = vld [vmem:[%s5 + $0x110] sm:$0xf]
  %v167 = vld [vmem:[%s5 + $0x114] sm:$0xf]
  %v168 = vld [vmem:[%s5 + $0x118] sm:$0xf]
  %v169 = vld [vmem:[%s5 + $0x11c] sm:$0xf]
  %v170 = vld [vmem:[%s5 + $0x120] sm:$0xf]
  %v171 = vld [vmem:[%s5 + $0x124] sm:$0xf]
  %v172 = vld [vmem:[%s5 + $0x128] sm:$0xf]
  %v173 = vld [vmem:[%s5 + $0x12c] sm:$0xf]
  %v174 = vld [vmem:[%s5 + $0x130] sm:$0xf]
  %v175 = vld [vmem:[%s5 + $0x134] sm:$0xf]
  %v176 = vld [vmem:[%s5 + $0x138] sm:$0xf]
  %v177 = vld [vmem:[%s5 + $0x13c] sm:$0xf]
  %v178 = vld [vmem:[%s5 + $0x140] sm:$0xf]
  %v179 = vld [vmem:[%s5 + $0x144] sm:$0xf]
  %v180 = vld [vmem:[%s5 + $0x148] sm:$0xf]
  %v181 = vld [vmem:[%s5 + $0x14c] sm:$0xf]
  %v182 = vld [vmem:[%s5 + $0x150] sm:$0xf]
  %v183 = vld [vmem:[%s5 + $0x154] sm:$0xf]
  %v184 = vld [vmem:[%s5 + $0x158] sm:$0xf]
  %v185 = vld [vmem:[%s5 + $0x15c] sm:$0xf]
  %v186 = vld [vmem:[%s5 + $0x160] sm:$0xf]
  %v187 = vld [vmem:[%s5 + $0x164] sm:$0xf]
  %v188 = vld [vmem:[%s5 + $0x168] sm:$0xf]
  %v189 = vld [vmem:[%s5 + $0x16c] sm:$0xf]
  %v190 = vld [vmem:[%s5 + $0x170] sm:$0xf]
  %v191 = vld [vmem:[%s5 + $0x174] sm:$0xf]
  %v192 = vld [vmem:[%s5 + $0x178] sm:$0xf]
  %v193 = vld [vmem:[%s5 + $0x17c] sm:$0xf]
  %v194 = vpack.c.bf16 %v92, %v92
  %v195 = vpack.c.bf16 %v93, %v93
  %v196 = vpack.c.bf16 %v94, %v94
  %v197 = vpack.c.bf16 %v95, %v95
  %v198 = vpack.c.bf16 %v96, %v96
  %v199 = vpack.c.bf16 %v97, %v97
  %v200 = vld [vmem:[%s6] sm:$0x1]
  %v201 = vlaneseq
  %v202 = vshrl.u32 %v201, 7
  %v203 = vsub.s32 0, %v202
  %v204 = vrot.slane %v200, %v203
  %v301 = vunpack.c.l.b16 %v98
  %v302 = vunpack.c.l.b16 %v99
  %v303 = vunpack.c.l.b16 %v100
  %v304 = vunpack.c.l.b16 %v101
  %v305 = vunpack.c.l.b16 %v102
  %v306 = vunpack.c.l.b16 %v103
  %v307 = vunpack.c.l.b16 %v104
  %v308 = vunpack.c.l.b16 %v105
  %v309 = vunpack.c.l.b16 %v106
  %v310 = vunpack.c.l.b16 %v107
  %v311 = vunpack.c.l.b16 %v108
  %v312 = vunpack.c.l.b16 %v109
  %v313 = vunpack.c.l.b16 %v110
  %v314 = vunpack.c.l.b16 %v111
  %v315 = vunpack.c.l.b16 %v112
  %v316 = vunpack.c.l.b16 %v113
  %v317 = vunpack.c.l.b16 %v114
  %v318 = vunpack.c.l.b16 %v115
  %v319 = vunpack.c.l.b16 %v116
  %v320 = vunpack.c.l.b16 %v117
  %v321 = vunpack.c.l.b16 %v118
  %v322 = vunpack.c.l.b16 %v119
  %v323 = vunpack.c.l.b16 %v120
  %v324 = vunpack.c.l.b16 %v121
  %v325 = vunpack.c.l.b16 %v122
  %v326 = vunpack.c.l.b16 %v123
  %v327 = vunpack.c.l.b16 %v124
  %v328 = vunpack.c.l.b16 %v125
  %v329 = vunpack.c.l.b16 %v126
  %v330 = vunpack.c.l.b16 %v127
  %v331 = vunpack.c.l.b16 %v128
  %v332 = vunpack.c.l.b16 %v129
  %v333 = vunpack.c.l.b16 %v130
  %v334 = vunpack.c.l.b16 %v131
  %v335 = vunpack.c.l.b16 %v132
  %v336 = vunpack.c.l.b16 %v133
  %v337 = vunpack.c.l.b16 %v134
  %v338 = vunpack.c.l.b16 %v135
  %v339 = vunpack.c.l.b16 %v136
  %v340 = vunpack.c.l.b16 %v137
  %v341 = vunpack.c.l.b16 %v138
  %v342 = vunpack.c.l.b16 %v139
  %v343 = vunpack.c.l.b16 %v140
  %v344 = vunpack.c.l.b16 %v141
  %v345 = vunpack.c.l.b16 %v142
  %v346 = vunpack.c.l.b16 %v143
  %v347 = vunpack.c.l.b16 %v144
  %v348 = vunpack.c.l.b16 %v145
  %v349 = vunpack.c.l.b16 %v146
  %v350 = vunpack.c.l.b16 %v147
  %v351 = vunpack.c.l.b16 %v148
  %v352 = vunpack.c.l.b16 %v149
  %v353 = vunpack.c.l.b16 %v150
  %v354 = vunpack.c.l.b16 %v151
  %v355 = vunpack.c.l.b16 %v152
  %v356 = vunpack.c.l.b16 %v153
  %v357 = vunpack.c.l.b16 %v154
  %v358 = vunpack.c.l.b16 %v155
  %v359 = vunpack.c.l.b16 %v156
  %v360 = vunpack.c.l.b16 %v157
  %v361 = vunpack.c.l.b16 %v158
  %v362 = vunpack.c.l.b16 %v159
  %v363 = vunpack.c.l.b16 %v160
  %v364 = vunpack.c.l.b16 %v161
  %v365 = vunpack.c.l.b16 %v162
  %v366 = vunpack.c.l.b16 %v163
  %v367 = vunpack.c.l.b16 %v164
  %v368 = vunpack.c.l.b16 %v165
  %v369 = vunpack.c.l.b16 %v166
  %v370 = vunpack.c.l.b16 %v167
  %v371 = vunpack.c.l.b16 %v168
  %v372 = vunpack.c.l.b16 %v169
  %v373 = vunpack.c.l.b16 %v170
  %v374 = vunpack.c.l.b16 %v171
  %v375 = vunpack.c.l.b16 %v172
  %v376 = vunpack.c.l.b16 %v173
  %v377 = vunpack.c.l.b16 %v174
  %v378 = vunpack.c.l.b16 %v175
  %v379 = vunpack.c.l.b16 %v176
  %v380 = vunpack.c.l.b16 %v177
  %v381 = vunpack.c.l.b16 %v178
  %v382 = vunpack.c.l.b16 %v179
  %v383 = vunpack.c.l.b16 %v180
  %v384 = vunpack.c.l.b16 %v181
  %v385 = vunpack.c.l.b16 %v182
  %v386 = vunpack.c.l.b16 %v183
  %v387 = vunpack.c.l.b16 %v184
  %v388 = vunpack.c.l.b16 %v185
  %v389 = vunpack.c.l.b16 %v186
  %v390 = vunpack.c.l.b16 %v187
  %v391 = vunpack.c.l.b16 %v188
  %v392 = vunpack.c.l.b16 %v189
  %v393 = vunpack.c.l.b16 %v190
  %v394 = vunpack.c.l.b16 %v191
  %v395 = vunpack.c.l.b16 %v192
  %v396 = vunpack.c.l.b16 %v193
  %v397 = vpack.c.b16 %v302, %v301
  %v398 = vpack.c.b16 %v304, %v303
  %v399 = vpack.c.b16 %v306, %v305
  %v400 = vpack.c.b16 %v308, %v307
  %v401 = vpack.c.b16 %v310, %v309
  %v402 = vpack.c.b16 %v312, %v311
  %v403 = vpack.c.b16 %v314, %v313
  %v404 = vpack.c.b16 %v316, %v315
  %v405 = vpack.c.b16 %v318, %v317
  %v406 = vpack.c.b16 %v320, %v319
  %v407 = vpack.c.b16 %v322, %v321
  %v408 = vpack.c.b16 %v324, %v323
  %v409 = vpack.c.b16 %v326, %v325
  %v410 = vpack.c.b16 %v328, %v327
  %v411 = vpack.c.b16 %v330, %v329
  %v412 = vpack.c.b16 %v332, %v331
  %v413 = vpack.c.b16 %v334, %v333
  %v414 = vpack.c.b16 %v336, %v335
  %v415 = vpack.c.b16 %v338, %v337
  %v416 = vpack.c.b16 %v340, %v339
  %v417 = vpack.c.b16 %v342, %v341
  %v418 = vpack.c.b16 %v344, %v343
  %v419 = vpack.c.b16 %v346, %v345
  %v420 = vpack.c.b16 %v348, %v347
  %v421 = vpack.c.b16 %v350, %v349
  %v422 = vpack.c.b16 %v352, %v351
  %v423 = vpack.c.b16 %v354, %v353
  %v424 = vpack.c.b16 %v356, %v355
  %v425 = vpack.c.b16 %v358, %v357
  %v426 = vpack.c.b16 %v360, %v359
  %v427 = vpack.c.b16 %v362, %v361
  %v428 = vpack.c.b16 %v364, %v363
  %v429 = vpack.c.b16 %v366, %v365
  %v430 = vpack.c.b16 %v368, %v367
  %v431 = vpack.c.b16 %v370, %v369
  %v432 = vpack.c.b16 %v372, %v371
  %v433 = vpack.c.b16 %v374, %v373
  %v434 = vpack.c.b16 %v376, %v375
  %v435 = vpack.c.b16 %v378, %v377
  %v436 = vpack.c.b16 %v380, %v379
  %v437 = vpack.c.b16 %v382, %v381
  %v438 = vpack.c.b16 %v384, %v383
  %v439 = vpack.c.b16 %v386, %v385
  %v440 = vpack.c.b16 %v388, %v387
  %v441 = vpack.c.b16 %v390, %v389
  %v442 = vpack.c.b16 %v392, %v391
  %v443 = vpack.c.b16 %v394, %v393
  %v444 = vpack.c.b16 %v396, %v395
  %493 = vmatprep.subr.bf16.mxu0 0
  %494 = vmatpush1.bf16.msra.mxu0 %v404
  %495 = vmatprep.subr.bf16.mxu0 0
  %496 = vmatpush1.bf16.msra.mxu0 %v403
  %497 = vmatprep.subr.bf16.mxu0 0
  %498 = vmatpush1.bf16.msra.mxu0 %v402
  %499 = vmatprep.subr.bf16.mxu0 0
  %500 = vmatpush1.bf16.msra.mxu0 %v401
  %501 = vmatprep.subr.bf16.mxu0 0
  %502 = vmatpush1.bf16.msra.mxu0 %v400
  %503 = vmatprep.subr.bf16.mxu0 0
  %504 = vmatpush1.bf16.msra.mxu0 %v399
  %505 = vmatprep.subr.bf16.mxu0 0
  %506 = vmatpush1.bf16.msra.mxu0 %v398
  %507 = vmatprep.subr.bf16.mxu0 0
  %508 = vmatpush1.bf16.msra.mxu0 %v397
  %509 = vmatprep.subr.bf16.mxu0 0
  %510 = vmatpush2.bf16.msra.mxu0 %v412
  %511 = vmatprep.subr.bf16.mxu0 0
  %512 = vmatpush2.bf16.msra.mxu0 %v411
  %513 = vmatprep.subr.bf16.mxu0 0
  %514 = vmatpush2.bf16.msra.mxu0 %v410
  %515 = vmatprep.subr.bf16.mxu0 0
  %516 = vmatpush2.bf16.msra.mxu0 %v409
  %517 = vmatprep.subr.bf16.mxu0 0
  %518 = vmatpush2.bf16.msra.mxu0 %v408
  %519 = vmatprep.subr.bf16.mxu0 0
  %520 = vmatpush2.bf16.msra.mxu0 %v407
  %521 = vmatprep.subr.bf16.mxu0 0
  %522 = vmatpush2.bf16.msra.mxu0 %v406
  %523 = vmatprep.subr.bf16.mxu0 0
  %524 = vmatpush2.bf16.msra.mxu0 %v405
  %525 = vmatprep.mubr.bf16.mxu0 %v195
  %526 = vmatmul.mubr.bf16.gmra.mxu0 %v194
  %v527 = vpop.f32.mrf.mxu0
  %v528 = vadd.f32 %v204, %v527
  %v529 = vpop.f32.mrf.mxu0
  %v530 = vpop.f32.mrf.mxu0
  %v531 = vpop.f32.mrf.mxu0
  %532 = vdwg.mxu0
  %533 = vmatprep.subr.bf16.mxu0 0
  %534 = vmatpush1.bf16.msra.mxu0 %v420
  %535 = vmatprep.subr.bf16.mxu0 0
  %536 = vmatpush1.bf16.msra.mxu0 %v419
  %537 = vmatprep.subr.bf16.mxu0 0
  %538 = vmatpush1.bf16.msra.mxu0 %v418
  %539 = vmatprep.subr.bf16.mxu0 0
  %540 = vmatpush1.bf16.msra.mxu0 %v417
  %541 = vmatprep.subr.bf16.mxu0 0
  %542 = vmatpush1.bf16.msra.mxu0 %v416
  %543 = vmatprep.subr.bf16.mxu0 0
  %544 = vmatpush1.bf16.msra.mxu0 %v415
  %545 = vmatprep.subr.bf16.mxu0 0
  %546 = vmatpush1.bf16.msra.mxu0 %v414
  %547 = vmatprep.subr.bf16.mxu0 0
  %548 = vmatpush1.bf16.msra.mxu0 %v413
  %549 = vmatprep.subr.bf16.mxu0 0
  %550 = vmatpush2.bf16.msra.mxu0 %v428
  %551 = vmatprep.subr.bf16.mxu0 0
  %552 = vmatpush2.bf16.msra.mxu0 %v427
  %553 = vmatprep.subr.bf16.mxu0 0
  %554 = vmatpush2.bf16.msra.mxu0 %v426
  %555 = vmatprep.subr.bf16.mxu0 0
  %556 = vmatpush2.bf16.msra.mxu0 %v425
  %557 = vmatprep.subr.bf16.mxu0 0
  %558 = vmatpush2.bf16.msra.mxu0 %v424
  %559 = vmatprep.subr.bf16.mxu0 0
  %560 = vmatpush2.bf16.msra.mxu0 %v423
  %561 = vmatprep.subr.bf16.mxu0 0
  %562 = vmatpush2.bf16.msra.mxu0 %v422
  %563 = vmatprep.subr.bf16.mxu0 0
  %564 = vmatpush2.bf16.msra.mxu0 %v421
  %565 = vmatprep.mubr.bf16.mxu0 %v197
  %566 = vmatmul.mubr.bf16.gmra.mxu0 %v196
  %v567 = vpop.f32.mrf.mxu0
  %v568 = vadd.f32 %v528, %v567
  %v569 = vpop.f32.mrf.mxu0
  %v570 = vpop.f32.mrf.mxu0
  %v571 = vpop.f32.mrf.mxu0
  %572 = vdwg.mxu0
  %573 = vmatprep.subr.bf16.mxu0 0
  %574 = vmatpush1.bf16.msra.mxu0 %v436
  %575 = vmatprep.subr.bf16.mxu0 0
  %576 = vmatpush1.bf16.msra.mxu0 %v435
  %577 = vmatprep.subr.bf16.mxu0 0
  %578 = vmatpush1.bf16.msra.mxu0 %v434
  %579 = vmatprep.subr.bf16.mxu0 0
  %580 = vmatpush1.bf16.msra.mxu0 %v433
  %581 = vmatprep.subr.bf16.mxu0 0
  %582 = vmatpush1.bf16.msra.mxu0 %v432
  %583 = vmatprep.subr.bf16.mxu0 0
  %584 = vmatpush1.bf16.msra.mxu0 %v431
  %585 = vmatprep.subr.bf16.mxu0 0
  %586 = vmatpush1.bf16.msra.mxu0 %v430
  %587 = vmatprep.subr.bf16.mxu0 0
  %588 = vmatpush1.bf16.msra.mxu0 %v429
  %589 = vmatprep.subr.bf16.mxu0 0
  %590 = vmatpush2.bf16.msra.mxu0 %v444
  %591 = vmatprep.subr.bf16.mxu0 0
  %592 = vmatpush2.bf16.msra.mxu0 %v443
  %593 = vmatprep.subr.bf16.mxu0 0
  %594 = vmatpush2.bf16.msra.mxu0 %v442
  %595 = vmatprep.subr.bf16.mxu0 0
  %596 = vmatpush2.bf16.msra.mxu0 %v441
  %597 = vmatprep.subr.bf16.mxu0 0
  %598 = vmatpush2.bf16.msra.mxu0 %v440
  %599 = vmatprep.subr.bf16.mxu0 0
  %600 = vmatpush2.bf16.msra.mxu0 %v439
  %601 = vmatprep.subr.bf16.mxu0 0
  %602 = vmatpush2.bf16.msra.mxu0 %v438
  %603 = vmatprep.subr.bf16.mxu0 0
  %604 = vmatpush2.bf16.msra.mxu0 %v437
  %605 = vmatprep.mubr.bf16.mxu0 %v199
  %606 = vmatmul.mubr.bf16.gmra.mxu0 %v198
  %v607 = vpop.f32.mrf.mxu0
  %v608 = vadd.f32 %v568, %v607
  %v609 = vpop.f32.mrf.mxu0
  %v610 = vpop.f32.mrf.mxu0
  %v611 = vpop.f32.mrf.mxu0
  %612 = vdwg.mxu0
  %v613 = vld [vmem:[%s6 + $0x3] sm:$0xf]
  %v615 = vrot.slane %v613, 4
  %v617 = vsel %vm59, %v613, %v615
  %v618 = vadd.f32 %v608, %v617
  %v619 = vld [vmem:[%s6 + $0x1] sm:$0x1]
  %v620 = vld [vmem:[%s6 + $0x2] sm:$0x1]
  %v621 = vadd.f32 %v619, %v620
  %v623 = vrot.slane %v618, 7
  %v626 = vrot.slane %v621, 3
  %v628 = vrot.slane %v618, 6
  %vm630 = vcmask 1040384
  %v631 = vsel %vm630, %v621, %v623
  %v632 = vsel %vm71, %v631, %v626
  %v633 = vsel %vm61, %v632, %v628
  %v634 = vld [vmem:[%s6 + $0x12] sm:$0x1]
  %v635 = vld [vmem:[%s6 + $0x13] sm:$0x1]
  %vm636 = vcmask 261120
  %v637 = vsel %vm636, %v633, 0.0
  %638 = vadd.xlane.f32.xlu0 %v637
  %v639 = vpop.xlane.xlu0 %638
  %vm640 = vcmask 254976
  %v641 = vsel %vm640, %v628, 0.0
  %642 = vadd.xlane.f32.xlu0 %v641
  %v643 = vpop.xlane.xlu0 %642
  %v644 = vrcp.pop 32.0
  %v645 = vmul.f32 %v639, %v644
  %v646 = vmul.f32 %v643, %v644
  %v647 = vsub.f32 %v633, %v645
  %v648 = vsub.f32 %v628, %v646
  %v649 = vmul.f32 %v647, %v647
  %v650 = vmul.f32 %v648, %v648
  %v651 = vsel %vm636, %v649, 0.0
  %652 = vadd.xlane.f32.xlu0 %v651
  %v653 = vpop.xlane.xlu0 %652
  %v654 = vsel %vm640, %v650, 0.0
  %655 = vadd.xlane.f32.xlu0 %v654
  %v656 = vpop.xlane.xlu0 %655
  %v657 = vmul.f32 %v653, %v644
  %v658 = vmul.f32 %v656, %v644
  %v659 = vadd.f32 %v657, 1e-06
  %v660 = vadd.f32 %v658, 1e-06
  %v661 = vrsqrt.pop %v659
  %v662 = vrsqrt.pop %v660
  %v663 = vmul.f32 %v647, %v661
  %v664 = vmul.f32 %v648, %v662
  %v665 = vlaneseq
  %v666 = vshrl.u32 %v665, 7
  %v667 = vsub.s32 0, %v666
  %v668 = vrot.slane %v634, %v667
  %v669 = vmul.f32 %v663, %v668
  %v670 = vmul.f32 %v664, %v668
  %v671 = vlaneseq
  %v672 = vshrl.u32 %v671, 7
  %v673 = vsub.s32 0, %v672
  %v674 = vrot.slane %v635, %v673
  %v675 = vadd.f32 %v669, %v674
  %v676 = vadd.f32 %v670, %v674
  %v677 = vld [vmem:[%s1] sm:$0xf]
  %v678 = vld [vmem:[%s1 + $0x4] sm:$0xf]
  %v679 = vld [vmem:[%s1 + $0x8] sm:$0xf]
  %v680 = vld [vmem:[%s1 + $0xc] sm:$0xf]
  %v681 = vpack.c.bf16 %v676, %v675
  %v682 = vld [vmem:[%s6 + $0x14] sm:$0x1]
  %v683 = vlaneseq
  %v684 = vshrl.u32 %v683, 7
  %v685 = vsub.s32 0, %v684
  %v686 = vrot.slane %v682, %v685
  %v691 = vunpack.c.l.b16 %v677
  %v692 = vunpack.c.l.b16 %v678
  %v693 = vunpack.c.l.b16 %v679
  %v694 = vunpack.c.l.b16 %v680
  %v695 = vpack.c.b16 %v692, %v691
  %v696 = vpack.c.b16 %v694, %v693
  %v700 = vsel %vm636, %v681, 0
  %702 = vmatprep.subr.bf16.mxu0 0
  %703 = vmatpush1.bf16.msra.mxu0 0
  %704 = vmatprep.subr.bf16.mxu0 0
  %705 = vmatpush1.bf16.msra.mxu0 0
  %706 = vmatprep.subr.bf16.mxu0 0
  %707 = vmatpush1.bf16.msra.mxu0 0
  %708 = vmatprep.subr.bf16.mxu0 0
  %709 = vmatpush1.bf16.msra.mxu0 0
  %710 = vmatprep.subr.bf16.mxu0 0
  %711 = vmatpush1.bf16.msra.mxu0 0
  %712 = vmatprep.subr.bf16.mxu0 0
  %713 = vmatpush1.bf16.msra.mxu0 0
  %714 = vmatprep.subr.bf16.mxu0 0
  %715 = vmatpush1.bf16.msra.mxu0 %v696
  %716 = vmatprep.subr.bf16.mxu0 0
  %717 = vmatpush1.bf16.msra.mxu0 %v695
  %718 = vmatprep.subr.bf16.mxu0 0
  %719 = vmatpush2.bf16.msra.mxu0 0
  %720 = vmatprep.subr.bf16.mxu0 0
  %721 = vmatpush2.bf16.msra.mxu0 0
  %722 = vmatprep.subr.bf16.mxu0 0
  %723 = vmatpush2.bf16.msra.mxu0 0
  %724 = vmatprep.subr.bf16.mxu0 0
  %725 = vmatpush2.bf16.msra.mxu0 0
  %726 = vmatprep.subr.bf16.mxu0 0
  %727 = vmatpush2.bf16.msra.mxu0 0
  %728 = vmatprep.subr.bf16.mxu0 0
  %729 = vmatpush2.bf16.msra.mxu0 0
  %730 = vmatprep.subr.bf16.mxu0 0
  %731 = vmatpush2.bf16.msra.mxu0 0
  %732 = vmatprep.subr.bf16.mxu0 0
  %733 = vmatpush2.bf16.msra.mxu0 0
  %734 = vmatprep.mubr.bf16.mxu0 0
  %735 = vmatmul.mubr.bf16.gmra.mxu0 %v700
  %v736 = vpop.f32.mrf.mxu0
  %v737 = vadd.f32 %v686, %v736
  %v738 = vpop.f32.mrf.mxu0
  %v739 = vpop.f32.mrf.mxu0
  %v740 = vadd.f32 %v686, %v739
  %v741 = vpop.f32.mrf.mxu0
  %742 = vdwg.mxu0
  %v745 = vrot.slane %v737, 6
  %v746 = vrot.slane %v740, 6
  %v747 = vsel %vm57, %v745, %v746
  %v750 = vrot.slane %v737, 4
  %v751 = vrot.slane %v740, 4
  %v752 = vsel %vm59, %v750, %v751
  %v755 = vrot.slane %v737, 2
  %v756 = vrot.slane %v740, 2
  %v757 = vsel %vm61, %v755, %v756
  %v760 = vsel %vm57, %v740, %v745
  %v761 = vsel %vm59, %v747, %v750
  %v762 = vsel %vm61, %v752, %v755
  %v763 = vmul.f32 %v737, %v41
  %v764 = vmul.f32 %v760, %v58
  %v765 = vmul.f32 %v761, %v60
  %v766 = vmul.f32 %v762, %v62
  %v767 = vmul.f32 %v757, %v56
  %v768 = vpack.c.bf16 %v764, %v763
  %v769 = vpack.c.bf16 %v766, %v765
  %v770 = vpack.c.bf16 %v767, %v767
  %v771 = vpack.c.bf16 %v740, %v737
  %773 = vrot.lane.b32.xlu0 %v771, 96
  %v774 = vpop.permute.xlu0 %773
  %v776 = vsel %vm636, %v768, 0
  %v779 = vsel %vm636, %v769, 0
  %v782 = vsel %vm636, %v770, 0
  %v785 = vsel %vm636, %v774, 0
  %787 = vmatprep.subr.bf16.mxu0 0
  %788 = vmatpush1.bf16.xpose.msra.mxu0 0
  %789 = vmatprep.subr.bf16.mxu0 0
  %790 = vmatpush1.bf16.xpose.msra.mxu0 0
  %791 = vmatprep.subr.bf16.mxu0 0
  %792 = vmatpush1.bf16.xpose.msra.mxu0 0
  %793 = vmatprep.subr.bf16.mxu0 0
  %794 = vmatpush1.bf16.xpose.msra.mxu0 0
  %795 = vmatprep.subr.bf16.mxu0 0
  %796 = vmatpush1.bf16.xpose.msra.mxu0 0
  %797 = vmatprep.subr.bf16.mxu0 0
  %798 = vmatpush1.bf16.xpose.msra.mxu0 0
  %799 = vmatprep.subr.bf16.mxu0 0
  %800 = vmatpush1.bf16.xpose.msra.mxu0 0
  %801 = vmatprep.subr.bf16.mxu0 0
  %802 = vmatpush1.bf16.xpose.msra.mxu0 %v785
  %803 = vmatprep.subr.bf16.mxu0 0
  %804 = vmatpush2.bf16.xpose.msra.mxu0 0
  %805 = vmatprep.subr.bf16.mxu0 0
  %806 = vmatpush2.bf16.xpose.msra.mxu0 0
  %807 = vmatprep.subr.bf16.mxu0 0
  %808 = vmatpush2.bf16.xpose.msra.mxu0 0
  %809 = vmatprep.subr.bf16.mxu0 0
  %810 = vmatpush2.bf16.xpose.msra.mxu0 0
  %811 = vmatprep.subr.bf16.mxu0 0
  %812 = vmatpush2.bf16.xpose.msra.mxu0 0
  %813 = vmatprep.subr.bf16.mxu0 0
  %814 = vmatpush2.bf16.xpose.msra.mxu0 0
  %815 = vmatprep.subr.bf16.mxu0 0
  %816 = vmatpush2.bf16.xpose.msra.mxu0 0
  %817 = vmatprep.subr.bf16.mxu0 0
  %818 = vmatpush2.bf16.xpose.msra.mxu0 0
  %819 = vmatprep.mubr.bf16.mxu0 0
  %820 = vmatmul.mubr.bf16.gmra.mxu0 %v776
  %v821 = vpop.f32.mrf.mxu0
  %v822 = vadd.f32 0.0, %v821
  %v823 = vpop.f32.mrf.mxu0
  %v824 = vpop.f32.mrf.mxu0
  %v825 = vadd.f32 0.0, %v824
  %v826 = vpop.f32.mrf.mxu0
  %827 = vmatprep.mubr.bf16.mxu0 0
  %828 = vmatmul.mubr.bf16.gmra.mxu0 %v779
  %v829 = vpop.f32.mrf.mxu0
  %v830 = vadd.f32 0.0, %v829
  %v831 = vpop.f32.mrf.mxu0
  %v832 = vpop.f32.mrf.mxu0
  %v833 = vadd.f32 0.0, %v832
  %v834 = vpop.f32.mrf.mxu0
  %835 = vmatprep.mubr.bf16.mxu0 0
  %836 = vmatmul.mubr.bf16.gmra.mxu0 %v782
  %v837 = vpop.f32.mrf.mxu0
  %v838 = vadd.f32 0.0, %v837
  %v839 = vpop.f32.mrf.mxu0
  %v840 = vpop.f32.mrf.mxu0
  %v841 = vpop.f32.mrf.mxu0
  %842 = vdwg.mxu0
  %v843 = vmul.f32 %v822, 0.35355338
  %v844 = vmul.f32 %v825, 0.35355338
  %v845 = vmul.f32 %v830, 0.35355338
  %v846 = vmul.f32 %v833, 0.35355338
  %v847 = vmul.f32 %v838, 0.35355338
  %v848 = vadd.f32 %v843, %v72
  %v849 = vadd.f32 %v844, %v89
  %v850 = vadd.f32 %v845, %v90
  %v851 = vadd.f32 %v846, %v91
  %v852 = vadd.f32 %v847, %v86
  %vm853 = vcmask 80896
  %v854 = vsel %vm853, %v848, -inf
  %855 = vmax.xlane.f32.xlu0 %v854
  %v856 = vpop.xlane.xlu0 %855
  %v857 = vsel %vm853, %v849, -inf
  %858 = vmax.xlane.f32.xlu0 %v857
  %v859 = vpop.xlane.xlu0 %858
  %v860 = vsel %vm853, %v850, -inf
  %861 = vmax.xlane.f32.xlu0 %v860
  %v862 = vpop.xlane.xlu0 %861
  %v863 = vsel %vm853, %v851, -inf
  %864 = vmax.xlane.f32.xlu0 %v863
  %v865 = vpop.xlane.xlu0 %864
  %v866 = vsel %vm853, %v852, -inf
  %867 = vmax.xlane.f32.xlu0 %v866
  %v868 = vpop.xlane.xlu0 %867
  %v869 = vsub.f32 %v848, %v856
  %v870 = vsub.f32 %v849, %v859
  %v871 = vsub.f32 %v850, %v862
  %v872 = vsub.f32 %v851, %v865
  %v873 = vsub.f32 %v852, %v868
  %v874 = vmul.f32 %v869, 1.442695
  %v875 = vpow.pop %v874
  %v876 = vmul.f32 %v870, 1.442695
  %v877 = vpow.pop %v876
  %v878 = vmul.f32 %v871, 1.442695
  %v879 = vpow.pop %v878
  %v880 = vmul.f32 %v872, 1.442695
  %v881 = vpow.pop %v880
  %v882 = vmul.f32 %v873, 1.442695
  %v883 = vpow.pop %v882
  %v884 = vsel %vm853, %v875, 0.0
  %885 = vadd.xlane.f32.xlu0 %v884
  %v886 = vpop.xlane.xlu0 %885
  %v887 = vsel %vm853, %v877, 0.0
  %888 = vadd.xlane.f32.xlu0 %v887
  %v889 = vpop.xlane.xlu0 %888
  %v890 = vsel %vm853, %v879, 0.0
  %891 = vadd.xlane.f32.xlu0 %v890
  %v892 = vpop.xlane.xlu0 %891
  %v893 = vsel %vm853, %v881, 0.0
  %894 = vadd.xlane.f32.xlu0 %v893
  %v895 = vpop.xlane.xlu0 %894
  %v896 = vsel %vm853, %v883, 0.0
  %897 = vadd.xlane.f32.xlu0 %v896
  %v898 = vpop.xlane.xlu0 %897
  %v899 = vrcp.pop %v886
  %v900 = vrcp.pop %v889
  %v901 = vrcp.pop %v892
  %v902 = vrcp.pop %v895
  %v903 = vrcp.pop %v898
  %v904 = vmul.f32 %v875, %v899
  %v905 = vmul.f32 %v877, %v900
  %v906 = vmul.f32 %v879, %v901
  %v907 = vmul.f32 %v881, %v902
  %v908 = vmul.f32 %v883, %v903
  %v909 = vpack.c.bf16 %v905, %v904
  %v910 = vpack.c.bf16 %v907, %v906
  %v911 = vpack.c.bf16 %v908, %v908
  %912 = vrot.lane.b32.xlu0 %v771, 64
  %v913 = vpop.permute.xlu0 %912
  %v915 = vsel %vm853, %v909, 0
  %v918 = vsel %vm853, %v910, 0
  %v921 = vsel %vm853, %v911, 0
  %v924 = vsel %vm71, %v913, 0
  %926 = vmatprep.subr.bf16.mxu0 0
  %927 = vmatpush1.bf16.msra.mxu0 0
  %928 = vmatprep.subr.bf16.mxu0 0
  %929 = vmatpush1.bf16.msra.mxu0 0
  %930 = vmatprep.subr.bf16.mxu0 0
  %931 = vmatpush1.bf16.msra.mxu0 0
  %932 = vmatprep.subr.bf16.mxu0 0
  %933 = vmatpush1.bf16.msra.mxu0 0
  %934 = vmatprep.subr.bf16.mxu0 0
  %935 = vmatpush1.bf16.msra.mxu0 0
  %936 = vmatprep.subr.bf16.mxu0 0
  %937 = vmatpush1.bf16.msra.mxu0 0
  %938 = vmatprep.subr.bf16.mxu0 0
  %939 = vmatpush1.bf16.msra.mxu0 0
  %940 = vmatprep.subr.bf16.mxu0 0
  %941 = vmatpush1.bf16.msra.mxu0 %v924
  %942 = vmatprep.subr.bf16.mxu0 0
  %943 = vmatpush2.bf16.msra.mxu0 0
  %944 = vmatprep.subr.bf16.mxu0 0
  %945 = vmatpush2.bf16.msra.mxu0 0
  %946 = vmatprep.subr.bf16.mxu0 0
  %947 = vmatpush2.bf16.msra.mxu0 0
  %948 = vmatprep.subr.bf16.mxu0 0
  %949 = vmatpush2.bf16.msra.mxu0 0
  %950 = vmatprep.subr.bf16.mxu0 0
  %951 = vmatpush2.bf16.msra.mxu0 0
  %952 = vmatprep.subr.bf16.mxu0 0
  %953 = vmatpush2.bf16.msra.mxu0 0
  %954 = vmatprep.subr.bf16.mxu0 0
  %955 = vmatpush2.bf16.msra.mxu0 0
  %956 = vmatprep.subr.bf16.mxu0 0
  %957 = vmatpush2.bf16.msra.mxu0 0
  %958 = vmatprep.mubr.bf16.mxu0 0
  %959 = vmatmul.mubr.bf16.gmra.mxu0 %v915
  %v960 = vpop.f32.mrf.mxu0
  %v961 = vadd.f32 0.0, %v960
  %v962 = vpop.f32.mrf.mxu0
  %v963 = vpop.f32.mrf.mxu0
  %v964 = vadd.f32 0.0, %v963
  %v965 = vpop.f32.mrf.mxu0
  %966 = vmatprep.mubr.bf16.mxu0 0
  %967 = vmatmul.mubr.bf16.gmra.mxu0 %v918
  %v968 = vpop.f32.mrf.mxu0
  %v969 = vadd.f32 0.0, %v968
  %v970 = vpop.f32.mrf.mxu0
  %v971 = vpop.f32.mrf.mxu0
  %v972 = vadd.f32 0.0, %v971
  %v973 = vpop.f32.mrf.mxu0
  %974 = vmatprep.mubr.bf16.mxu0 0
  %975 = vmatmul.mubr.bf16.gmra.mxu0 %v921
  %v976 = vpop.f32.mrf.mxu0
  %v977 = vadd.f32 0.0, %v976
  %v978 = vpop.f32.mrf.mxu0
  %v979 = vpop.f32.mrf.mxu0
  %v980 = vpop.f32.mrf.mxu0
  %981 = vdwg.mxu0
  %v982 = vmul.f32 %v961, %v41
  %v983 = vmul.f32 %v964, %v58
  %v984 = vmul.f32 %v969, %v60
  %v985 = vmul.f32 %v972, %v62
  %v986 = vmul.f32 %v977, %v56
  %v989 = vrot.slane %v983, 2
  %v990 = vrot.slane %v984, 2
  %v991 = vsel %vm61, %v989, %v990
  %v994 = vadd.f32 %v982, %v991
  %v995 = vadd.f32 %v983, %v990
  %v997 = vrot.slane %v984, 4
  %v998 = vrot.slane %v985, 4
  %v999 = vsel %vm59, %v997, %v998
  %v1002 = vadd.f32 %v994, %v999
  %v1003 = vadd.f32 %v995, %v998
  %v1005 = vrot.slane %v985, 6
  %v1006 = vrot.slane %v986, 6
  %v1007 = vsel %vm57, %v1005, %v1006
  %v1010 = vadd.f32 %v1002, %v1007
  %v1011 = vadd.f32 %v1003, %v1006
  %v1012 = vld [vmem:[%s2] sm:$0xf]
  %v1013 = vld [vmem:[%s2 + $0x4] sm:$0xf]
  %v1014 = vld [vmem:[%s2 + $0x8] sm:$0xf]
  %v1015 = vld [vmem:[%s2 + $0xc] sm:$0xf]
  %v1016 = vpack.c.bf16 %v1011, %v1010
  %v1021 = vunpack.c.l.b16 %v1012
  %v1022 = vunpack.c.l.b16 %v1013
  %v1023 = vunpack.c.l.b16 %v1014
  %v1024 = vunpack.c.l.b16 %v1015
  %v1025 = vpack.c.b16 %v1022, %v1021
  %v1026 = vpack.c.b16 %v1024, %v1023
  %v1030 = vsel %vm636, %v1016, 0
  %1032 = vmatprep.subr.bf16.mxu0 0
  %1033 = vmatpush1.bf16.msra.mxu0 0
  %1034 = vmatprep.subr.bf16.mxu0 0
  %1035 = vmatpush1.bf16.msra.mxu0 0
  %1036 = vmatprep.subr.bf16.mxu0 0
  %1037 = vmatpush1.bf16.msra.mxu0 0
  %1038 = vmatprep.subr.bf16.mxu0 0
  %1039 = vmatpush1.bf16.msra.mxu0 0
  %1040 = vmatprep.subr.bf16.mxu0 0
  %1041 = vmatpush1.bf16.msra.mxu0 0
  %1042 = vmatprep.subr.bf16.mxu0 0
  %1043 = vmatpush1.bf16.msra.mxu0 0
  %1044 = vmatprep.subr.bf16.mxu0 0
  %1045 = vmatpush1.bf16.msra.mxu0 %v1026
  %1046 = vmatprep.subr.bf16.mxu0 0
  %1047 = vmatpush1.bf16.msra.mxu0 %v1025
  %1048 = vmatprep.subr.bf16.mxu0 0
  %1049 = vmatpush2.bf16.msra.mxu0 0
  %1050 = vmatprep.subr.bf16.mxu0 0
  %1051 = vmatpush2.bf16.msra.mxu0 0
  %1052 = vmatprep.subr.bf16.mxu0 0
  %1053 = vmatpush2.bf16.msra.mxu0 0
  %1054 = vmatprep.subr.bf16.mxu0 0
  %1055 = vmatpush2.bf16.msra.mxu0 0
  %1056 = vmatprep.subr.bf16.mxu0 0
  %1057 = vmatpush2.bf16.msra.mxu0 0
  %1058 = vmatprep.subr.bf16.mxu0 0
  %1059 = vmatpush2.bf16.msra.mxu0 0
  %1060 = vmatprep.subr.bf16.mxu0 0
  %1061 = vmatpush2.bf16.msra.mxu0 0
  %1062 = vmatprep.subr.bf16.mxu0 0
  %1063 = vmatpush2.bf16.msra.mxu0 0
  %1064 = vmatprep.mubr.bf16.mxu0 0
  %1065 = vmatmul.mubr.bf16.gmra.mxu0 %v1030
  %v1066 = vpop.f32.mrf.mxu0
  %v1067 = vadd.f32 0.0, %v1066
  %v1068 = vpop.f32.mrf.mxu0
  %v1069 = vpop.f32.mrf.mxu0
  %v1070 = vadd.f32 0.0, %v1069
  %v1071 = vpop.f32.mrf.mxu0
  %1072 = vdwg.mxu0
  %v1073 = vadd.f32 %v633, %v1067
  %v1074 = vadd.f32 %v628, %v1070
  %v1075 = vld [vmem:[%s6 + $0x15] sm:$0x1]
  %v1076 = vlaneseq
  %v1077 = vshrl.u32 %v1076, 7
  %v1078 = vsub.s32 0, %v1077
  %v1079 = vrot.slane %v1075, %v1078
  %v1080 = vadd.f32 %v1073, %v1079
  %v1081 = vadd.f32 %v1074, %v1079
  %v1082 = vld [vmem:[%s6 + $0x16] sm:$0x1]
  %v1083 = vld [vmem:[%s6 + $0x17] sm:$0x1]
  %v1084 = vsel %vm636, %v1080, 0.0
  %1085 = vadd.xlane.f32.xlu0 %v1084
  %v1086 = vpop.xlane.xlu0 %1085
  %v1087 = vsel %vm640, %v1081, 0.0
  %1088 = vadd.xlane.f32.xlu0 %v1087
  %v1089 = vpop.xlane.xlu0 %1088
  %v1090 = vmul.f32 %v1086, %v644
  %v1091 = vmul.f32 %v1089, %v644
  %v1092 = vsub.f32 %v1080, %v1090
  %v1093 = vsub.f32 %v1081, %v1091
  %v1094 = vmul.f32 %v1092, %v1092
  %v1095 = vmul.f32 %v1093, %v1093
  %v1096 = vsel %vm636, %v1094, 0.0
  %1097 = vadd.xlane.f32.xlu0 %v1096
  %v1098 = vpop.xlane.xlu0 %1097
  %v1099 = vsel %vm640, %v1095, 0.0
  %1100 = vadd.xlane.f32.xlu0 %v1099
  %v1101 = vpop.xlane.xlu0 %1100
  %v1102 = vmul.f32 %v1098, %v644
  %v1103 = vmul.f32 %v1101, %v644
  %v1104 = vadd.f32 %v1102, 1e-06
  %v1105 = vadd.f32 %v1103, 1e-06
  %v1106 = vrsqrt.pop %v1104
  %v1107 = vrsqrt.pop %v1105
  %v1108 = vmul.f32 %v1092, %v1106
  %v1109 = vmul.f32 %v1093, %v1107
  %v1110 = vlaneseq
  %v1111 = vshrl.u32 %v1110, 7
  %v1112 = vsub.s32 0, %v1111
  %v1113 = vrot.slane %v1082, %v1112
  %v1114 = vmul.f32 %v1108, %v1113
  %v1115 = vmul.f32 %v1109, %v1113
  %v1116 = vlaneseq
  %v1117 = vshrl.u32 %v1116, 7
  %v1118 = vsub.s32 0, %v1117
  %v1119 = vrot.slane %v1083, %v1118
  %v1120 = vadd.f32 %v1114, %v1119
  %v1121 = vadd.f32 %v1115, %v1119
  %v1122 = vld [vmem:[%s3] sm:$0xf]
  %v1123 = vld [vmem:[%s3 + $0x4] sm:$0xf]
  %v1124 = vld [vmem:[%s3 + $0x8] sm:$0xf]
  %v1125 = vld [vmem:[%s3 + $0xc] sm:$0xf]
  %v1126 = vpack.c.bf16 %v1121, %v1120
  %v1127 = vld [vmem:[%s6 + $0x18] sm:$0x1]
  %v1128 = vlaneseq
  %v1129 = vshrl.u32 %v1128, 7
  %v1130 = vsub.s32 0, %v1129
  %v1131 = vrot.slane %v1127, %v1130
  %v1136 = vunpack.c.l.b16 %v1122
  %v1137 = vunpack.c.l.b16 %v1123
  %v1138 = vunpack.c.l.b16 %v1124
  %v1139 = vunpack.c.l.b16 %v1125
  %v1140 = vpack.c.b16 %v1137, %v1136
  %v1141 = vpack.c.b16 %v1139, %v1138
  %v1145 = vsel %vm636, %v1126, 0
  %1147 = vmatprep.subr.bf16.mxu0 0
  %1148 = vmatpush1.bf16.msra.mxu0 0
  %1149 = vmatprep.subr.bf16.mxu0 0
  %1150 = vmatpush1.bf16.msra.mxu0 0
  %1151 = vmatprep.subr.bf16.mxu0 0
  %1152 = vmatpush1.bf16.msra.mxu0 0
  %1153 = vmatprep.subr.bf16.mxu0 0
  %1154 = vmatpush1.bf16.msra.mxu0 0
  %1155 = vmatprep.subr.bf16.mxu0 0
  %1156 = vmatpush1.bf16.msra.mxu0 0
  %1157 = vmatprep.subr.bf16.mxu0 0
  %1158 = vmatpush1.bf16.msra.mxu0 0
  %1159 = vmatprep.subr.bf16.mxu0 0
  %1160 = vmatpush1.bf16.msra.mxu0 %v1141
  %1161 = vmatprep.subr.bf16.mxu0 0
  %1162 = vmatpush1.bf16.msra.mxu0 %v1140
  %1163 = vmatprep.subr.bf16.mxu0 0
  %1164 = vmatpush2.bf16.msra.mxu0 0
  %1165 = vmatprep.subr.bf16.mxu0 0
  %1166 = vmatpush2.bf16.msra.mxu0 0
  %1167 = vmatprep.subr.bf16.mxu0 0
  %1168 = vmatpush2.bf16.msra.mxu0 0
  %1169 = vmatprep.subr.bf16.mxu0 0
  %1170 = vmatpush2.bf16.msra.mxu0 0
  %1171 = vmatprep.subr.bf16.mxu0 0
  %1172 = vmatpush2.bf16.msra.mxu0 0
  %1173 = vmatprep.subr.bf16.mxu0 0
  %1174 = vmatpush2.bf16.msra.mxu0 0
  %1175 = vmatprep.subr.bf16.mxu0 0
  %1176 = vmatpush2.bf16.msra.mxu0 0
  %1177 = vmatprep.subr.bf16.mxu0 0
  %1178 = vmatpush2.bf16.msra.mxu0 0
  %1179 = vmatprep.mubr.bf16.mxu0 0
  %1180 = vmatmul.mubr.bf16.gmra.mxu0 %v1145
  %v1181 = vpop.f32.mrf.mxu0
  %v1182 = vadd.f32 %v1131, %v1181
  %v1183 = vpop.f32.mrf.mxu0
  %v1184 = vpop.f32.mrf.mxu0
  %v1185 = vadd.f32 %v1131, %v1184
  %v1186 = vpop.f32.mrf.mxu0
  %1187 = vdwg.mxu0
  %v1188 = vmul.f32 %v1182, %v1182
  %v1189 = vmul.f32 %v1185, %v1185
  %v1190 = vmul.f32 %v1182, %v1188
  %v1191 = vmul.f32 %v1185, %v1189
  %v1192 = vmul.f32 %v1190, 0.044715
  %v1193 = vmul.f32 %v1191, 0.044715
  %v1194 = vadd.f32 %v1182, %v1192
  %v1195 = vadd.f32 %v1185, %v1193
  %v1196 = vmul.f32 %v1194, 0.7978846
  %v1197 = vmul.f32 %v1195, 0.7978846
  %v1198 = vtanh.pop %v1196
  %v1199 = vtanh.pop %v1197
  %v1200 = vadd.f32 %v1198, 1.0
  %v1201 = vadd.f32 %v1199, 1.0
  %v1202 = vmul.f32 %v1200, 0.5
  %v1203 = vmul.f32 %v1201, 0.5
  %v1204 = vmul.f32 %v1182, %v1202
  %v1205 = vmul.f32 %v1185, %v1203
  %v1206 = vld [vmem:[%s4] sm:$0xf]
  %v1207 = vld [vmem:[%s4 + $0x4] sm:$0xf]
  %v1208 = vld [vmem:[%s4 + $0x8] sm:$0xf]
  %v1209 = vld [vmem:[%s4 + $0xc] sm:$0xf]
  %v1210 = vld [vmem:[%s4 + $0x10] sm:$0xf]
  %v1211 = vld [vmem:[%s4 + $0x14] sm:$0xf]
  %v1212 = vld [vmem:[%s4 + $0x18] sm:$0xf]
  %v1213 = vld [vmem:[%s4 + $0x1c] sm:$0xf]
  %v1214 = vld [vmem:[%s4 + $0x20] sm:$0xf]
  %v1215 = vld [vmem:[%s4 + $0x24] sm:$0xf]
  %v1216 = vld [vmem:[%s4 + $0x28] sm:$0xf]
  %v1217 = vld [vmem:[%s4 + $0x2c] sm:$0xf]
  %v1218 = vld [vmem:[%s4 + $0x30] sm:$0xf]
  %v1219 = vld [vmem:[%s4 + $0x34] sm:$0xf]
  %v1220 = vld [vmem:[%s4 + $0x38] sm:$0xf]
  %v1221 = vld [vmem:[%s4 + $0x3c] sm:$0xf]
  %v1222 = vpack.c.bf16 %v1205, %v1204
  %v1239 = vunpack.c.l.b16 %v1206
  %v1240 = vunpack.c.l.b16 %v1207
  %v1241 = vunpack.c.l.b16 %v1208
  %v1242 = vunpack.c.l.b16 %v1209
  %v1243 = vunpack.c.l.b16 %v1210
  %v1244 = vunpack.c.l.b16 %v1211
  %v1245 = vunpack.c.l.b16 %v1212
  %v1246 = vunpack.c.l.b16 %v1213
  %v1247 = vunpack.c.l.b16 %v1214
  %v1248 = vunpack.c.l.b16 %v1215
  %v1249 = vunpack.c.l.b16 %v1216
  %v1250 = vunpack.c.l.b16 %v1217
  %v1251 = vunpack.c.l.b16 %v1218
  %v1252 = vunpack.c.l.b16 %v1219
  %v1253 = vunpack.c.l.b16 %v1220
  %v1254 = vunpack.c.l.b16 %v1221
  %v1255 = vpack.c.b16 %v1240, %v1239
  %v1256 = vpack.c.b16 %v1242, %v1241
  %v1257 = vpack.c.b16 %v1244, %v1243
  %v1258 = vpack.c.b16 %v1246, %v1245
  %v1259 = vpack.c.b16 %v1248, %v1247
  %v1260 = vpack.c.b16 %v1250, %v1249
  %v1261 = vpack.c.b16 %v1252, %v1251
  %v1262 = vpack.c.b16 %v1254, %v1253
  %1271 = vmatprep.subr.bf16.mxu0 0
  %1272 = vmatpush1.bf16.msra.mxu0 %v1262
  %1273 = vmatprep.subr.bf16.mxu0 0
  %1274 = vmatpush1.bf16.msra.mxu0 %v1261
  %1275 = vmatprep.subr.bf16.mxu0 0
  %1276 = vmatpush1.bf16.msra.mxu0 %v1260
  %1277 = vmatprep.subr.bf16.mxu0 0
  %1278 = vmatpush1.bf16.msra.mxu0 %v1259
  %1279 = vmatprep.subr.bf16.mxu0 0
  %1280 = vmatpush1.bf16.msra.mxu0 %v1258
  %1281 = vmatprep.subr.bf16.mxu0 0
  %1282 = vmatpush1.bf16.msra.mxu0 %v1257
  %1283 = vmatprep.subr.bf16.mxu0 0
  %1284 = vmatpush1.bf16.msra.mxu0 %v1256
  %1285 = vmatprep.subr.bf16.mxu0 0
  %1286 = vmatpush1.bf16.msra.mxu0 %v1255
  %1287 = vmatprep.subr.bf16.mxu0 0
  %1288 = vmatpush2.bf16.msra.mxu0 0
  %1289 = vmatprep.subr.bf16.mxu0 0
  %1290 = vmatpush2.bf16.msra.mxu0 0
  %1291 = vmatprep.subr.bf16.mxu0 0
  %1292 = vmatpush2.bf16.msra.mxu0 0
  %1293 = vmatprep.subr.bf16.mxu0 0
  %1294 = vmatpush2.bf16.msra.mxu0 0
  %1295 = vmatprep.subr.bf16.mxu0 0
  %1296 = vmatpush2.bf16.msra.mxu0 0
  %1297 = vmatprep.subr.bf16.mxu0 0
  %1298 = vmatpush2.bf16.msra.mxu0 0
  %1299 = vmatprep.subr.bf16.mxu0 0
  %1300 = vmatpush2.bf16.msra.mxu0 0
  %1301 = vmatprep.subr.bf16.mxu0 0
  %1302 = vmatpush2.bf16.msra.mxu0 0
  %1303 = vmatprep.mubr.bf16.mxu0 0
  %1304 = vmatmul.mubr.bf16.gmra.mxu0 %v1222
  %v1305 = vpop.f32.mrf.mxu0
  %v1306 = vadd.f32 0.0, %v1305
  %v1307 = vpop.f32.mrf.mxu0
  %v1308 = vpop.f32.mrf.mxu0
  %v1309 = vadd.f32 0.0, %v1308
  %v1310 = vpop.f32.mrf.mxu0
  %1311 = vdwg.mxu0
  %v1312 = vadd.f32 %v1080, %v1306
  %v1313 = vadd.f32 %v1081, %v1309
  %v1314 = vld [vmem:[%s6 + $0x19] sm:$0x1]
  %v1315 = vlaneseq
  %v1316 = vshrl.u32 %v1315, 7
  %v1317 = vsub.s32 0, %v1316
  %v1318 = vrot.slane %v1314, %v1317
  %v1319 = vadd.f32 %v1312, %v1318
  %v1320 = vadd.f32 %v1313, %v1318
  %v1321 = vld [vmem:[%s6 + $0x1a] sm:$0x1]
  %v1322 = vld [vmem:[%s6 + $0x1b] sm:$0x1]
  %v1323 = vsel %vm636, %v1319, 0.0
  %1324 = vadd.xlane.f32.xlu0 %v1323
  %v1325 = vpop.xlane.xlu0 %1324
  %v1326 = vsel %vm640, %v1320, 0.0
  %1327 = vadd.xlane.f32.xlu0 %v1326
  %v1328 = vpop.xlane.xlu0 %1327
  %v1329 = vmul.f32 %v1325, %v644
  %v1330 = vmul.f32 %v1328, %v644
  %v1331 = vsub.f32 %v1319, %v1329
  %v1332 = vsub.f32 %v1320, %v1330
  %v1333 = vmul.f32 %v1331, %v1331
  %v1334 = vmul.f32 %v1332, %v1332
  %v1335 = vsel %vm636, %v1333, 0.0
  %1336 = vadd.xlane.f32.xlu0 %v1335
  %v1337 = vpop.xlane.xlu0 %1336
  %v1338 = vsel %vm640, %v1334, 0.0
  %1339 = vadd.xlane.f32.xlu0 %v1338
  %v1340 = vpop.xlane.xlu0 %1339
  %v1341 = vmul.f32 %v1337, %v644
  %v1342 = vmul.f32 %v1340, %v644
  %v1343 = vadd.f32 %v1341, 1e-06
  %v1344 = vadd.f32 %v1342, 1e-06
  %v1345 = vrsqrt.pop %v1343
  %v1346 = vrsqrt.pop %v1344
  %v1347 = vmul.f32 %v1331, %v1345
  %v1348 = vmul.f32 %v1332, %v1346
  %v1349 = vlaneseq
  %v1350 = vshrl.u32 %v1349, 7
  %v1351 = vsub.s32 0, %v1350
  %v1352 = vrot.slane %v1321, %v1351
  %v1353 = vmul.f32 %v1347, %v1352
  %v1354 = vmul.f32 %v1348, %v1352
  %v1355 = vlaneseq
  %v1356 = vshrl.u32 %v1355, 7
  %v1357 = vsub.s32 0, %v1356
  %v1358 = vrot.slane %v1322, %v1357
  %v1359 = vadd.f32 %v1353, %v1358
  %v1360 = vadd.f32 %v1354, %v1358
  %s1361 = scalar_lea.vmem %s1, 16
  %v1362 = vld [vmem:[%s1361] sm:$0xf]
  %v1363 = vld [vmem:[%s1361 + $0x4] sm:$0xf]
  %v1364 = vld [vmem:[%s1361 + $0x8] sm:$0xf]
  %v1365 = vld [vmem:[%s1361 + $0xc] sm:$0xf]
  %v1366 = vpack.c.bf16 %v1360, %v1359
  %v1367 = vld [vmem:[%s6 + $0x1c] sm:$0x1]
  %v1368 = vlaneseq
  %v1369 = vshrl.u32 %v1368, 7
  %v1370 = vsub.s32 0, %v1369
  %v1371 = vrot.slane %v1367, %v1370
  %v1376 = vunpack.c.l.b16 %v1362
  %v1377 = vunpack.c.l.b16 %v1363
  %v1378 = vunpack.c.l.b16 %v1364
  %v1379 = vunpack.c.l.b16 %v1365
  %v1380 = vpack.c.b16 %v1377, %v1376
  %v1381 = vpack.c.b16 %v1379, %v1378
  %v1385 = vsel %vm636, %v1366, 0
  %1387 = vmatprep.subr.bf16.mxu0 0
  %1388 = vmatpush1.bf16.msra.mxu0 0
  %1389 = vmatprep.subr.bf16.mxu0 0
  %1390 = vmatpush1.bf16.msra.mxu0 0
  %1391 = vmatprep.subr.bf16.mxu0 0
  %1392 = vmatpush1.bf16.msra.mxu0 0
  %1393 = vmatprep.subr.bf16.mxu0 0
  %1394 = vmatpush1.bf16.msra.mxu0 0
  %1395 = vmatprep.subr.bf16.mxu0 0
  %1396 = vmatpush1.bf16.msra.mxu0 0
  %1397 = vmatprep.subr.bf16.mxu0 0
  %1398 = vmatpush1.bf16.msra.mxu0 0
  %1399 = vmatprep.subr.bf16.mxu0 0
  %1400 = vmatpush1.bf16.msra.mxu0 %v1381
  %1401 = vmatprep.subr.bf16.mxu0 0
  %1402 = vmatpush1.bf16.msra.mxu0 %v1380
  %1403 = vmatprep.subr.bf16.mxu0 0
  %1404 = vmatpush2.bf16.msra.mxu0 0
  %1405 = vmatprep.subr.bf16.mxu0 0
  %1406 = vmatpush2.bf16.msra.mxu0 0
  %1407 = vmatprep.subr.bf16.mxu0 0
  %1408 = vmatpush2.bf16.msra.mxu0 0
  %1409 = vmatprep.subr.bf16.mxu0 0
  %1410 = vmatpush2.bf16.msra.mxu0 0
  %1411 = vmatprep.subr.bf16.mxu0 0
  %1412 = vmatpush2.bf16.msra.mxu0 0
  %1413 = vmatprep.subr.bf16.mxu0 0
  %1414 = vmatpush2.bf16.msra.mxu0 0
  %1415 = vmatprep.subr.bf16.mxu0 0
  %1416 = vmatpush2.bf16.msra.mxu0 0
  %1417 = vmatprep.subr.bf16.mxu0 0
  %1418 = vmatpush2.bf16.msra.mxu0 0
  %1419 = vmatprep.mubr.bf16.mxu0 0
  %1420 = vmatmul.mubr.bf16.gmra.mxu0 %v1385
  %v1421 = vpop.f32.mrf.mxu0
  %v1422 = vadd.f32 %v1371, %v1421
  %v1423 = vpop.f32.mrf.mxu0
  %v1424 = vpop.f32.mrf.mxu0
  %v1425 = vadd.f32 %v1371, %v1424
  %v1426 = vpop.f32.mrf.mxu0
  %1427 = vdwg.mxu0
  %v1430 = vrot.slane %v1422, 6
  %v1431 = vrot.slane %v1425, 6
  %v1432 = vsel %vm57, %v1430, %v1431
  %v1435 = vrot.slane %v1422, 4
  %v1436 = vrot.slane %v1425, 4
  %v1437 = vsel %vm59, %v1435, %v1436
  %v1440 = vrot.slane %v1422, 2
  %v1441 = vrot.slane %v1425, 2
  %v1442 = vsel %vm61, %v1440, %v1441
  %v1445 = vsel %vm57, %v1425, %v1430
  %v1446 = vsel %vm59, %v1432, %v1435
  %v1447 = vsel %vm61, %v1437, %v1440
  %v1448 = vmul.f32 %v1422, %v41
  %v1449 = vmul.f32 %v1445, %v58
  %v1450 = vmul.f32 %v1446, %v60
  %v1451 = vmul.f32 %v1447, %v62
  %v1452 = vmul.f32 %v1442, %v56
  %v1453 = vpack.c.bf16 %v1449, %v1448
  %v1454 = vpack.c.bf16 %v1451, %v1450
  %v1455 = vpack.c.bf16 %v1452, %v1452
  %v1456 = vpack.c.bf16 %v1425, %v1422
  %1458 = vrot.lane.b32.xlu0 %v1456, 96
  %v1459 = vpop.permute.xlu0 %1458
  %v1461 = vsel %vm636, %v1453, 0
  %v1464 = vsel %vm636, %v1454, 0
  %v1467 = vsel %vm636, %v1455, 0
  %v1470 = vsel %vm636, %v1459, 0
  %1472 = vmatprep.subr.bf16.mxu0 0
  %1473 = vmatpush1.bf16.xpose.msra.mxu0 0
  %1474 = vmatprep.subr.bf16.mxu0 0
  %1475 = vmatpush1.bf16.xpose.msra.mxu0 0
  %1476 = vmatprep.subr.bf16.mxu0 0
  %1477 = vmatpush1.bf16.xpose.msra.mxu0 0
  %1478 = vmatprep.subr.bf16.mxu0 0
  %1479 = vmatpush1.bf16.xpose.msra.mxu0 0
  %1480 = vmatprep.subr.bf16.mxu0 0
  %1481 = vmatpush1.bf16.xpose.msra.mxu0 0
  %1482 = vmatprep.subr.bf16.mxu0 0
  %1483 = vmatpush1.bf16.xpose.msra.mxu0 0
  %1484 = vmatprep.subr.bf16.mxu0 0
  %1485 = vmatpush1.bf16.xpose.msra.mxu0 0
  %1486 = vmatprep.subr.bf16.mxu0 0
  %1487 = vmatpush1.bf16.xpose.msra.mxu0 %v1470
  %1488 = vmatprep.subr.bf16.mxu0 0
  %1489 = vmatpush2.bf16.xpose.msra.mxu0 0
  %1490 = vmatprep.subr.bf16.mxu0 0
  %1491 = vmatpush2.bf16.xpose.msra.mxu0 0
  %1492 = vmatprep.subr.bf16.mxu0 0
  %1493 = vmatpush2.bf16.xpose.msra.mxu0 0
  %1494 = vmatprep.subr.bf16.mxu0 0
  %1495 = vmatpush2.bf16.xpose.msra.mxu0 0
  %1496 = vmatprep.subr.bf16.mxu0 0
  %1497 = vmatpush2.bf16.xpose.msra.mxu0 0
  %1498 = vmatprep.subr.bf16.mxu0 0
  %1499 = vmatpush2.bf16.xpose.msra.mxu0 0
  %1500 = vmatprep.subr.bf16.mxu0 0
  %1501 = vmatpush2.bf16.xpose.msra.mxu0 0
  %1502 = vmatprep.subr.bf16.mxu0 0
  %1503 = vmatpush2.bf16.xpose.msra.mxu0 0
  %1504 = vmatprep.mubr.bf16.mxu0 0
  %1505 = vmatmul.mubr.bf16.gmra.mxu0 %v1461
  %v1506 = vpop.f32.mrf.mxu0
  %v1507 = vadd.f32 0.0, %v1506
  %v1508 = vpop.f32.mrf.mxu0
  %v1509 = vpop.f32.mrf.mxu0
  %v1510 = vadd.f32 0.0, %v1509
  %v1511 = vpop.f32.mrf.mxu0
  %1512 = vmatprep.mubr.bf16.mxu0 0
  %1513 = vmatmul.mubr.bf16.gmra.mxu0 %v1464
  %v1514 = vpop.f32.mrf.mxu0
  %v1515 = vadd.f32 0.0, %v1514
  %v1516 = vpop.f32.mrf.mxu0
  %v1517 = vpop.f32.mrf.mxu0
  %v1518 = vadd.f32 0.0, %v1517
  %v1519 = vpop.f32.mrf.mxu0
  %1520 = vmatprep.mubr.bf16.mxu0 0
  %1521 = vmatmul.mubr.bf16.gmra.mxu0 %v1467
  %v1522 = vpop.f32.mrf.mxu0
  %v1523 = vadd.f32 0.0, %v1522
  %v1524 = vpop.f32.mrf.mxu0
  %v1525 = vpop.f32.mrf.mxu0
  %v1526 = vpop.f32.mrf.mxu0
  %1527 = vdwg.mxu0
  %v1528 = vmul.f32 %v1507, 0.35355338
  %v1529 = vmul.f32 %v1510, 0.35355338
  %v1530 = vmul.f32 %v1515, 0.35355338
  %v1531 = vmul.f32 %v1518, 0.35355338
  %v1532 = vmul.f32 %v1523, 0.35355338
  %v1533 = vadd.f32 %v1528, %v72
  %v1534 = vadd.f32 %v1529, %v89
  %v1535 = vadd.f32 %v1530, %v90
  %v1536 = vadd.f32 %v1531, %v91
  %v1537 = vadd.f32 %v1532, %v86
  %v1538 = vsel %vm853, %v1533, -inf
  %1539 = vmax.xlane.f32.xlu0 %v1538
  %v1540 = vpop.xlane.xlu0 %1539
  %v1541 = vsel %vm853, %v1534, -inf
  %1542 = vmax.xlane.f32.xlu0 %v1541
  %v1543 = vpop.xlane.xlu0 %1542
  %v1544 = vsel %vm853, %v1535, -inf
  %1545 = vmax.xlane.f32.xlu0 %v1544
  %v1546 = vpop.xlane.xlu0 %1545
  %v1547 = vsel %vm853, %v1536, -inf
  %1548 = vmax.xlane.f32.xlu0 %v1547
  %v1549 = vpop.xlane.xlu0 %1548
  %v1550 = vsel %vm853, %v1537, -inf
  %1551 = vmax.xlane.f32.xlu0 %v1550
  %v1552 = vpop.xlane.xlu0 %1551
  %v1553 = vsub.f32 %v1533, %v1540
  %v1554 = vsub.f32 %v1534, %v1543
  %v1555 = vsub.f32 %v1535, %v1546
  %v1556 = vsub.f32 %v1536, %v1549
  %v1557 = vsub.f32 %v1537, %v1552
  %v1558 = vmul.f32 %v1553, 1.442695
  %v1559 = vpow.pop %v1558
  %v1560 = vmul.f32 %v1554, 1.442695
  %v1561 = vpow.pop %v1560
  %v1562 = vmul.f32 %v1555, 1.442695
  %v1563 = vpow.pop %v1562
  %v1564 = vmul.f32 %v1556, 1.442695
  %v1565 = vpow.pop %v1564
  %v1566 = vmul.f32 %v1557, 1.442695
  %v1567 = vpow.pop %v1566
  %v1568 = vsel %vm853, %v1559, 0.0
  %1569 = vadd.xlane.f32.xlu0 %v1568
  %v1570 = vpop.xlane.xlu0 %1569
  %v1571 = vsel %vm853, %v1561, 0.0
  %1572 = vadd.xlane.f32.xlu0 %v1571
  %v1573 = vpop.xlane.xlu0 %1572
  %v1574 = vsel %vm853, %v1563, 0.0
  %1575 = vadd.xlane.f32.xlu0 %v1574
  %v1576 = vpop.xlane.xlu0 %1575
  %v1577 = vsel %vm853, %v1565, 0.0
  %1578 = vadd.xlane.f32.xlu0 %v1577
  %v1579 = vpop.xlane.xlu0 %1578
  %v1580 = vsel %vm853, %v1567, 0.0
  %1581 = vadd.xlane.f32.xlu0 %v1580
  %v1582 = vpop.xlane.xlu0 %1581
  %v1583 = vrcp.pop %v1570
  %v1584 = vrcp.pop %v1573
  %v1585 = vrcp.pop %v1576
  %v1586 = vrcp.pop %v1579
  %v1587 = vrcp.pop %v1582
  %v1588 = vmul.f32 %v1559, %v1583
  %v1589 = vmul.f32 %v1561, %v1584
  %v1590 = vmul.f32 %v1563, %v1585
  %v1591 = vmul.f32 %v1565, %v1586
  %v1592 = vmul.f32 %v1567, %v1587
  %v1593 = vpack.c.bf16 %v1589, %v1588
  %v1594 = vpack.c.bf16 %v1591, %v1590
  %v1595 = vpack.c.bf16 %v1592, %v1592
  %1596 = vrot.lane.b32.xlu0 %v1456, 64
  %v1597 = vpop.permute.xlu0 %1596
  %v1599 = vsel %vm853, %v1593, 0
  %v1602 = vsel %vm853, %v1594, 0
  %v1605 = vsel %vm853, %v1595, 0
  %v1608 = vsel %vm71, %v1597, 0
  %1610 = vmatprep.subr.bf16.mxu0 0
  %1611 = vmatpush1.bf16.msra.mxu0 0
  %1612 = vmatprep.subr.bf16.mxu0 0
  %1613 = vmatpush1.bf16.msra.mxu0 0
  %1614 = vmatprep.subr.bf16.mxu0 0
  %1615 = vmatpush1.bf16.msra.mxu0 0
  %1616 = vmatprep.subr.bf16.mxu0 0
  %1617 = vmatpush1.bf16.msra.mxu0 0
  %1618 = vmatprep.subr.bf16.mxu0 0
  %1619 = vmatpush1.bf16.msra.mxu0 0
  %1620 = vmatprep.subr.bf16.mxu0 0
  %1621 = vmatpush1.bf16.msra.mxu0 0
  %1622 = vmatprep.subr.bf16.mxu0 0
  %1623 = vmatpush1.bf16.msra.mxu0 0
  %1624 = vmatprep.subr.bf16.mxu0 0
  %1625 = vmatpush1.bf16.msra.mxu0 %v1608
  %1626 = vmatprep.subr.bf16.mxu0 0
  %1627 = vmatpush2.bf16.msra.mxu0 0
  %1628 = vmatprep.subr.bf16.mxu0 0
  %1629 = vmatpush2.bf16.msra.mxu0 0
  %1630 = vmatprep.subr.bf16.mxu0 0
  %1631 = vmatpush2.bf16.msra.mxu0 0
  %1632 = vmatprep.subr.bf16.mxu0 0
  %1633 = vmatpush2.bf16.msra.mxu0 0
  %1634 = vmatprep.subr.bf16.mxu0 0
  %1635 = vmatpush2.bf16.msra.mxu0 0
  %1636 = vmatprep.subr.bf16.mxu0 0
  %1637 = vmatpush2.bf16.msra.mxu0 0
  %1638 = vmatprep.subr.bf16.mxu0 0
  %1639 = vmatpush2.bf16.msra.mxu0 0
  %1640 = vmatprep.subr.bf16.mxu0 0
  %1641 = vmatpush2.bf16.msra.mxu0 0
  %1642 = vmatprep.mubr.bf16.mxu0 0
  %1643 = vmatmul.mubr.bf16.gmra.mxu0 %v1599
  %v1644 = vpop.f32.mrf.mxu0
  %v1645 = vadd.f32 0.0, %v1644
  %v1646 = vpop.f32.mrf.mxu0
  %v1647 = vpop.f32.mrf.mxu0
  %v1648 = vadd.f32 0.0, %v1647
  %v1649 = vpop.f32.mrf.mxu0
  %1650 = vmatprep.mubr.bf16.mxu0 0
  %1651 = vmatmul.mubr.bf16.gmra.mxu0 %v1602
  %v1652 = vpop.f32.mrf.mxu0
  %v1653 = vadd.f32 0.0, %v1652
  %v1654 = vpop.f32.mrf.mxu0
  %v1655 = vpop.f32.mrf.mxu0
  %v1656 = vadd.f32 0.0, %v1655
  %v1657 = vpop.f32.mrf.mxu0
  %1658 = vmatprep.mubr.bf16.mxu0 0
  %1659 = vmatmul.mubr.bf16.gmra.mxu0 %v1605
  %v1660 = vpop.f32.mrf.mxu0
  %v1661 = vadd.f32 0.0, %v1660
  %v1662 = vpop.f32.mrf.mxu0
  %v1663 = vpop.f32.mrf.mxu0
  %v1664 = vpop.f32.mrf.mxu0
  %1665 = vdwg.mxu0
  %v1666 = vmul.f32 %v1645, %v41
  %v1667 = vmul.f32 %v1648, %v58
  %v1668 = vmul.f32 %v1653, %v60
  %v1669 = vmul.f32 %v1656, %v62
  %v1670 = vmul.f32 %v1661, %v56
  %v1673 = vrot.slane %v1667, 2
  %v1674 = vrot.slane %v1668, 2
  %v1675 = vsel %vm61, %v1673, %v1674
  %v1678 = vadd.f32 %v1666, %v1675
  %v1679 = vadd.f32 %v1667, %v1674
  %v1681 = vrot.slane %v1668, 4
  %v1682 = vrot.slane %v1669, 4
  %v1683 = vsel %vm59, %v1681, %v1682
  %v1686 = vadd.f32 %v1678, %v1683
  %v1687 = vadd.f32 %v1679, %v1682
  %v1689 = vrot.slane %v1669, 6
  %v1690 = vrot.slane %v1670, 6
  %v1691 = vsel %vm57, %v1689, %v1690
  %v1694 = vadd.f32 %v1686, %v1691
  %v1695 = vadd.f32 %v1687, %v1690
  %s1696 = scalar_lea.vmem %s2, 16
  %v1697 = vld [vmem:[%s1696] sm:$0xf]
  %v1698 = vld [vmem:[%s1696 + $0x4] sm:$0xf]
  %v1699 = vld [vmem:[%s1696 + $0x8] sm:$0xf]
  %v1700 = vld [vmem:[%s1696 + $0xc] sm:$0xf]
  %v1701 = vpack.c.bf16 %v1695, %v1694
  %v1706 = vunpack.c.l.b16 %v1697
  %v1707 = vunpack.c.l.b16 %v1698
  %v1708 = vunpack.c.l.b16 %v1699
  %v1709 = vunpack.c.l.b16 %v1700
  %v1710 = vpack.c.b16 %v1707, %v1706
  %v1711 = vpack.c.b16 %v1709, %v1708
  %v1715 = vsel %vm636, %v1701, 0
  %1717 = vmatprep.subr.bf16.mxu0 0
  %1718 = vmatpush1.bf16.msra.mxu0 0
  %1719 = vmatprep.subr.bf16.mxu0 0
  %1720 = vmatpush1.bf16.msra.mxu0 0
  %1721 = vmatprep.subr.bf16.mxu0 0
  %1722 = vmatpush1.bf16.msra.mxu0 0
  %1723 = vmatprep.subr.bf16.mxu0 0
  %1724 = vmatpush1.bf16.msra.mxu0 0
  %1725 = vmatprep.subr.bf16.mxu0 0
  %1726 = vmatpush1.bf16.msra.mxu0 0
  %1727 = vmatprep.subr.bf16.mxu0 0
  %1728 = vmatpush1.bf16.msra.mxu0 0
  %1729 = vmatprep.subr.bf16.mxu0 0
  %1730 = vmatpush1.bf16.msra.mxu0 %v1711
  %1731 = vmatprep.subr.bf16.mxu0 0
  %1732 = vmatpush1.bf16.msra.mxu0 %v1710
  %1733 = vmatprep.subr.bf16.mxu0 0
  %1734 = vmatpush2.bf16.msra.mxu0 0
  %1735 = vmatprep.subr.bf16.mxu0 0
  %1736 = vmatpush2.bf16.msra.mxu0 0
  %1737 = vmatprep.subr.bf16.mxu0 0
  %1738 = vmatpush2.bf16.msra.mxu0 0
  %1739 = vmatprep.subr.bf16.mxu0 0
  %1740 = vmatpush2.bf16.msra.mxu0 0
  %1741 = vmatprep.subr.bf16.mxu0 0
  %1742 = vmatpush2.bf16.msra.mxu0 0
  %1743 = vmatprep.subr.bf16.mxu0 0
  %1744 = vmatpush2.bf16.msra.mxu0 0
  %1745 = vmatprep.subr.bf16.mxu0 0
  %1746 = vmatpush2.bf16.msra.mxu0 0
  %1747 = vmatprep.subr.bf16.mxu0 0
  %1748 = vmatpush2.bf16.msra.mxu0 0
  %1749 = vmatprep.mubr.bf16.mxu0 0
  %1750 = vmatmul.mubr.bf16.gmra.mxu0 %v1715
  %v1751 = vpop.f32.mrf.mxu0
  %v1752 = vadd.f32 0.0, %v1751
  %v1753 = vpop.f32.mrf.mxu0
  %v1754 = vpop.f32.mrf.mxu0
  %v1755 = vadd.f32 0.0, %v1754
  %v1756 = vpop.f32.mrf.mxu0
  %1757 = vdwg.mxu0
  %v1758 = vadd.f32 %v1319, %v1752
  %v1759 = vadd.f32 %v1320, %v1755
  %v1760 = vld [vmem:[%s6 + $0x1d] sm:$0x1]
  %v1761 = vlaneseq
  %v1762 = vshrl.u32 %v1761, 7
  %v1763 = vsub.s32 0, %v1762
  %v1764 = vrot.slane %v1760, %v1763
  %v1765 = vadd.f32 %v1758, %v1764
  %v1766 = vadd.f32 %v1759, %v1764
  %v1767 = vld [vmem:[%s6 + $0x1e] sm:$0x1]
  %v1768 = vld [vmem:[%s6 + $0x1f] sm:$0x1]
  %v1769 = vsel %vm636, %v1765, 0.0
  %1770 = vadd.xlane.f32.xlu0 %v1769
  %v1771 = vpop.xlane.xlu0 %1770
  %v1772 = vsel %vm640, %v1766, 0.0
  %1773 = vadd.xlane.f32.xlu0 %v1772
  %v1774 = vpop.xlane.xlu0 %1773
  %v1775 = vmul.f32 %v1771, %v644
  %v1776 = vmul.f32 %v1774, %v644
  %v1777 = vsub.f32 %v1765, %v1775
  %v1778 = vsub.f32 %v1766, %v1776
  %v1779 = vmul.f32 %v1777, %v1777
  %v1780 = vmul.f32 %v1778, %v1778
  %v1781 = vsel %vm636, %v1779, 0.0
  %1782 = vadd.xlane.f32.xlu0 %v1781
  %v1783 = vpop.xlane.xlu0 %1782
  %v1784 = vsel %vm640, %v1780, 0.0
  %1785 = vadd.xlane.f32.xlu0 %v1784
  %v1786 = vpop.xlane.xlu0 %1785
  %v1787 = vmul.f32 %v1783, %v644
  %v1788 = vmul.f32 %v1786, %v644
  %v1789 = vadd.f32 %v1787, 1e-06
  %v1790 = vadd.f32 %v1788, 1e-06
  %v1791 = vrsqrt.pop %v1789
  %v1792 = vrsqrt.pop %v1790
  %v1793 = vmul.f32 %v1777, %v1791
  %v1794 = vmul.f32 %v1778, %v1792
  %v1795 = vlaneseq
  %v1796 = vshrl.u32 %v1795, 7
  %v1797 = vsub.s32 0, %v1796
  %v1798 = vrot.slane %v1767, %v1797
  %v1799 = vmul.f32 %v1793, %v1798
  %v1800 = vmul.f32 %v1794, %v1798
  %v1801 = vlaneseq
  %v1802 = vshrl.u32 %v1801, 7
  %v1803 = vsub.s32 0, %v1802
  %v1804 = vrot.slane %v1768, %v1803
  %v1805 = vadd.f32 %v1799, %v1804
  %v1806 = vadd.f32 %v1800, %v1804
  %s1807 = scalar_lea.vmem %s3, 16
  %v1808 = vld [vmem:[%s1807] sm:$0xf]
  %v1809 = vld [vmem:[%s1807 + $0x4] sm:$0xf]
  %v1810 = vld [vmem:[%s1807 + $0x8] sm:$0xf]
  %v1811 = vld [vmem:[%s1807 + $0xc] sm:$0xf]
  %v1812 = vpack.c.bf16 %v1806, %v1805
  %v1813 = vld [vmem:[%s6 + $0x20] sm:$0x1]
  %v1814 = vlaneseq
  %v1815 = vshrl.u32 %v1814, 7
  %v1816 = vsub.s32 0, %v1815
  %v1817 = vrot.slane %v1813, %v1816
  %v1822 = vunpack.c.l.b16 %v1808
  %v1823 = vunpack.c.l.b16 %v1809
  %v1824 = vunpack.c.l.b16 %v1810
  %v1825 = vunpack.c.l.b16 %v1811
  %v1826 = vpack.c.b16 %v1823, %v1822
  %v1827 = vpack.c.b16 %v1825, %v1824
  %v1831 = vsel %vm636, %v1812, 0
  %1833 = vmatprep.subr.bf16.mxu0 0
  %1834 = vmatpush1.bf16.msra.mxu0 0
  %1835 = vmatprep.subr.bf16.mxu0 0
  %1836 = vmatpush1.bf16.msra.mxu0 0
  %1837 = vmatprep.subr.bf16.mxu0 0
  %1838 = vmatpush1.bf16.msra.mxu0 0
  %1839 = vmatprep.subr.bf16.mxu0 0
  %1840 = vmatpush1.bf16.msra.mxu0 0
  %1841 = vmatprep.subr.bf16.mxu0 0
  %1842 = vmatpush1.bf16.msra.mxu0 0
  %1843 = vmatprep.subr.bf16.mxu0 0
  %1844 = vmatpush1.bf16.msra.mxu0 0
  %1845 = vmatprep.subr.bf16.mxu0 0
  %1846 = vmatpush1.bf16.msra.mxu0 %v1827
  %1847 = vmatprep.subr.bf16.mxu0 0
  %1848 = vmatpush1.bf16.msra.mxu0 %v1826
  %1849 = vmatprep.subr.bf16.mxu0 0
  %1850 = vmatpush2.bf16.msra.mxu0 0
  %1851 = vmatprep.subr.bf16.mxu0 0
  %1852 = vmatpush2.bf16.msra.mxu0 0
  %1853 = vmatprep.subr.bf16.mxu0 0
  %1854 = vmatpush2.bf16.msra.mxu0 0
  %1855 = vmatprep.subr.bf16.mxu0 0
  %1856 = vmatpush2.bf16.msra.mxu0 0
  %1857 = vmatprep.subr.bf16.mxu0 0
  %1858 = vmatpush2.bf16.msra.mxu0 0
  %1859 = vmatprep.subr.bf16.mxu0 0
  %1860 = vmatpush2.bf16.msra.mxu0 0
  %1861 = vmatprep.subr.bf16.mxu0 0
  %1862 = vmatpush2.bf16.msra.mxu0 0
  %1863 = vmatprep.subr.bf16.mxu0 0
  %1864 = vmatpush2.bf16.msra.mxu0 0
  %1865 = vmatprep.mubr.bf16.mxu0 0
  %1866 = vmatmul.mubr.bf16.gmra.mxu0 %v1831
  %v1867 = vpop.f32.mrf.mxu0
  %v1868 = vadd.f32 %v1817, %v1867
  %v1869 = vpop.f32.mrf.mxu0
  %v1870 = vpop.f32.mrf.mxu0
  %v1871 = vadd.f32 %v1817, %v1870
  %v1872 = vpop.f32.mrf.mxu0
  %1873 = vdwg.mxu0
  %v1874 = vmul.f32 %v1868, %v1868
  %v1875 = vmul.f32 %v1871, %v1871
  %v1876 = vmul.f32 %v1868, %v1874
  %v1877 = vmul.f32 %v1871, %v1875
  %v1878 = vmul.f32 %v1876, 0.044715
  %v1879 = vmul.f32 %v1877, 0.044715
  %v1880 = vadd.f32 %v1868, %v1878
  %v1881 = vadd.f32 %v1871, %v1879
  %v1882 = vmul.f32 %v1880, 0.7978846
  %v1883 = vmul.f32 %v1881, 0.7978846
  %v1884 = vtanh.pop %v1882
  %v1885 = vtanh.pop %v1883
  %v1886 = vadd.f32 %v1884, 1.0
  %v1887 = vadd.f32 %v1885, 1.0
  %v1888 = vmul.f32 %v1886, 0.5
  %v1889 = vmul.f32 %v1887, 0.5
  %v1890 = vmul.f32 %v1868, %v1888
  %v1891 = vmul.f32 %v1871, %v1889
  %s1892 = scalar_lea.vmem %s4, 64
  %v1893 = vld [vmem:[%s1892] sm:$0xf]
  %v1894 = vld [vmem:[%s1892 + $0x4] sm:$0xf]
  %v1895 = vld [vmem:[%s1892 + $0x8] sm:$0xf]
  %v1896 = vld [vmem:[%s1892 + $0xc] sm:$0xf]
  %v1897 = vld [vmem:[%s1892 + $0x10] sm:$0xf]
  %v1898 = vld [vmem:[%s1892 + $0x14] sm:$0xf]
  %v1899 = vld [vmem:[%s1892 + $0x18] sm:$0xf]
  %v1900 = vld [vmem:[%s1892 + $0x1c] sm:$0xf]
  %v1901 = vld [vmem:[%s1892 + $0x20] sm:$0xf]
  %v1902 = vld [vmem:[%s1892 + $0x24] sm:$0xf]
  %v1903 = vld [vmem:[%s1892 + $0x28] sm:$0xf]
  %v1904 = vld [vmem:[%s1892 + $0x2c] sm:$0xf]
  %v1905 = vld [vmem:[%s1892 + $0x30] sm:$0xf]
  %v1906 = vld [vmem:[%s1892 + $0x34] sm:$0xf]
  %v1907 = vld [vmem:[%s1892 + $0x38] sm:$0xf]
  %v1908 = vld [vmem:[%s1892 + $0x3c] sm:$0xf]
  %v1909 = vpack.c.bf16 %v1891, %v1890
  %v1926 = vunpack.c.l.b16 %v1893
  %v1927 = vunpack.c.l.b16 %v1894
  %v1928 = vunpack.c.l.b16 %v1895
  %v1929 = vunpack.c.l.b16 %v1896
  %v1930 = vunpack.c.l.b16 %v1897
  %v1931 = vunpack.c.l.b16 %v1898
  %v1932 = vunpack.c.l.b16 %v1899
  %v1933 = vunpack.c.l.b16 %v1900
  %v1934 = vunpack.c.l.b16 %v1901
  %v1935 = vunpack.c.l.b16 %v1902
  %v1936 = vunpack.c.l.b16 %v1903
  %v1937 = vunpack.c.l.b16 %v1904
  %v1938 = vunpack.c.l.b16 %v1905
  %v1939 = vunpack.c.l.b16 %v1906
  %v1940 = vunpack.c.l.b16 %v1907
  %v1941 = vunpack.c.l.b16 %v1908
  %v1942 = vpack.c.b16 %v1927, %v1926
  %v1943 = vpack.c.b16 %v1929, %v1928
  %v1944 = vpack.c.b16 %v1931, %v1930
  %v1945 = vpack.c.b16 %v1933, %v1932
  %v1946 = vpack.c.b16 %v1935, %v1934
  %v1947 = vpack.c.b16 %v1937, %v1936
  %v1948 = vpack.c.b16 %v1939, %v1938
  %v1949 = vpack.c.b16 %v1941, %v1940
  %1958 = vmatprep.subr.bf16.mxu0 0
  %1959 = vmatpush1.bf16.msra.mxu0 %v1949
  %1960 = vmatprep.subr.bf16.mxu0 0
  %1961 = vmatpush1.bf16.msra.mxu0 %v1948
  %1962 = vmatprep.subr.bf16.mxu0 0
  %1963 = vmatpush1.bf16.msra.mxu0 %v1947
  %1964 = vmatprep.subr.bf16.mxu0 0
  %1965 = vmatpush1.bf16.msra.mxu0 %v1946
  %1966 = vmatprep.subr.bf16.mxu0 0
  %1967 = vmatpush1.bf16.msra.mxu0 %v1945
  %1968 = vmatprep.subr.bf16.mxu0 0
  %1969 = vmatpush1.bf16.msra.mxu0 %v1944
  %1970 = vmatprep.subr.bf16.mxu0 0
  %1971 = vmatpush1.bf16.msra.mxu0 %v1943
  %1972 = vmatprep.subr.bf16.mxu0 0
  %1973 = vmatpush1.bf16.msra.mxu0 %v1942
  %1974 = vmatprep.subr.bf16.mxu0 0
  %1975 = vmatpush2.bf16.msra.mxu0 0
  %1976 = vmatprep.subr.bf16.mxu0 0
  %1977 = vmatpush2.bf16.msra.mxu0 0
  %1978 = vmatprep.subr.bf16.mxu0 0
  %1979 = vmatpush2.bf16.msra.mxu0 0
  %1980 = vmatprep.subr.bf16.mxu0 0
  %1981 = vmatpush2.bf16.msra.mxu0 0
  %1982 = vmatprep.subr.bf16.mxu0 0
  %1983 = vmatpush2.bf16.msra.mxu0 0
  %1984 = vmatprep.subr.bf16.mxu0 0
  %1985 = vmatpush2.bf16.msra.mxu0 0
  %1986 = vmatprep.subr.bf16.mxu0 0
  %1987 = vmatpush2.bf16.msra.mxu0 0
  %1988 = vmatprep.subr.bf16.mxu0 0
  %1989 = vmatpush2.bf16.msra.mxu0 0
  %1990 = vmatprep.mubr.bf16.mxu0 0
  %1991 = vmatmul.mubr.bf16.gmra.mxu0 %v1909
  %v1992 = vpop.f32.mrf.mxu0
  %v1993 = vadd.f32 0.0, %v1992
  %v1994 = vpop.f32.mrf.mxu0
  %v1995 = vpop.f32.mrf.mxu0
  %v1996 = vadd.f32 0.0, %v1995
  %v1997 = vpop.f32.mrf.mxu0
  %1998 = vdwg.mxu0
  %v1999 = vadd.f32 %v1765, %v1993
  %v2000 = vadd.f32 %v1766, %v1996
  %v2001 = vld [vmem:[%s6 + $0x21] sm:$0x1]
  %v2002 = vlaneseq
  %v2003 = vshrl.u32 %v2002, 7
  %v2004 = vsub.s32 0, %v2003
  %v2005 = vrot.slane %v2001, %v2004
  %v2006 = vadd.f32 %v1999, %v2005
  %v2007 = vadd.f32 %v2000, %v2005
  %v2008 = vld [vmem:[%s6 + $0x7] sm:$0x1]
  %v2009 = vld [vmem:[%s6 + $0x8] sm:$0x1]
  %v2010 = vsel %vm636, %v2006, 0.0
  %2011 = vadd.xlane.f32.xlu0 %v2010
  %v2012 = vpop.xlane.xlu0 %2011
  %v2013 = vsel %vm640, %v2007, 0.0
  %2014 = vadd.xlane.f32.xlu0 %v2013
  %v2015 = vpop.xlane.xlu0 %2014
  %v2016 = vmul.f32 %v2012, %v644
  %v2017 = vmul.f32 %v2015, %v644
  %v2018 = vsub.f32 %v2006, %v2016
  %v2019 = vsub.f32 %v2007, %v2017
  %v2020 = vmul.f32 %v2018, %v2018
  %v2021 = vmul.f32 %v2019, %v2019
  %v2022 = vsel %vm636, %v2020, 0.0
  %2023 = vadd.xlane.f32.xlu0 %v2022
  %v2024 = vpop.xlane.xlu0 %2023
  %v2025 = vsel %vm640, %v2021, 0.0
  %2026 = vadd.xlane.f32.xlu0 %v2025
  %v2027 = vpop.xlane.xlu0 %2026
  %v2028 = vmul.f32 %v2024, %v644
  %v2029 = vmul.f32 %v2027, %v644
  %v2030 = vadd.f32 %v2028, 1e-06
  %v2031 = vadd.f32 %v2029, 1e-06
  %v2032 = vrsqrt.pop %v2030
  %v2033 = vrsqrt.pop %v2031
  %v2034 = vmul.f32 %v2018, %v2032
  %v2035 = vmul.f32 %v2019, %v2033
  %v2036 = vlaneseq
  %v2037 = vshrl.u32 %v2036, 7
  %v2038 = vsub.s32 0, %v2037
  %v2039 = vrot.slane %v2008, %v2038
  %v2040 = vmul.f32 %v2034, %v2039
  %v2041 = vmul.f32 %v2035, %v2039
  %v2042 = vlaneseq
  %v2043 = vshrl.u32 %v2042, 7
  %v2044 = vsub.s32 0, %v2043
  %v2045 = vrot.slane %v2009, %v2044
  %v2046 = vadd.f32 %v2040, %v2045
  %v2047 = vadd.f32 %v2041, %v2045
  %v2048 = vld [vmem:[%s7] sm:$0xff]
  %v2049 = vld [vmem:[%s7 + $0x8] sm:$0xff]
  %v2050 = vld [vmem:[%s7 + $0x10] sm:$0xff]
  %v2051 = vld [vmem:[%s7 + $0x18] sm:$0xff]
  %v2052 = vld [vmem:[%s7 + $0x20] sm:$0xff]
  %v2053 = vld [vmem:[%s7 + $0x28] sm:$0xff]
  %v2054 = vld [vmem:[%s7 + $0x30] sm:$0xff]
  %v2055 = vld [vmem:[%s7 + $0x38] sm:$0xff]
  %v2057 = vsel %vm636, %v2046, 0
  %v2060 = vsel %vm636, %v2047, 0
  %v2063 = vsel %vm636, %v2048, 0
  %v2066 = vsel %vm636, %v2049, 0
  %v2069 = vsel %vm636, %v2050, 0
  %v2072 = vsel %vm636, %v2051, 0
  %v2075 = vsel %vm636, %v2052, 0
  %v2078 = vsel %vm636, %v2053, 0
  %v2081 = vsel %vm636, %v2054, 0
  %v2084 = vsel %vm636, %v2055, 0
  %2086 = vmatprep.subr.mxu0 0.0
  %2087 = vmatpush1.xpose.msra.mxu0 0.0
  %2088 = vmatprep.subr.mxu0 0.0
  %2089 = vmatpush1.xpose.msra.mxu0 0.0
  %2090 = vmatprep.subr.mxu0 0.0
  %2091 = vmatpush1.xpose.msra.mxu0 0.0
  %2092 = vmatprep.subr.mxu0 0.0
  %2093 = vmatpush1.xpose.msra.mxu0 0.0
  %2094 = vmatprep.subr.mxu0 0.0
  %2095 = vmatpush1.xpose.msra.mxu0 0.0
  %2096 = vmatprep.subr.mxu0 0.0
  %2097 = vmatpush1.xpose.msra.mxu0 0.0
  %2098 = vmatprep.subr.mxu0 0.0
  %2099 = vmatpush1.xpose.msra.mxu0 0.0
  %2100 = vmatprep.subr.mxu0 0.0
  %2101 = vmatpush1.xpose.msra.mxu0 0.0
  %2102 = vmatprep.subr.mxu0 0.0
  %v2103 = vand.u32 %v2084, 4294901760
  %2104 = vmatpush1.xpose.msra.mxu0 %v2103
  %2105 = vmatprep.subr.mxu0 0.0
  %v2106 = vand.u32 %v2081, 4294901760
  %2107 = vmatpush1.xpose.msra.mxu0 %v2106
  %2108 = vmatprep.subr.mxu0 0.0
  %v2109 = vand.u32 %v2078, 4294901760
  %2110 = vmatpush1.xpose.msra.mxu0 %v2109
  %2111 = vmatprep.subr.mxu0 0.0
  %v2112 = vand.u32 %v2075, 4294901760
  %2113 = vmatpush1.xpose.msra.mxu0 %v2112
  %2114 = vmatprep.subr.mxu0 0.0
  %v2115 = vand.u32 %v2072, 4294901760
  %2116 = vmatpush1.xpose.msra.mxu0 %v2115
  %2117 = vmatprep.subr.mxu0 0.0
  %v2118 = vand.u32 %v2069, 4294901760
  %2119 = vmatpush1.xpose.msra.mxu0 %v2118
  %2120 = vmatprep.subr.mxu0 0.0
  %v2121 = vand.u32 %v2066, 4294901760
  %2122 = vmatpush1.xpose.msra.mxu0 %v2121
  %2123 = vmatprep.subr.mxu0 0.0
  %v2124 = vand.u32 %v2063, 4294901760
  %2125 = vmatpush1.xpose.msra.mxu0 %v2124
  %2126 = vmatprep.subr.mxu0 0.0
  %2127 = vmatpush2.xpose.msra.mxu0 0.0
  %2128 = vmatprep.subr.mxu0 0.0
  %2129 = vmatpush2.xpose.msra.mxu0 0.0
  %2130 = vmatprep.subr.mxu0 0.0
  %2131 = vmatpush2.xpose.msra.mxu0 0.0
  %2132 = vmatprep.subr.mxu0 0.0
  %2133 = vmatpush2.xpose.msra.mxu0 0.0
  %2134 = vmatprep.subr.mxu0 0.0
  %2135 = vmatpush2.xpose.msra.mxu0 0.0
  %2136 = vmatprep.subr.mxu0 0.0
  %2137 = vmatpush2.xpose.msra.mxu0 0.0
  %2138 = vmatprep.subr.mxu0 0.0
  %2139 = vmatpush2.xpose.msra.mxu0 0.0
  %2140 = vmatprep.subr.mxu0 0.0
  %2141 = vmatpush2.xpose.msra.mxu0 0.0
  %2142 = vmatprep.subr.mxu0 0.0
  %2143 = vmatpush2.xpose.msra.mxu0 0.0
  %2144 = vmatprep.subr.mxu0 0.0
  %2145 = vmatpush2.xpose.msra.mxu0 0.0
  %2146 = vmatprep.subr.mxu0 0.0
  %2147 = vmatpush2.xpose.msra.mxu0 0.0
  %2148 = vmatprep.subr.mxu0 0.0
  %2149 = vmatpush2.xpose.msra.mxu0 0.0
  %2150 = vmatprep.subr.mxu0 0.0
  %2151 = vmatpush2.xpose.msra.mxu0 0.0
  %2152 = vmatprep.subr.mxu0 0.0
  %2153 = vmatpush2.xpose.msra.mxu0 0.0
  %2154 = vmatprep.subr.mxu0 0.0
  %2155 = vmatpush2.xpose.msra.mxu0 0.0
  %2156 = vmatprep.subr.mxu0 0.0
  %2157 = vmatpush2.xpose.msra.mxu0 0.0
  %2158 = vmatprep.mubr.f32.mxu0 0.0
  %v2159 = vand.u32 %v2057, 4294901760
  %v2160 = vsub.f32 %v2057, %v2159
  %v2161 = vand.u32 %v2160, 4294901760
  %v2162 = vsub.f32 %v2160, %v2161
  %v2163 = vand.u32 %v2162, 4294901760
  %2164 = vmatmul.mubr.f32.gmra.mxu0 %v2163
  %v2165 = vpop.f32.mrf.mxu0
  %v2166 = vadd.f32 0.0, %v2165
  %v2167 = vpop.f32.mrf.mxu0
  %2168 = vmatprep.mubr.f32.mxu0 0.0
  %v2169 = vand.u32 %v2060, 4294901760
  %v2170 = vsub.f32 %v2060, %v2169
  %v2171 = vand.u32 %v2170, 4294901760
  %v2172 = vsub.f32 %v2170, %v2171
  %v2173 = vand.u32 %v2172, 4294901760
  %2174 = vmatmul.mubr.f32.gmra.mxu0 %v2173
  %v2175 = vpop.f32.mrf.mxu0
  %v2176 = vadd.f32 0.0, %v2175
  %v2177 = vpop.f32.mrf.mxu0
  %2178 = vdwg.mxu0
  %2179 = vmatprep.subr.mxu0 0.0
  %2180 = vmatpush1.xpose.msra.mxu0 0.0
  %2181 = vmatprep.subr.mxu0 0.0
  %2182 = vmatpush1.xpose.msra.mxu0 0.0
  %2183 = vmatprep.subr.mxu0 0.0
  %2184 = vmatpush1.xpose.msra.mxu0 0.0
  %2185 = vmatprep.subr.mxu0 0.0
  %2186 = vmatpush1.xpose.msra.mxu0 0.0
  %2187 = vmatprep.subr.mxu0 0.0
  %2188 = vmatpush1.xpose.msra.mxu0 0.0
  %2189 = vmatprep.subr.mxu0 0.0
  %2190 = vmatpush1.xpose.msra.mxu0 0.0
  %2191 = vmatprep.subr.mxu0 0.0
  %2192 = vmatpush1.xpose.msra.mxu0 0.0
  %2193 = vmatprep.subr.mxu0 0.0
  %2194 = vmatpush1.xpose.msra.mxu0 0.0
  %2195 = vmatprep.subr.mxu0 0.0
  %v2196 = vand.u32 %v2084, 4294901760
  %v2197 = vsub.f32 %v2084, %v2196
  %v2198 = vand.u32 %v2197, 4294901760
  %v2199 = vsub.f32 %v2197, %v2198
  %v2200 = vand.u32 %v2199, 4294901760
  %2201 = vmatpush1.xpose.msra.mxu0 %v2200
  %2202 = vmatprep.subr.mxu0 0.0
  %v2203 = vand.u32 %v2081, 4294901760
  %v2204 = vsub.f32 %v2081, %v2203
  %v2205 = vand.u32 %v2204, 4294901760
  %v2206 = vsub.f32 %v2204, %v2205
  %v2207 = vand.u32 %v2206, 4294901760
  %2208 = vmatpush1.xpose.msra.mxu0 %v2207
  %2209 = vmatprep.subr.mxu0 0.0
  %v2210 = vand.u32 %v2078, 4294901760
  %v2211 = vsub.f32 %v2078, %v2210
  %v2212 = vand.u32 %v2211, 4294901760
  %v2213 = vsub.f32 %v2211, %v2212
  %v2214 = vand.u32 %v2213, 4294901760
  %2215 = vmatpush1.xpose.msra.mxu0 %v2214
  %2216 = vmatprep.subr.mxu0 0.0
  %v2217 = vand.u32 %v2075, 4294901760
  %v2218 = vsub.f32 %v2075, %v2217
  %v2219 = vand.u32 %v2218, 4294901760
  %v2220 = vsub.f32 %v2218, %v2219
  %v2221 = vand.u32 %v2220, 4294901760
  %2222 = vmatpush1.xpose.msra.mxu0 %v2221
  %2223 = vmatprep.subr.mxu0 0.0
  %v2224 = vand.u32 %v2072, 4294901760
  %v2225 = vsub.f32 %v2072, %v2224
  %v2226 = vand.u32 %v2225, 4294901760
  %v2227 = vsub.f32 %v2225, %v2226
  %v2228 = vand.u32 %v2227, 4294901760
  %2229 = vmatpush1.xpose.msra.mxu0 %v2228
  %2230 = vmatprep.subr.mxu0 0.0
  %v2231 = vand.u32 %v2069, 4294901760
  %v2232 = vsub.f32 %v2069, %v2231
  %v2233 = vand.u32 %v2232, 4294901760
  %v2234 = vsub.f32 %v2232, %v2233
  %v2235 = vand.u32 %v2234, 4294901760
  %2236 = vmatpush1.xpose.msra.mxu0 %v2235
  %2237 = vmatprep.subr.mxu0 0.0
  %v2238 = vand.u32 %v2066, 4294901760
  %v2239 = vsub.f32 %v2066, %v2238
  %v2240 = vand.u32 %v2239, 4294901760
  %v2241 = vsub.f32 %v2239, %v2240
  %v2242 = vand.u32 %v2241, 4294901760
  %2243 = vmatpush1.xpose.msra.mxu0 %v2242
  %2244 = vmatprep.subr.mxu0 0.0
  %v2245 = vand.u32 %v2063, 4294901760
  %v2246 = vsub.f32 %v2063, %v2245
  %v2247 = vand.u32 %v2246, 4294901760
  %v2248 = vsub.f32 %v2246, %v2247
  %v2249 = vand.u32 %v2248, 4294901760
  %2250 = vmatpush1.xpose.msra.mxu0 %v2249
  %2251 = vmatprep.subr.mxu0 0.0
  %2252 = vmatpush2.xpose.msra.mxu0 0.0
  %2253 = vmatprep.subr.mxu0 0.0
  %2254 = vmatpush2.xpose.msra.mxu0 0.0
  %2255 = vmatprep.subr.mxu0 0.0
  %2256 = vmatpush2.xpose.msra.mxu0 0.0
  %2257 = vmatprep.subr.mxu0 0.0
  %2258 = vmatpush2.xpose.msra.mxu0 0.0
  %2259 = vmatprep.subr.mxu0 0.0
  %2260 = vmatpush2.xpose.msra.mxu0 0.0
  %2261 = vmatprep.subr.mxu0 0.0
  %2262 = vmatpush2.xpose.msra.mxu0 0.0
  %2263 = vmatprep.subr.mxu0 0.0
  %2264 = vmatpush2.xpose.msra.mxu0 0.0
  %2265 = vmatprep.subr.mxu0 0.0
  %2266 = vmatpush2.xpose.msra.mxu0 0.0
  %2267 = vmatprep.subr.mxu0 0.0
  %2268 = vmatpush2.xpose.msra.mxu0 0.0
  %2269 = vmatprep.subr.mxu0 0.0
  %2270 = vmatpush2.xpose.msra.mxu0 0.0
  %2271 = vmatprep.subr.mxu0 0.0
  %2272 = vmatpush2.xpose.msra.mxu0 0.0
  %2273 = vmatprep.subr.mxu0 0.0
  %2274 = vmatpush2.xpose.msra.mxu0 0.0
  %2275 = vmatprep.subr.mxu0 0.0
  %2276 = vmatpush2.xpose.msra.mxu0 0.0
  %2277 = vmatprep.subr.mxu0 0.0
  %2278 = vmatpush2.xpose.msra.mxu0 0.0
  %2279 = vmatprep.subr.mxu0 0.0
  %2280 = vmatpush2.xpose.msra.mxu0 0.0
  %2281 = vmatprep.subr.mxu0 0.0
  %2282 = vmatpush2.xpose.msra.mxu0 0.0
  %2283 = vmatprep.mubr.f32.mxu0 0.0
  %v2284 = vand.u32 %v2057, 4294901760
  %2285 = vmatmul.mubr.f32.gmra.mxu0 %v2284
  %v2286 = vpop.f32.mrf.mxu0
  %v2287 = vadd.f32 %v2166, %v2286
  %v2288 = vpop.f32.mrf.mxu0
  %2289 = vmatprep.mubr.f32.mxu0 0.0
  %v2290 = vand.u32 %v2060, 4294901760
  %2291 = vmatmul.mubr.f32.gmra.mxu0 %v2290
  %v2292 = vpop.f32.mrf.mxu0
  %v2293 = vadd.f32 %v2176, %v2292
  %v2294 = vpop.f32.mrf.mxu0
  %2295 = vdwg.mxu0
  %2296 = vmatprep.subr.mxu0 0.0
  %2297 = vmatpush1.xpose.msra.mxu0 0.0
  %2298 = vmatprep.subr.mxu0 0.0
  %2299 = vmatpush1.xpose.msra.mxu0 0.0
  %2300 = vmatprep.subr.mxu0 0.0
  %2301 = vmatpush1.xpose.msra.mxu0 0.0
  %2302 = vmatprep.subr.mxu0 0.0
  %2303 = vmatpush1.xpose.msra.mxu0 0.0
  %2304 = vmatprep.subr.mxu0 0.0
  %2305 = vmatpush1.xpose.msra.mxu0 0.0
  %2306 = vmatprep.subr.mxu0 0.0
  %2307 = vmatpush1.xpose.msra.mxu0 0.0
  %2308 = vmatprep.subr.mxu0 0.0
  %2309 = vmatpush1.xpose.msra.mxu0 0.0
  %2310 = vmatprep.subr.mxu0 0.0
  %2311 = vmatpush1.xpose.msra.mxu0 0.0
  %2312 = vmatprep.subr.mxu0 0.0
  %v2313 = vand.u32 %v2084, 4294901760
  %v2314 = vsub.f32 %v2084, %v2313
  %2315 = vmatpush1.xpose.msra.mxu0 %v2314
  %2316 = vmatprep.subr.mxu0 0.0
  %v2317 = vand.u32 %v2081, 4294901760
  %v2318 = vsub.f32 %v2081, %v2317
  %2319 = vmatpush1.xpose.msra.mxu0 %v2318
  %2320 = vmatprep.subr.mxu0 0.0
  %v2321 = vand.u32 %v2078, 4294901760
  %v2322 = vsub.f32 %v2078, %v2321
  %2323 = vmatpush1.xpose.msra.mxu0 %v2322
  %2324 = vmatprep.subr.mxu0 0.0
  %v2325 = vand.u32 %v2075, 4294901760
  %v2326 = vsub.f32 %v2075, %v2325
  %2327 = vmatpush1.xpose.msra.mxu0 %v2326
  %2328 = vmatprep.subr.mxu0 0.0
  %v2329 = vand.u32 %v2072, 4294901760
  %v2330 = vsub.f32 %v2072, %v2329
  %2331 = vmatpush1.xpose.msra.mxu0 %v2330
  %2332 = vmatprep.subr.mxu0 0.0
  %v2333 = vand.u32 %v2069, 4294901760
  %v2334 = vsub.f32 %v2069, %v2333
  %2335 = vmatpush1.xpose.msra.mxu0 %v2334
  %2336 = vmatprep.subr.mxu0 0.0
  %v2337 = vand.u32 %v2066, 4294901760
  %v2338 = vsub.f32 %v2066, %v2337
  %2339 = vmatpush1.xpose.msra.mxu0 %v2338
  %2340 = vmatprep.subr.mxu0 0.0
  %v2341 = vand.u32 %v2063, 4294901760
  %v2342 = vsub.f32 %v2063, %v2341
  %2343 = vmatpush1.xpose.msra.mxu0 %v2342
  %2344 = vmatprep.subr.mxu0 0.0
  %2345 = vmatpush2.xpose.msra.mxu0 0.0
  %2346 = vmatprep.subr.mxu0 0.0
  %2347 = vmatpush2.xpose.msra.mxu0 0.0
  %2348 = vmatprep.subr.mxu0 0.0
  %2349 = vmatpush2.xpose.msra.mxu0 0.0
  %2350 = vmatprep.subr.mxu0 0.0
  %2351 = vmatpush2.xpose.msra.mxu0 0.0
  %2352 = vmatprep.subr.mxu0 0.0
  %2353 = vmatpush2.xpose.msra.mxu0 0.0
  %2354 = vmatprep.subr.mxu0 0.0
  %2355 = vmatpush2.xpose.msra.mxu0 0.0
  %2356 = vmatprep.subr.mxu0 0.0
  %2357 = vmatpush2.xpose.msra.mxu0 0.0
  %2358 = vmatprep.subr.mxu0 0.0
  %2359 = vmatpush2.xpose.msra.mxu0 0.0
  %2360 = vmatprep.subr.mxu0 0.0
  %2361 = vmatpush2.xpose.msra.mxu0 0.0
  %2362 = vmatprep.subr.mxu0 0.0
  %2363 = vmatpush2.xpose.msra.mxu0 0.0
  %2364 = vmatprep.subr.mxu0 0.0
  %2365 = vmatpush2.xpose.msra.mxu0 0.0
  %2366 = vmatprep.subr.mxu0 0.0
  %2367 = vmatpush2.xpose.msra.mxu0 0.0
  %2368 = vmatprep.subr.mxu0 0.0
  %2369 = vmatpush2.xpose.msra.mxu0 0.0
  %2370 = vmatprep.subr.mxu0 0.0
  %2371 = vmatpush2.xpose.msra.mxu0 0.0
  %2372 = vmatprep.subr.mxu0 0.0
  %2373 = vmatpush2.xpose.msra.mxu0 0.0
  %2374 = vmatprep.subr.mxu0 0.0
  %2375 = vmatpush2.xpose.msra.mxu0 0.0
  %2376 = vmatprep.mubr.f32.mxu0 0.0
  %v2377 = vand.u32 %v2057, 4294901760
  %v2378 = vsub.f32 %v2057, %v2377
  %2379 = vmatmul.mubr.f32.gmra.mxu0 %v2378
  %v2380 = vpop.f32.mrf.mxu0
  %v2381 = vadd.f32 %v2287, %v2380
  %v2382 = vpop.f32.mrf.mxu0
  %2383 = vmatprep.mubr.f32.mxu0 0.0
  %v2384 = vand.u32 %v2060, 4294901760
  %v2385 = vsub.f32 %v2060, %v2384
  %2386 = vmatmul.mubr.f32.gmra.mxu0 %v2385
  %v2387 = vpop.f32.mrf.mxu0
  %v2388 = vadd.f32 %v2293, %v2387
  %v2389 = vpop.f32.mrf.mxu0
  %2390 = vdwg.mxu0
  %2391 = vmatprep.subr.mxu0 0.0
  %2392 = vmatpush1.xpose.msra.mxu0 0.0
  %2393 = vmatprep.subr.mxu0 0.0
  %2394 = vmatpush1.xpose.msra.mxu0 0.0
  %2395 = vmatprep.subr.mxu0 0.0
  %2396 = vmatpush1.xpose.msra.mxu0 0.0
  %2397 = vmatprep.subr.mxu0 0.0
  %2398 = vmatpush1.xpose.msra.mxu0 0.0
  %2399 = vmatprep.subr.mxu0 0.0
  %2400 = vmatpush1.xpose.msra.mxu0 0.0
  %2401 = vmatprep.subr.mxu0 0.0
  %2402 = vmatpush1.xpose.msra.mxu0 0.0
  %2403 = vmatprep.subr.mxu0 0.0
  %2404 = vmatpush1.xpose.msra.mxu0 0.0
  %2405 = vmatprep.subr.mxu0 0.0
  %2406 = vmatpush1.xpose.msra.mxu0 0.0
  %2407 = vmatprep.subr.mxu0 0.0
  %v2408 = vand.u32 %v2084, 4294901760
  %2409 = vmatpush1.xpose.msra.mxu0 %v2408
  %2410 = vmatprep.subr.mxu0 0.0
  %v2411 = vand.u32 %v2081, 4294901760
  %2412 = vmatpush1.xpose.msra.mxu0 %v2411
  %2413 = vmatprep.subr.mxu0 0.0
  %v2414 = vand.u32 %v2078, 4294901760
  %2415 = vmatpush1.xpose.msra.mxu0 %v2414
  %2416 = vmatprep.subr.mxu0 0.0
  %v2417 = vand.u32 %v2075, 4294901760
  %2418 = vmatpush1.xpose.msra.mxu0 %v2417
  %2419 = vmatprep.subr.mxu0 0.0
  %v2420 = vand.u32 %v2072, 4294901760
  %2421 = vmatpush1.xpose.msra.mxu0 %v2420
  %2422 = vmatprep.subr.mxu0 0.0
  %v2423 = vand.u32 %v2069, 4294901760
  %2424 = vmatpush1.xpose.msra.mxu0 %v2423
  %2425 = vmatprep.subr.mxu0 0.0
  %v2426 = vand.u32 %v2066, 4294901760
  %2427 = vmatpush1.xpose.msra.mxu0 %v2426
  %2428 = vmatprep.subr.mxu0 0.0
  %v2429 = vand.u32 %v2063, 4294901760
  %2430 = vmatpush1.xpose.msra.mxu0 %v2429
  %2431 = vmatprep.subr.mxu0 0.0
  %2432 = vmatpush2.xpose.msra.mxu0 0.0
  %2433 = vmatprep.subr.mxu0 0.0
  %2434 = vmatpush2.xpose.msra.mxu0 0.0
  %2435 = vmatprep.subr.mxu0 0.0
  %2436 = vmatpush2.xpose.msra.mxu0 0.0
  %2437 = vmatprep.subr.mxu0 0.0
  %2438 = vmatpush2.xpose.msra.mxu0 0.0
  %2439 = vmatprep.subr.mxu0 0.0
  %2440 = vmatpush2.xpose.msra.mxu0 0.0
  %2441 = vmatprep.subr.mxu0 0.0
  %2442 = vmatpush2.xpose.msra.mxu0 0.0
  %2443 = vmatprep.subr.mxu0 0.0
  %2444 = vmatpush2.xpose.msra.mxu0 0.0
  %2445 = vmatprep.subr.mxu0 0.0
  %2446 = vmatpush2.xpose.msra.mxu0 0.0
  %2447 = vmatprep.subr.mxu0 0.0
  %2448 = vmatpush2.xpose.msra.mxu0 0.0
  %2449 = vmatprep.subr.mxu0 0.0
  %2450 = vmatpush2.xpose.msra.mxu0 0.0
  %2451 = vmatprep.subr.mxu0 0.0
  %2452 = vmatpush2.xpose.msra.mxu0 0.0
  %2453 = vmatprep.subr.mxu0 0.0
  %2454 = vmatpush2.xpose.msra.mxu0 0.0
  %2455 = vmatprep.subr.mxu0 0.0
  %2456 = vmatpush2.xpose.msra.mxu0 0.0
  %2457 = vmatprep.subr.mxu0 0.0
  %2458 = vmatpush2.xpose.msra.mxu0 0.0
  %2459 = vmatprep.subr.mxu0 0.0
  %2460 = vmatpush2.xpose.msra.mxu0 0.0
  %2461 = vmatprep.subr.mxu0 0.0
  %2462 = vmatpush2.xpose.msra.mxu0 0.0
  %2463 = vmatprep.mubr.f32.mxu0 0.0
  %v2464 = vand.u32 %v2057, 4294901760
  %v2465 = vsub.f32 %v2057, %v2464
  %v2466 = vand.u32 %v2465, 4294901760
  %2467 = vmatmul.mubr.f32.gmra.mxu0 %v2466
  %v2468 = vpop.f32.mrf.mxu0
  %v2469 = vadd.f32 %v2381, %v2468
  %v2470 = vpop.f32.mrf.mxu0
  %2471 = vmatprep.mubr.f32.mxu0 0.0
  %v2472 = vand.u32 %v2060, 4294901760
  %v2473 = vsub.f32 %v2060, %v2472
  %v2474 = vand.u32 %v2473, 4294901760
  %2475 = vmatmul.mubr.f32.gmra.mxu0 %v2474
  %v2476 = vpop.f32.mrf.mxu0
  %v2477 = vadd.f32 %v2388, %v2476
  %v2478 = vpop.f32.mrf.mxu0
  %2479 = vdwg.mxu0
  %2480 = vmatprep.subr.mxu0 0.0
  %2481 = vmatpush1.xpose.msra.mxu0 0.0
  %2482 = vmatprep.subr.mxu0 0.0
  %2483 = vmatpush1.xpose.msra.mxu0 0.0
  %2484 = vmatprep.subr.mxu0 0.0
  %2485 = vmatpush1.xpose.msra.mxu0 0.0
  %2486 = vmatprep.subr.mxu0 0.0
  %2487 = vmatpush1.xpose.msra.mxu0 0.0
  %2488 = vmatprep.subr.mxu0 0.0
  %2489 = vmatpush1.xpose.msra.mxu0 0.0
  %2490 = vmatprep.subr.mxu0 0.0
  %2491 = vmatpush1.xpose.msra.mxu0 0.0
  %2492 = vmatprep.subr.mxu0 0.0
  %2493 = vmatpush1.xpose.msra.mxu0 0.0
  %2494 = vmatprep.subr.mxu0 0.0
  %2495 = vmatpush1.xpose.msra.mxu0 0.0
  %2496 = vmatprep.subr.mxu0 0.0
  %v2497 = vand.u32 %v2084, 4294901760
  %v2498 = vsub.f32 %v2084, %v2497
  %v2499 = vand.u32 %v2498, 4294901760
  %2500 = vmatpush1.xpose.msra.mxu0 %v2499
  %2501 = vmatprep.subr.mxu0 0.0
  %v2502 = vand.u32 %v2081, 4294901760
  %v2503 = vsub.f32 %v2081, %v2502
  %v2504 = vand.u32 %v2503, 4294901760
  %2505 = vmatpush1.xpose.msra.mxu0 %v2504
  %2506 = vmatprep.subr.mxu0 0.0
  %v2507 = vand.u32 %v2078, 4294901760
  %v2508 = vsub.f32 %v2078, %v2507
  %v2509 = vand.u32 %v2508, 4294901760
  %2510 = vmatpush1.xpose.msra.mxu0 %v2509
  %2511 = vmatprep.subr.mxu0 0.0
  %v2512 = vand.u32 %v2075, 4294901760
  %v2513 = vsub.f32 %v2075, %v2512
  %v2514 = vand.u32 %v2513, 4294901760
  %2515 = vmatpush1.xpose.msra.mxu0 %v2514
  %2516 = vmatprep.subr.mxu0 0.0
  %v2517 = vand.u32 %v2072, 4294901760
  %v2518 = vsub.f32 %v2072, %v2517
  %v2519 = vand.u32 %v2518, 4294901760
  %2520 = vmatpush1.xpose.msra.mxu0 %v2519
  %2521 = vmatprep.subr.mxu0 0.0
  %v2522 = vand.u32 %v2069, 4294901760
  %v2523 = vsub.f32 %v2069, %v2522
  %v2524 = vand.u32 %v2523, 4294901760
  %2525 = vmatpush1.xpose.msra.mxu0 %v2524
  %2526 = vmatprep.subr.mxu0 0.0
  %v2527 = vand.u32 %v2066, 4294901760
  %v2528 = vsub.f32 %v2066, %v2527
  %v2529 = vand.u32 %v2528, 4294901760
  %2530 = vmatpush1.xpose.msra.mxu0 %v2529
  %2531 = vmatprep.subr.mxu0 0.0
  %v2532 = vand.u32 %v2063, 4294901760
  %v2533 = vsub.f32 %v2063, %v2532
  %v2534 = vand.u32 %v2533, 4294901760
  %2535 = vmatpush1.xpose.msra.mxu0 %v2534
  %2536 = vmatprep.subr.mxu0 0.0
  %2537 = vmatpush2.xpose.msra.mxu0 0.0
  %2538 = vmatprep.subr.mxu0 0.0
  %2539 = vmatpush2.xpose.msra.mxu0 0.0
  %2540 = vmatprep.subr.mxu0 0.0
  %2541 = vmatpush2.xpose.msra.mxu0 0.0
  %2542 = vmatprep.subr.mxu0 0.0
  %2543 = vmatpush2.xpose.msra.mxu0 0.0
  %2544 = vmatprep.subr.mxu0 0.0
  %2545 = vmatpush2.xpose.msra.mxu0 0.0
  %2546 = vmatprep.subr.mxu0 0.0
  %2547 = vmatpush2.xpose.msra.mxu0 0.0
  %2548 = vmatprep.subr.mxu0 0.0
  %2549 = vmatpush2.xpose.msra.mxu0 0.0
  %2550 = vmatprep.subr.mxu0 0.0
  %2551 = vmatpush2.xpose.msra.mxu0 0.0
  %2552 = vmatprep.subr.mxu0 0.0
  %2553 = vmatpush2.xpose.msra.mxu0 0.0
  %2554 = vmatprep.subr.mxu0 0.0
  %2555 = vmatpush2.xpose.msra.mxu0 0.0
  %2556 = vmatprep.subr.mxu0 0.0
  %2557 = vmatpush2.xpose.msra.mxu0 0.0
  %2558 = vmatprep.subr.mxu0 0.0
  %2559 = vmatpush2.xpose.msra.mxu0 0.0
  %2560 = vmatprep.subr.mxu0 0.0
  %2561 = vmatpush2.xpose.msra.mxu0 0.0
  %2562 = vmatprep.subr.mxu0 0.0
  %2563 = vmatpush2.xpose.msra.mxu0 0.0
  %2564 = vmatprep.subr.mxu0 0.0
  %2565 = vmatpush2.xpose.msra.mxu0 0.0
  %2566 = vmatprep.subr.mxu0 0.0
  %2567 = vmatpush2.xpose.msra.mxu0 0.0
  %2568 = vmatprep.mubr.f32.mxu0 0.0
  %v2569 = vand.u32 %v2057, 4294901760
  %2570 = vmatmul.mubr.f32.gmra.mxu0 %v2569
  %v2571 = vpop.f32.mrf.mxu0
  %v2572 = vadd.f32 %v2469, %v2571
  %v2573 = vpop.f32.mrf.mxu0
  %2574 = vmatprep.mubr.f32.mxu0 0.0
  %v2575 = vand.u32 %v2060, 4294901760
  %2576 = vmatmul.mubr.f32.gmra.mxu0 %v2575
  %v2577 = vpop.f32.mrf.mxu0
  %v2578 = vadd.f32 %v2477, %v2577
  %v2579 = vpop.f32.mrf.mxu0
  %2580 = vdwg.mxu0
  %2581 = vmatprep.subr.mxu0 0.0
  %2582 = vmatpush1.xpose.msra.mxu0 0.0
  %2583 = vmatprep.subr.mxu0 0.0
  %2584 = vmatpush1.xpose.msra.mxu0 0.0
  %2585 = vmatprep.subr.mxu0 0.0
  %2586 = vmatpush1.xpose.msra.mxu0 0.0
  %2587 = vmatprep.subr.mxu0 0.0
  %2588 = vmatpush1.xpose.msra.mxu0 0.0
  %2589 = vmatprep.subr.mxu0 0.0
  %2590 = vmatpush1.xpose.msra.mxu0 0.0
  %2591 = vmatprep.subr.mxu0 0.0
  %2592 = vmatpush1.xpose.msra.mxu0 0.0
  %2593 = vmatprep.subr.mxu0 0.0
  %2594 = vmatpush1.xpose.msra.mxu0 0.0
  %2595 = vmatprep.subr.mxu0 0.0
  %2596 = vmatpush1.xpose.msra.mxu0 0.0
  %2597 = vmatprep.subr.mxu0 0.0
  %v2598 = vand.u32 %v2084, 4294901760
  %2599 = vmatpush1.xpose.msra.mxu0 %v2598
  %2600 = vmatprep.subr.mxu0 0.0
  %v2601 = vand.u32 %v2081, 4294901760
  %2602 = vmatpush1.xpose.msra.mxu0 %v2601
  %2603 = vmatprep.subr.mxu0 0.0
  %v2604 = vand.u32 %v2078, 4294901760
  %2605 = vmatpush1.xpose.msra.mxu0 %v2604
  %2606 = vmatprep.subr.mxu0 0.0
  %v2607 = vand.u32 %v2075, 4294901760
  %2608 = vmatpush1.xpose.msra.mxu0 %v2607
  %2609 = vmatprep.subr.mxu0 0.0
  %v2610 = vand.u32 %v2072, 4294901760
  %2611 = vmatpush1.xpose.msra.mxu0 %v2610
  %2612 = vmatprep.subr.mxu0 0.0
  %v2613 = vand.u32 %v2069, 4294901760
  %2614 = vmatpush1.xpose.msra.mxu0 %v2613
  %2615 = vmatprep.subr.mxu0 0.0
  %v2616 = vand.u32 %v2066, 4294901760
  %2617 = vmatpush1.xpose.msra.mxu0 %v2616
  %2618 = vmatprep.subr.mxu0 0.0
  %v2619 = vand.u32 %v2063, 4294901760
  %2620 = vmatpush1.xpose.msra.mxu0 %v2619
  %2621 = vmatprep.subr.mxu0 0.0
  %2622 = vmatpush2.xpose.msra.mxu0 0.0
  %2623 = vmatprep.subr.mxu0 0.0
  %2624 = vmatpush2.xpose.msra.mxu0 0.0
  %2625 = vmatprep.subr.mxu0 0.0
  %2626 = vmatpush2.xpose.msra.mxu0 0.0
  %2627 = vmatprep.subr.mxu0 0.0
  %2628 = vmatpush2.xpose.msra.mxu0 0.0
  %2629 = vmatprep.subr.mxu0 0.0
  %2630 = vmatpush2.xpose.msra.mxu0 0.0
  %2631 = vmatprep.subr.mxu0 0.0
  %2632 = vmatpush2.xpose.msra.mxu0 0.0
  %2633 = vmatprep.subr.mxu0 0.0
  %2634 = vmatpush2.xpose.msra.mxu0 0.0
  %2635 = vmatprep.subr.mxu0 0.0
  %2636 = vmatpush2.xpose.msra.mxu0 0.0
  %2637 = vmatprep.subr.mxu0 0.0
  %2638 = vmatpush2.xpose.msra.mxu0 0.0
  %2639 = vmatprep.subr.mxu0 0.0
  %2640 = vmatpush2.xpose.msra.mxu0 0.0
  %2641 = vmatprep.subr.mxu0 0.0
  %2642 = vmatpush2.xpose.msra.mxu0 0.0
  %2643 = vmatprep.subr.mxu0 0.0
  %2644 = vmatpush2.xpose.msra.mxu0 0.0
  %2645 = vmatprep.subr.mxu0 0.0
  %2646 = vmatpush2.xpose.msra.mxu0 0.0
  %2647 = vmatprep.subr.mxu0 0.0
  %2648 = vmatpush2.xpose.msra.mxu0 0.0
  %2649 = vmatprep.subr.mxu0 0.0
  %2650 = vmatpush2.xpose.msra.mxu0 0.0
  %2651 = vmatprep.subr.mxu0 0.0
  %2652 = vmatpush2.xpose.msra.mxu0 0.0
  %2653 = vmatprep.mubr.f32.mxu0 0.0
  %v2654 = vand.u32 %v2057, 4294901760
  %2655 = vmatmul.mubr.f32.gmra.mxu0 %v2654
  %v2656 = vpop.f32.mrf.mxu0
  %v2657 = vadd.f32 %v2572, %v2656
  %v2658 = vpop.f32.mrf.mxu0
  %2659 = vmatprep.mubr.f32.mxu0 0.0
  %v2660 = vand.u32 %v2060, 4294901760
  %2661 = vmatmul.mubr.f32.gmra.mxu0 %v2660
  %v2662 = vpop.f32.mrf.mxu0
  %v2663 = vadd.f32 %v2578, %v2662
  %v2664 = vpop.f32.mrf.mxu0
  %2665 = vdwg.mxu0
  %v2666 = vld [vmem:[%s6 + $0x11] sm:$0x1]
  %v2667 = vmul.f32 %v2657, 2.0
  %v2668 = vmul.f32 %v2663, 2.0
  %v2669 = vlaneseq
  %v2670 = vshrl.u32 %v2669, 7
  %v2671 = vsub.s32 0, %v2670
  %v2672 = vrot.slane %v2666, %v2671
  %v2673 = vsub.f32 %v2672, %v2667
  %v2674 = vsub.f32 %v2672, %v2668
  %vm2675 = vcmask 523264
  %v2676 = vsel %vm2675, %v2673, inf
  %2677 = vmin.xlane.f32.xlu0 %v2676
  %v2678 = vpop.xlane.xlu0 %2677
  %vm2679 = vcmask 517120
  %v2680 = vsel %vm2679, %v2674, inf
  %2681 = vmin.xlane.f32.xlu0 %v2680
  %v2682 = vpop.xlane.xlu0 %2681
  %vm2683 = vcmp.le.f32.partialorder %v2673, %v2678
  %vm2684 = vcmp.le.f32.partialorder %v2674, %v2682
  %v2685 = vsel %vm2683, %v36, 64
  %v2686 = vsel %vm2684, %v36, 64
  %v2687 = vsel %vm2675, %v2685, 2147483647
  %v2688 = vand.u32 %v2687, 65535
  %v2689 = vshra.s32 %v2687, 16
  %v2690 = vcvt.s32.f32 %v2688
  %v2691 = vcvt.s32.f32 %v2689
  %2692 = vmin.xlane.f32.xlu0 %v2691
  %v2693 = vpop.xlane.xlu0 %2692
  %vm2694 = vcmp.eq.f32.partialorder %v2691, %v2693
  %v2695 = vsel %vm2694, %v2690, inf
  %2696 = vmin.xlane.f32.xlu0 %v2695
  %v2697 = vpop.xlane.xlu0 %2696
  %v2698 = vcvt.f32.s32 %v2697
  %v2699 = vcvt.f32.s32 %v2693
  %v2700 = vshll.u32 %v2699, 16
  %v2701 = vadd.s32 %v2700, %v2698
  %v2702 = vsel %vm2679, %v2686, 2147483647
  %v2703 = vand.u32 %v2702, 65535
  %v2704 = vshra.s32 %v2702, 16
  %v2705 = vcvt.s32.f32 %v2703
  %v2706 = vcvt.s32.f32 %v2704
  %2707 = vmin.xlane.f32.xlu0 %v2706
  %v2708 = vpop.xlane.xlu0 %2707
  %vm2709 = vcmp.eq.f32.partialorder %v2706, %v2708
  %v2710 = vsel %vm2709, %v2705, inf
  %2711 = vmin.xlane.f32.xlu0 %v2710
  %v2712 = vpop.xlane.xlu0 %2711
  %v2713 = vcvt.f32.s32 %v2712
  %v2714 = vcvt.f32.s32 %v2708
  %v2715 = vshll.u32 %v2714, 16
  %v2716 = vadd.s32 %v2715, %v2713
  %vm2717 = vcmp.eq.s32.totalorder %v36, %v2701
  %vm2718 = vcmp.eq.s32.totalorder %v36, %v2716
  %v2719 = vsel %vm2717, 1, 0
  %v2720 = vsel %vm2718, 1, 0
  %v2721 = vcvt.s32.f32 %v2719
  %v2722 = vcvt.s32.f32 %v2720
  %v2724 = vsel %vm2675, %v2721, 0
  %v2727 = vsel %vm2675, %v2722, 0
  %2729 = vmatprep.subr.mxu0 0.0
  %2730 = vmatpush1.msra.mxu0 0.0
  %2731 = vmatprep.subr.mxu0 0.0
  %2732 = vmatpush1.msra.mxu0 0.0
  %2733 = vmatprep.subr.mxu0 0.0
  %2734 = vmatpush1.msra.mxu0 0.0
  %2735 = vmatprep.subr.mxu0 0.0
  %2736 = vmatpush1.msra.mxu0 0.0
  %2737 = vmatprep.subr.mxu0 0.0
  %2738 = vmatpush1.msra.mxu0 0.0
  %2739 = vmatprep.subr.mxu0 0.0
  %2740 = vmatpush1.msra.mxu0 0.0
  %2741 = vmatprep.subr.mxu0 0.0
  %2742 = vmatpush1.msra.mxu0 0.0
  %2743 = vmatprep.subr.mxu0 0.0
  %2744 = vmatpush1.msra.mxu0 0.0
  %2745 = vmatprep.subr.mxu0 0.0
  %v2746 = vand.u32 %v2055, 4294901760
  %2747 = vmatpush1.msra.mxu0 %v2746
  %2748 = vmatprep.subr.mxu0 0.0
  %v2749 = vand.u32 %v2054, 4294901760
  %2750 = vmatpush1.msra.mxu0 %v2749
  %2751 = vmatprep.subr.mxu0 0.0
  %v2752 = vand.u32 %v2053, 4294901760
  %2753 = vmatpush1.msra.mxu0 %v2752
  %2754 = vmatprep.subr.mxu0 0.0
  %v2755 = vand.u32 %v2052, 4294901760
  %2756 = vmatpush1.msra.mxu0 %v2755
  %2757 = vmatprep.subr.mxu0 0.0
  %v2758 = vand.u32 %v2051, 4294901760
  %2759 = vmatpush1.msra.mxu0 %v2758
  %2760 = vmatprep.subr.mxu0 0.0
  %v2761 = vand.u32 %v2050, 4294901760
  %2762 = vmatpush1.msra.mxu0 %v2761
  %2763 = vmatprep.subr.mxu0 0.0
  %v2764 = vand.u32 %v2049, 4294901760
  %2765 = vmatpush1.msra.mxu0 %v2764
  %2766 = vmatprep.subr.mxu0 0.0
  %v2767 = vand.u32 %v2048, 4294901760
  %2768 = vmatpush1.msra.mxu0 %v2767
  %2769 = vmatprep.subr.mxu0 0.0
  %2770 = vmatpush2.msra.mxu0 0.0
  %2771 = vmatprep.subr.mxu0 0.0
  %2772 = vmatpush2.msra.mxu0 0.0
  %2773 = vmatprep.subr.mxu0 0.0
  %2774 = vmatpush2.msra.mxu0 0.0
  %2775 = vmatprep.subr.mxu0 0.0
  %2776 = vmatpush2.msra.mxu0 0.0
  %2777 = vmatprep.subr.mxu0 0.0
  %2778 = vmatpush2.msra.mxu0 0.0
  %2779 = vmatprep.subr.mxu0 0.0
  %2780 = vmatpush2.msra.mxu0 0.0
  %2781 = vmatprep.subr.mxu0 0.0
  %2782 = vmatpush2.msra.mxu0 0.0
  %2783 = vmatprep.subr.mxu0 0.0
  %2784 = vmatpush2.msra.mxu0 0.0
  %2785 = vmatprep.subr.mxu0 0.0
  %2786 = vmatpush2.msra.mxu0 0.0
  %2787 = vmatprep.subr.mxu0 0.0
  %2788 = vmatpush2.msra.mxu0 0.0
  %2789 = vmatprep.subr.mxu0 0.0
  %2790 = vmatpush2.msra.mxu0 0.0
  %2791 = vmatprep.subr.mxu0 0.0
  %2792 = vmatpush2.msra.mxu0 0.0
  %2793 = vmatprep.subr.mxu0 0.0
  %2794 = vmatpush2.msra.mxu0 0.0
  %2795 = vmatprep.subr.mxu0 0.0
  %2796 = vmatpush2.msra.mxu0 0.0
  %2797 = vmatprep.subr.mxu0 0.0
  %2798 = vmatpush2.msra.mxu0 0.0
  %2799 = vmatprep.subr.mxu0 0.0
  %2800 = vmatpush2.msra.mxu0 0.0
  %2801 = vmatprep.mubr.f32.mxu0 0.0
  %v2802 = vand.u32 %v2724, 4294901760
  %v2803 = vsub.f32 %v2724, %v2802
  %v2804 = vand.u32 %v2803, 4294901760
  %v2805 = vsub.f32 %v2803, %v2804
  %v2806 = vand.u32 %v2805, 4294901760
  %2807 = vmatmul.mubr.f32.gmra.mxu0 %v2806
  %v2808 = vpop.f32.mrf.mxu0
  %v2809 = vadd.f32 0.0, %v2808
  %v2810 = vpop.f32.mrf.mxu0
  %2811 = vmatprep.mubr.f32.mxu0 0.0
  %v2812 = vand.u32 %v2727, 4294901760
  %v2813 = vsub.f32 %v2727, %v2812
  %v2814 = vand.u32 %v2813, 4294901760
  %v2815 = vsub.f32 %v2813, %v2814
  %v2816 = vand.u32 %v2815, 4294901760
  %2817 = vmatmul.mubr.f32.gmra.mxu0 %v2816
  %v2818 = vpop.f32.mrf.mxu0
  %v2819 = vadd.f32 0.0, %v2818
  %v2820 = vpop.f32.mrf.mxu0
  %2821 = vdwg.mxu0
  %2822 = vmatprep.subr.mxu0 0.0
  %2823 = vmatpush1.msra.mxu0 0.0
  %2824 = vmatprep.subr.mxu0 0.0
  %2825 = vmatpush1.msra.mxu0 0.0
  %2826 = vmatprep.subr.mxu0 0.0
  %2827 = vmatpush1.msra.mxu0 0.0
  %2828 = vmatprep.subr.mxu0 0.0
  %2829 = vmatpush1.msra.mxu0 0.0
  %2830 = vmatprep.subr.mxu0 0.0
  %2831 = vmatpush1.msra.mxu0 0.0
  %2832 = vmatprep.subr.mxu0 0.0
  %2833 = vmatpush1.msra.mxu0 0.0
  %2834 = vmatprep.subr.mxu0 0.0
  %2835 = vmatpush1.msra.mxu0 0.0
  %2836 = vmatprep.subr.mxu0 0.0
  %2837 = vmatpush1.msra.mxu0 0.0
  %2838 = vmatprep.subr.mxu0 0.0
  %v2839 = vand.u32 %v2055, 4294901760
  %v2840 = vsub.f32 %v2055, %v2839
  %v2841 = vand.u32 %v2840, 4294901760
  %v2842 = vsub.f32 %v2840, %v2841
  %v2843 = vand.u32 %v2842, 4294901760
  %2844 = vmatpush1.msra.mxu0 %v2843
  %2845 = vmatprep.subr.mxu0 0.0
  %v2846 = vand.u32 %v2054, 4294901760
  %v2847 = vsub.f32 %v2054, %v2846
  %v2848 = vand.u32 %v2847, 4294901760
  %v2849 = vsub.f32 %v2847, %v2848
  %v2850 = vand.u32 %v2849, 4294901760
  %2851 = vmatpush1.msra.mxu0 %v2850
  %2852 = vmatprep.subr.mxu0 0.0
  %v2853 = vand.u32 %v2053, 4294901760
  %v2854 = vsub.f32 %v2053, %v2853
  %v2855 = vand.u32 %v2854, 4294901760
  %v2856 = vsub.f32 %v2854, %v2855
  %v2857 = vand.u32 %v2856, 4294901760
  %2858 = vmatpush1.msra.mxu0 %v2857
  %2859 = vmatprep.subr.mxu0 0.0
  %v2860 = vand.u32 %v2052, 4294901760
  %v2861 = vsub.f32 %v2052, %v2860
  %v2862 = vand.u32 %v2861, 4294901760
  %v2863 = vsub.f32 %v2861, %v2862
  %v2864 = vand.u32 %v2863, 4294901760
  %2865 = vmatpush1.msra.mxu0 %v2864
  %2866 = vmatprep.subr.mxu0 0.0
  %v2867 = vand.u32 %v2051, 4294901760
  %v2868 = vsub.f32 %v2051, %v2867
  %v2869 = vand.u32 %v2868, 4294901760
  %v2870 = vsub.f32 %v2868, %v2869
  %v2871 = vand.u32 %v2870, 4294901760
  %2872 = vmatpush1.msra.mxu0 %v2871
  %2873 = vmatprep.subr.mxu0 0.0
  %v2874 = vand.u32 %v2050, 4294901760
  %v2875 = vsub.f32 %v2050, %v2874
  %v2876 = vand.u32 %v2875, 4294901760
  %v2877 = vsub.f32 %v2875, %v2876
  %v2878 = vand.u32 %v2877, 4294901760
  %2879 = vmatpush1.msra.mxu0 %v2878
  %2880 = vmatprep.subr.mxu0 0.0
  %v2881 = vand.u32 %v2049, 4294901760
  %v2882 = vsub.f32 %v2049, %v2881
  %v2883 = vand.u32 %v2882, 4294901760
  %v2884 = vsub.f32 %v2882, %v2883
  %v2885 = vand.u32 %v2884, 4294901760
  %2886 = vmatpush1.msra.mxu0 %v2885
  %2887 = vmatprep.subr.mxu0 0.0
  %v2888 = vand.u32 %v2048, 4294901760
  %v2889 = vsub.f32 %v2048, %v2888
  %v2890 = vand.u32 %v2889, 4294901760
  %v2891 = vsub.f32 %v2889, %v2890
  %v2892 = vand.u32 %v2891, 4294901760
  %2893 = vmatpush1.msra.mxu0 %v2892
  %2894 = vmatprep.subr.mxu0 0.0
  %2895 = vmatpush2.msra.mxu0 0.0
  %2896 = vmatprep.subr.mxu0 0.0
  %2897 = vmatpush2.msra.mxu0 0.0
  %2898 = vmatprep.subr.mxu0 0.0
  %2899 = vmatpush2.msra.mxu0 0.0
  %2900 = vmatprep.subr.mxu0 0.0
  %2901 = vmatpush2.msra.mxu0 0.0
  %2902 = vmatprep.subr.mxu0 0.0
  %2903 = vmatpush2.msra.mxu0 0.0
  %2904 = vmatprep.subr.mxu0 0.0
  %2905 = vmatpush2.msra.mxu0 0.0
  %2906 = vmatprep.subr.mxu0 0.0
  %2907 = vmatpush2.msra.mxu0 0.0
  %2908 = vmatprep.subr.mxu0 0.0
  %2909 = vmatpush2.msra.mxu0 0.0
  %2910 = vmatprep.subr.mxu0 0.0
  %2911 = vmatpush2.msra.mxu0 0.0
  %2912 = vmatprep.subr.mxu0 0.0
  %2913 = vmatpush2.msra.mxu0 0.0
  %2914 = vmatprep.subr.mxu0 0.0
  %2915 = vmatpush2.msra.mxu0 0.0
  %2916 = vmatprep.subr.mxu0 0.0
  %2917 = vmatpush2.msra.mxu0 0.0
  %2918 = vmatprep.subr.mxu0 0.0
  %2919 = vmatpush2.msra.mxu0 0.0
  %2920 = vmatprep.subr.mxu0 0.0
  %2921 = vmatpush2.msra.mxu0 0.0
  %2922 = vmatprep.subr.mxu0 0.0
  %2923 = vmatpush2.msra.mxu0 0.0
  %2924 = vmatprep.subr.mxu0 0.0
  %2925 = vmatpush2.msra.mxu0 0.0
  %2926 = vmatprep.mubr.f32.mxu0 0.0
  %v2927 = vand.u32 %v2724, 4294901760
  %2928 = vmatmul.mubr.f32.gmra.mxu0 %v2927
  %v2929 = vpop.f32.mrf.mxu0
  %v2930 = vadd.f32 %v2809, %v2929
  %v2931 = vpop.f32.mrf.mxu0
  %2932 = vmatprep.mubr.f32.mxu0 0.0
  %v2933 = vand.u32 %v2727, 4294901760
  %2934 = vmatmul.mubr.f32.gmra.mxu0 %v2933
  %v2935 = vpop.f32.mrf.mxu0
  %v2936 = vadd.f32 %v2819, %v2935
  %v2937 = vpop.f32.mrf.mxu0
  %2938 = vdwg.mxu0
  %2939 = vmatprep.subr.mxu0 0.0
  %2940 = vmatpush1.msra.mxu0 0.0
  %2941 = vmatprep.subr.mxu0 0.0
  %2942 = vmatpush1.msra.mxu0 0.0
  %2943 = vmatprep.subr.mxu0 0.0
  %2944 = vmatpush1.msra.mxu0 0.0
  %2945 = vmatprep.subr.mxu0 0.0
  %2946 = vmatpush1.msra.mxu0 0.0
  %2947 = vmatprep.subr.mxu0 0.0
  %2948 = vmatpush1.msra.mxu0 0.0
  %2949 = vmatprep.subr.mxu0 0.0
  %2950 = vmatpush1.msra.mxu0 0.0
  %2951 = vmatprep.subr.mxu0 0.0
  %2952 = vmatpush1.msra.mxu0 0.0
  %2953 = vmatprep.subr.mxu0 0.0
  %2954 = vmatpush1.msra.mxu0 0.0
  %2955 = vmatprep.subr.mxu0 0.0
  %v2956 = vand.u32 %v2055, 4294901760
  %v2957 = vsub.f32 %v2055, %v2956
  %2958 = vmatpush1.msra.mxu0 %v2957
  %2959 = vmatprep.subr.mxu0 0.0
  %v2960 = vand.u32 %v2054, 4294901760
  %v2961 = vsub.f32 %v2054, %v2960
  %2962 = vmatpush1.msra.mxu0 %v2961
  %2963 = vmatprep.subr.mxu0 0.0
  %v2964 = vand.u32 %v2053, 4294901760
  %v2965 = vsub.f32 %v2053, %v2964
  %2966 = vmatpush1.msra.mxu0 %v2965
  %2967 = vmatprep.subr.mxu0 0.0
  %v2968 = vand.u32 %v2052, 4294901760
  %v2969 = vsub.f32 %v2052, %v2968
  %2970 = vmatpush1.msra.mxu0 %v2969
  %2971 = vmatprep.subr.mxu0 0.0
  %v2972 = vand.u32 %v2051, 4294901760
  %v2973 = vsub.f32 %v2051, %v2972
  %2974 = vmatpush1.msra.mxu0 %v2973
  %2975 = vmatprep.subr.mxu0 0.0
  %v2976 = vand.u32 %v2050, 4294901760
  %v2977 = vsub.f32 %v2050, %v2976
  %2978 = vmatpush1.msra.mxu0 %v2977
  %2979 = vmatprep.subr.mxu0 0.0
  %v2980 = vand.u32 %v2049, 4294901760
  %v2981 = vsub.f32 %v2049, %v2980
  %2982 = vmatpush1.msra.mxu0 %v2981
  %2983 = vmatprep.subr.mxu0 0.0
  %v2984 = vand.u32 %v2048, 4294901760
  %v2985 = vsub.f32 %v2048, %v2984
  %2986 = vmatpush1.msra.mxu0 %v2985
  %2987 = vmatprep.subr.mxu0 0.0
  %2988 = vmatpush2.msra.mxu0 0.0
  %2989 = vmatprep.subr.mxu0 0.0
  %2990 = vmatpush2.msra.mxu0 0.0
  %2991 = vmatprep.subr.mxu0 0.0
  %2992 = vmatpush2.msra.mxu0 0.0
  %2993 = vmatprep.subr.mxu0 0.0
  %2994 = vmatpush2.msra.mxu0 0.0
  %2995 = vmatprep.subr.mxu0 0.0
  %2996 = vmatpush2.msra.mxu0 0.0
  %2997 = vmatprep.subr.mxu0 0.0
  %2998 = vmatpush2.msra.mxu0 0.0
  %2999 = vmatprep.subr.mxu0 0.0
  %3000 = vmatpush2.msra.mxu0 0.0
  %3001 = vmatprep.subr.mxu0 0.0
  %3002 = vmatpush2.msra.mxu0 0.0
  %3003 = vmatprep.subr.mxu0 0.0
  %3004 = vmatpush2.msra.mxu0 0.0
  %3005 = vmatprep.subr.mxu0 0.0
  %3006 = vmatpush2.msra.mxu0 0.0
  %3007 = vmatprep.subr.mxu0 0.0
  %3008 = vmatpush2.msra.mxu0 0.0
  %3009 = vmatprep.subr.mxu0 0.0
  %3010 = vmatpush2.msra.mxu0 0.0
  %3011 = vmatprep.subr.mxu0 0.0
  %3012 = vmatpush2.msra.mxu0 0.0
  %3013 = vmatprep.subr.mxu0 0.0
  %3014 = vmatpush2.msra.mxu0 0.0
  %3015 = vmatprep.subr.mxu0 0.0
  %3016 = vmatpush2.msra.mxu0 0.0
  %3017 = vmatprep.subr.mxu0 0.0
  %3018 = vmatpush2.msra.mxu0 0.0
  %3019 = vmatprep.mubr.f32.mxu0 0.0
  %v3020 = vand.u32 %v2724, 4294901760
  %v3021 = vsub.f32 %v2724, %v3020
  %3022 = vmatmul.mubr.f32.gmra.mxu0 %v3021
  %v3023 = vpop.f32.mrf.mxu0
  %v3024 = vadd.f32 %v2930, %v3023
  %v3025 = vpop.f32.mrf.mxu0
  %3026 = vmatprep.mubr.f32.mxu0 0.0
  %v3027 = vand.u32 %v2727, 4294901760
  %v3028 = vsub.f32 %v2727, %v3027
  %3029 = vmatmul.mubr.f32.gmra.mxu0 %v3028
  %v3030 = vpop.f32.mrf.mxu0
  %v3031 = vadd.f32 %v2936, %v3030
  %v3032 = vpop.f32.mrf.mxu0
  %3033 = vdwg.mxu0
  %3034 = vmatprep.subr.mxu0 0.0
  %3035 = vmatpush1.msra.mxu0 0.0
  %3036 = vmatprep.subr.mxu0 0.0
  %3037 = vmatpush1.msra.mxu0 0.0
  %3038 = vmatprep.subr.mxu0 0.0
  %3039 = vmatpush1.msra.mxu0 0.0
  %3040 = vmatprep.subr.mxu0 0.0
  %3041 = vmatpush1.msra.mxu0 0.0
  %3042 = vmatprep.subr.mxu0 0.0
  %3043 = vmatpush1.msra.mxu0 0.0
  %3044 = vmatprep.subr.mxu0 0.0
  %3045 = vmatpush1.msra.mxu0 0.0
  %3046 = vmatprep.subr.mxu0 0.0
  %3047 = vmatpush1.msra.mxu0 0.0
  %3048 = vmatprep.subr.mxu0 0.0
  %3049 = vmatpush1.msra.mxu0 0.0
  %3050 = vmatprep.subr.mxu0 0.0
  %v3051 = vand.u32 %v2055, 4294901760
  %3052 = vmatpush1.msra.mxu0 %v3051
  %3053 = vmatprep.subr.mxu0 0.0
  %v3054 = vand.u32 %v2054, 4294901760
  %3055 = vmatpush1.msra.mxu0 %v3054
  %3056 = vmatprep.subr.mxu0 0.0
  %v3057 = vand.u32 %v2053, 4294901760
  %3058 = vmatpush1.msra.mxu0 %v3057
  %3059 = vmatprep.subr.mxu0 0.0
  %v3060 = vand.u32 %v2052, 4294901760
  %3061 = vmatpush1.msra.mxu0 %v3060
  %3062 = vmatprep.subr.mxu0 0.0
  %v3063 = vand.u32 %v2051, 4294901760
  %3064 = vmatpush1.msra.mxu0 %v3063
  %3065 = vmatprep.subr.mxu0 0.0
  %v3066 = vand.u32 %v2050, 4294901760
  %3067 = vmatpush1.msra.mxu0 %v3066
  %3068 = vmatprep.subr.mxu0 0.0
  %v3069 = vand.u32 %v2049, 4294901760
  %3070 = vmatpush1.msra.mxu0 %v3069
  %3071 = vmatprep.subr.mxu0 0.0
  %v3072 = vand.u32 %v2048, 4294901760
  %3073 = vmatpush1.msra.mxu0 %v3072
  %3074 = vmatprep.subr.mxu0 0.0
  %3075 = vmatpush2.msra.mxu0 0.0
  %3076 = vmatprep.subr.mxu0 0.0
  %3077 = vmatpush2.msra.mxu0 0.0
  %3078 = vmatprep.subr.mxu0 0.0
  %3079 = vmatpush2.msra.mxu0 0.0
  %3080 = vmatprep.subr.mxu0 0.0
  %3081 = vmatpush2.msra.mxu0 0.0
  %3082 = vmatprep.subr.mxu0 0.0
  %3083 = vmatpush2.msra.mxu0 0.0
  %3084 = vmatprep.subr.mxu0 0.0
  %3085 = vmatpush2.msra.mxu0 0.0
  %3086 = vmatprep.subr.mxu0 0.0
  %3087 = vmatpush2.msra.mxu0 0.0
  %3088 = vmatprep.subr.mxu0 0.0
  %3089 = vmatpush2.msra.mxu0 0.0
  %3090 = vmatprep.subr.mxu0 0.0
  %3091 = vmatpush2.msra.mxu0 0.0
  %3092 = vmatprep.subr.mxu0 0.0
  %3093 = vmatpush2.msra.mxu0 0.0
  %3094 = vmatprep.subr.mxu0 0.0
  %3095 = vmatpush2.msra.mxu0 0.0
  %3096 = vmatprep.subr.mxu0 0.0
  %3097 = vmatpush2.msra.mxu0 0.0
  %3098 = vmatprep.subr.mxu0 0.0
  %3099 = vmatpush2.msra.mxu0 0.0
  %3100 = vmatprep.subr.mxu0 0.0
  %3101 = vmatpush2.msra.mxu0 0.0
  %3102 = vmatprep.subr.mxu0 0.0
  %3103 = vmatpush2.msra.mxu0 0.0
  %3104 = vmatprep.subr.mxu0 0.0
  %3105 = vmatpush2.msra.mxu0 0.0
  %3106 = vmatprep.mubr.f32.mxu0 0.0
  %v3107 = vand.u32 %v2724, 4294901760
  %v3108 = vsub.f32 %v2724, %v3107
  %v3109 = vand.u32 %v3108, 4294901760
  %3110 = vmatmul.mubr.f32.gmra.mxu0 %v3109
  %v3111 = vpop.f32.mrf.mxu0
  %v3112 = vadd.f32 %v3024, %v3111
  %v3113 = vpop.f32.mrf.mxu0
  %3114 = vmatprep.mubr.f32.mxu0 0.0
  %v3115 = vand.u32 %v2727, 4294901760
  %v3116 = vsub.f32 %v2727, %v3115
  %v3117 = vand.u32 %v3116, 4294901760
  %3118 = vmatmul.mubr.f32.gmra.mxu0 %v3117
  %v3119 = vpop.f32.mrf.mxu0
  %v3120 = vadd.f32 %v3031, %v3119
  %v3121 = vpop.f32.mrf.mxu0
  %3122 = vdwg.mxu0
  %3123 = vmatprep.subr.mxu0 0.0
  %3124 = vmatpush1.msra.mxu0 0.0
  %3125 = vmatprep.subr.mxu0 0.0
  %3126 = vmatpush1.msra.mxu0 0.0
  %3127 = vmatprep.subr.mxu0 0.0
  %3128 = vmatpush1.msra.mxu0 0.0
  %3129 = vmatprep.subr.mxu0 0.0
  %3130 = vmatpush1.msra.mxu0 0.0
  %3131 = vmatprep.subr.mxu0 0.0
  %3132 = vmatpush1.msra.mxu0 0.0
  %3133 = vmatprep.subr.mxu0 0.0
  %3134 = vmatpush1.msra.mxu0 0.0
  %3135 = vmatprep.subr.mxu0 0.0
  %3136 = vmatpush1.msra.mxu0 0.0
  %3137 = vmatprep.subr.mxu0 0.0
  %3138 = vmatpush1.msra.mxu0 0.0
  %3139 = vmatprep.subr.mxu0 0.0
  %v3140 = vand.u32 %v2055, 4294901760
  %v3141 = vsub.f32 %v2055, %v3140
  %v3142 = vand.u32 %v3141, 4294901760
  %3143 = vmatpush1.msra.mxu0 %v3142
  %3144 = vmatprep.subr.mxu0 0.0
  %v3145 = vand.u32 %v2054, 4294901760
  %v3146 = vsub.f32 %v2054, %v3145
  %v3147 = vand.u32 %v3146, 4294901760
  %3148 = vmatpush1.msra.mxu0 %v3147
  %3149 = vmatprep.subr.mxu0 0.0
  %v3150 = vand.u32 %v2053, 4294901760
  %v3151 = vsub.f32 %v2053, %v3150
  %v3152 = vand.u32 %v3151, 4294901760
  %3153 = vmatpush1.msra.mxu0 %v3152
  %3154 = vmatprep.subr.mxu0 0.0
  %v3155 = vand.u32 %v2052, 4294901760
  %v3156 = vsub.f32 %v2052, %v3155
  %v3157 = vand.u32 %v3156, 4294901760
  %3158 = vmatpush1.msra.mxu0 %v3157
  %3159 = vmatprep.subr.mxu0 0.0
  %v3160 = vand.u32 %v2051, 4294901760
  %v3161 = vsub.f32 %v2051, %v3160
  %v3162 = vand.u32 %v3161, 4294901760
  %3163 = vmatpush1.msra.mxu0 %v3162
  %3164 = vmatprep.subr.mxu0 0.0
  %v3165 = vand.u32 %v2050, 4294901760
  %v3166 = vsub.f32 %v2050, %v3165
  %v3167 = vand.u32 %v3166, 4294901760
  %3168 = vmatpush1.msra.mxu0 %v3167
  %3169 = vmatprep.subr.mxu0 0.0
  %v3170 = vand.u32 %v2049, 4294901760
  %v3171 = vsub.f32 %v2049, %v3170
  %v3172 = vand.u32 %v3171, 4294901760
  %3173 = vmatpush1.msra.mxu0 %v3172
  %3174 = vmatprep.subr.mxu0 0.0
  %v3175 = vand.u32 %v2048, 4294901760
  %v3176 = vsub.f32 %v2048, %v3175
  %v3177 = vand.u32 %v3176, 4294901760
  %3178 = vmatpush1.msra.mxu0 %v3177
  %3179 = vmatprep.subr.mxu0 0.0
  %3180 = vmatpush2.msra.mxu0 0.0
  %3181 = vmatprep.subr.mxu0 0.0
  %3182 = vmatpush2.msra.mxu0 0.0
  %3183 = vmatprep.subr.mxu0 0.0
  %3184 = vmatpush2.msra.mxu0 0.0
  %3185 = vmatprep.subr.mxu0 0.0
  %3186 = vmatpush2.msra.mxu0 0.0
  %3187 = vmatprep.subr.mxu0 0.0
  %3188 = vmatpush2.msra.mxu0 0.0
  %3189 = vmatprep.subr.mxu0 0.0
  %3190 = vmatpush2.msra.mxu0 0.0
  %3191 = vmatprep.subr.mxu0 0.0
  %3192 = vmatpush2.msra.mxu0 0.0
  %3193 = vmatprep.subr.mxu0 0.0
  %3194 = vmatpush2.msra.mxu0 0.0
  %3195 = vmatprep.subr.mxu0 0.0
  %3196 = vmatpush2.msra.mxu0 0.0
  %3197 = vmatprep.subr.mxu0 0.0
  %3198 = vmatpush2.msra.mxu0 0.0
  %3199 = vmatprep.subr.mxu0 0.0
  %3200 = vmatpush2.msra.mxu0 0.0
  %3201 = vmatprep.subr.mxu0 0.0
  %3202 = vmatpush2.msra.mxu0 0.0
  %3203 = vmatprep.subr.mxu0 0.0
  %3204 = vmatpush2.msra.mxu0 0.0
  %3205 = vmatprep.subr.mxu0 0.0
  %3206 = vmatpush2.msra.mxu0 0.0
  %3207 = vmatprep.subr.mxu0 0.0
  %3208 = vmatpush2.msra.mxu0 0.0
  %3209 = vmatprep.subr.mxu0 0.0
  %3210 = vmatpush2.msra.mxu0 0.0
  %3211 = vmatprep.mubr.f32.mxu0 0.0
  %v3212 = vand.u32 %v2724, 4294901760
  %3213 = vmatmul.mubr.f32.gmra.mxu0 %v3212
  %v3214 = vpop.f32.mrf.mxu0
  %v3215 = vadd.f32 %v3112, %v3214
  %v3216 = vpop.f32.mrf.mxu0
  %3217 = vmatprep.mubr.f32.mxu0 0.0
  %v3218 = vand.u32 %v2727, 4294901760
  %3219 = vmatmul.mubr.f32.gmra.mxu0 %v3218
  %v3220 = vpop.f32.mrf.mxu0
  %v3221 = vadd.f32 %v3120, %v3220
  %v3222 = vpop.f32.mrf.mxu0
  %3223 = vdwg.mxu0
  %3224 = vmatprep.subr.mxu0 0.0
  %3225 = vmatpush1.msra.mxu0 0.0
  %3226 = vmatprep.subr.mxu0 0.0
  %3227 = vmatpush1.msra.mxu0 0.0
  %3228 = vmatprep.subr.mxu0 0.0
  %3229 = vmatpush1.msra.mxu0 0.0
  %3230 = vmatprep.subr.mxu0 0.0
  %3231 = vmatpush1.msra.mxu0 0.0
  %3232 = vmatprep.subr.mxu0 0.0
  %3233 = vmatpush1.msra.mxu0 0.0
  %3234 = vmatprep.subr.mxu0 0.0
  %3235 = vmatpush1.msra.mxu0 0.0
  %3236 = vmatprep.subr.mxu0 0.0
  %3237 = vmatpush1.msra.mxu0 0.0
  %3238 = vmatprep.subr.mxu0 0.0
  %3239 = vmatpush1.msra.mxu0 0.0
  %3240 = vmatprep.subr.mxu0 0.0
  %v3241 = vand.u32 %v2055, 4294901760
  %3242 = vmatpush1.msra.mxu0 %v3241
  %3243 = vmatprep.subr.mxu0 0.0
  %v3244 = vand.u32 %v2054, 4294901760
  %3245 = vmatpush1.msra.mxu0 %v3244
  %3246 = vmatprep.subr.mxu0 0.0
  %v3247 = vand.u32 %v2053, 4294901760
  %3248 = vmatpush1.msra.mxu0 %v3247
  %3249 = vmatprep.subr.mxu0 0.0
  %v3250 = vand.u32 %v2052, 4294901760
  %3251 = vmatpush1.msra.mxu0 %v3250
  %3252 = vmatprep.subr.mxu0 0.0
  %v3253 = vand.u32 %v2051, 4294901760
  %3254 = vmatpush1.msra.mxu0 %v3253
  %3255 = vmatprep.subr.mxu0 0.0
  %v3256 = vand.u32 %v2050, 4294901760
  %3257 = vmatpush1.msra.mxu0 %v3256
  %3258 = vmatprep.subr.mxu0 0.0
  %v3259 = vand.u32 %v2049, 4294901760
  %3260 = vmatpush1.msra.mxu0 %v3259
  %3261 = vmatprep.subr.mxu0 0.0
  %v3262 = vand.u32 %v2048, 4294901760
  %3263 = vmatpush1.msra.mxu0 %v3262
  %3264 = vmatprep.subr.mxu0 0.0
  %3265 = vmatpush2.msra.mxu0 0.0
  %3266 = vmatprep.subr.mxu0 0.0
  %3267 = vmatpush2.msra.mxu0 0.0
  %3268 = vmatprep.subr.mxu0 0.0
  %3269 = vmatpush2.msra.mxu0 0.0
  %3270 = vmatprep.subr.mxu0 0.0
  %3271 = vmatpush2.msra.mxu0 0.0
  %3272 = vmatprep.subr.mxu0 0.0
  %3273 = vmatpush2.msra.mxu0 0.0
  %3274 = vmatprep.subr.mxu0 0.0
  %3275 = vmatpush2.msra.mxu0 0.0
  %3276 = vmatprep.subr.mxu0 0.0
  %3277 = vmatpush2.msra.mxu0 0.0
  %3278 = vmatprep.subr.mxu0 0.0
  %3279 = vmatpush2.msra.mxu0 0.0
  %3280 = vmatprep.subr.mxu0 0.0
  %3281 = vmatpush2.msra.mxu0 0.0
  %3282 = vmatprep.subr.mxu0 0.0
  %3283 = vmatpush2.msra.mxu0 0.0
  %3284 = vmatprep.subr.mxu0 0.0
  %3285 = vmatpush2.msra.mxu0 0.0
  %3286 = vmatprep.subr.mxu0 0.0
  %3287 = vmatpush2.msra.mxu0 0.0
  %3288 = vmatprep.subr.mxu0 0.0
  %3289 = vmatpush2.msra.mxu0 0.0
  %3290 = vmatprep.subr.mxu0 0.0
  %3291 = vmatpush2.msra.mxu0 0.0
  %3292 = vmatprep.subr.mxu0 0.0
  %3293 = vmatpush2.msra.mxu0 0.0
  %3294 = vmatprep.subr.mxu0 0.0
  %3295 = vmatpush2.msra.mxu0 0.0
  %3296 = vmatprep.mubr.f32.mxu0 0.0
  %v3297 = vand.u32 %v2724, 4294901760
  %3298 = vmatmul.mubr.f32.gmra.mxu0 %v3297
  %v3299 = vpop.f32.mrf.mxu0
  %v3300 = vadd.f32 %v3215, %v3299
  %v3301 = vpop.f32.mrf.mxu0
  %3302 = vmatprep.mubr.f32.mxu0 0.0
  %v3303 = vand.u32 %v2727, 4294901760
  %3304 = vmatmul.mubr.f32.gmra.mxu0 %v3303
  %v3305 = vpop.f32.mrf.mxu0
  %v3306 = vadd.f32 %v3221, %v3305
  %v3307 = vpop.f32.mrf.mxu0
  %3308 = vdwg.mxu0
  %3311 = vrot.lane.b32.xlu0 %v3300, 32
  %v3312 = vpop.permute.xlu0 %3311
  %3313 = vrot.lane.b32.xlu0 %v3306, 32
  %v3314 = vpop.permute.xlu0 %3313
  %v3317 = vsel %vm636, %v2046, %v3312
  %v3318 = vsel %vm636, %v2047, %v3314
  %3319 = vst.msk [vmem:[%s10] sm:$0xff] %vm2675, %v3317
  %3320 = vst.msk [vmem:[%s10 + $0x8] sm:$0x3] %vm2679, %v3318
  %s3321 = scalar_lea.vmem %s2, 64
  %v3322 = vld [vmem:[%s3321] sm:$0xf]
  %v3323 = vld [vmem:[%s3321 + $0x4] sm:$0xf]
  %v3324 = vld [vmem:[%s3321 + $0x8] sm:$0xf]
  %v3325 = vld [vmem:[%s3321 + $0xc] sm:$0xf]
  %v3326 = vpack.c.bf16 %v3306, %v3300
  %v3327 = vld [vmem:[%s6 + $0x9] sm:$0x1]
  %v3328 = vlaneseq
  %v3329 = vshrl.u32 %v3328, 7
  %v3330 = vsub.s32 0, %v3329
  %v3331 = vrot.slane %v3327, %v3330
  %v3336 = vunpack.c.l.b16 %v3322
  %v3337 = vunpack.c.l.b16 %v3323
  %v3338 = vunpack.c.l.b16 %v3324
  %v3339 = vunpack.c.l.b16 %v3325
  %v3340 = vpack.c.b16 %v3337, %v3336
  %v3341 = vpack.c.b16 %v3339, %v3338
  %v3345 = vsel %vm636, %v3326, 0
  %3347 = vmatprep.subr.bf16.mxu0 0
  %3348 = vmatpush1.bf16.msra.mxu0 0
  %3349 = vmatprep.subr.bf16.mxu0 0
  %3350 = vmatpush1.bf16.msra.mxu0 0
  %3351 = vmatprep.subr.bf16.mxu0 0
  %3352 = vmatpush1.bf16.msra.mxu0 0
  %3353 = vmatprep.subr.bf16.mxu0 0
  %3354 = vmatpush1.bf16.msra.mxu0 0
  %3355 = vmatprep.subr.bf16.mxu0 0
  %3356 = vmatpush1.bf16.msra.mxu0 0
  %3357 = vmatprep.subr.bf16.mxu0 0
  %3358 = vmatpush1.bf16.msra.mxu0 0
  %3359 = vmatprep.subr.bf16.mxu0 0
  %3360 = vmatpush1.bf16.msra.mxu0 %v3341
  %3361 = vmatprep.subr.bf16.mxu0 0
  %3362 = vmatpush1.bf16.msra.mxu0 %v3340
  %3363 = vmatprep.subr.bf16.mxu0 0
  %3364 = vmatpush2.bf16.msra.mxu0 0
  %3365 = vmatprep.subr.bf16.mxu0 0
  %3366 = vmatpush2.bf16.msra.mxu0 0
  %3367 = vmatprep.subr.bf16.mxu0 0
  %3368 = vmatpush2.bf16.msra.mxu0 0
  %3369 = vmatprep.subr.bf16.mxu0 0
  %3370 = vmatpush2.bf16.msra.mxu0 0
  %3371 = vmatprep.subr.bf16.mxu0 0
  %3372 = vmatpush2.bf16.msra.mxu0 0
  %3373 = vmatprep.subr.bf16.mxu0 0
  %3374 = vmatpush2.bf16.msra.mxu0 0
  %3375 = vmatprep.subr.bf16.mxu0 0
  %3376 = vmatpush2.bf16.msra.mxu0 0
  %3377 = vmatprep.subr.bf16.mxu0 0
  %3378 = vmatpush2.bf16.msra.mxu0 0
  %3379 = vmatprep.mubr.bf16.mxu0 0
  %3380 = vmatmul.mubr.bf16.gmra.mxu0 %v3345
  %v3381 = vpop.f32.mrf.mxu0
  %v3382 = vadd.f32 %v3331, %v3381
  %v3383 = vpop.f32.mrf.mxu0
  %v3384 = vpop.f32.mrf.mxu0
  %v3385 = vadd.f32 %v3331, %v3384
  %v3386 = vpop.f32.mrf.mxu0
  %3387 = vdwg.mxu0
  %v3388 = vld [vmem:[%s6 + $0xa] sm:$0x1f]
  %v3390 = vrot.slane %v3388, 3
  %v3392 = vsel %vm71, %v3388, %v3390
  %v3393 = vadd.f32 %v3382, %v3392
  %v3394 = vadd.f32 %v3385, %v3390
  %v3395 = vld [vmem:[%s6 + $0x22] sm:$0x1]
  %v3396 = vld [vmem:[%s6 + $0x23] sm:$0x1]
  %v3397 = vsel %vm636, %v3393, 0.0
  %3398 = vadd.xlane.f32.xlu0 %v3397
  %v3399 = vpop.xlane.xlu0 %3398
  %v3400 = vsel %vm640, %v3394, 0.0
  %3401 = vadd.xlane.f32.xlu0 %v3400
  %v3402 = vpop.xlane.xlu0 %3401
  %v3403 = vmul.f32 %v3399, %v644
  %v3404 = vmul.f32 %v3402, %v644
  %v3405 = vsub.f32 %v3393, %v3403
  %v3406 = vsub.f32 %v3394, %v3404
  %v3407 = vmul.f32 %v3405, %v3405
  %v3408 = vmul.f32 %v3406, %v3406
  %v3409 = vsel %vm636, %v3407, 0.0
  %3410 = vadd.xlane.f32.xlu0 %v3409
  %v3411 = vpop.xlane.xlu0 %3410
  %v3412 = vsel %vm640, %v3408, 0.0
  %3413 = vadd.xlane.f32.xlu0 %v3412
  %v3414 = vpop.xlane.xlu0 %3413
  %v3415 = vmul.f32 %v3411, %v644
  %v3416 = vmul.f32 %v3414, %v644
  %v3417 = vadd.f32 %v3415, 1e-06
  %v3418 = vadd.f32 %v3416, 1e-06
  %v3419 = vrsqrt.pop %v3417
  %v3420 = vrsqrt.pop %v3418
  %v3421 = vmul.f32 %v3405, %v3419
  %v3422 = vmul.f32 %v3406, %v3420
  %v3423 = vlaneseq
  %v3424 = vshrl.u32 %v3423, 7
  %v3425 = vsub.s32 0, %v3424
  %v3426 = vrot.slane %v3395, %v3425
  %v3427 = vmul.f32 %v3421, %v3426
  %v3428 = vmul.f32 %v3422, %v3426
  %v3429 = vlaneseq
  %v3430 = vshrl.u32 %v3429, 7
  %v3431 = vsub.s32 0, %v3430
  %v3432 = vrot.slane %v3396, %v3431
  %v3433 = vadd.f32 %v3427, %v3432
  %v3434 = vadd.f32 %v3428, %v3432
  %s3435 = scalar_lea.vmem %s1, 32
  %v3436 = vld [vmem:[%s3435] sm:$0xf]
  %v3437 = vld [vmem:[%s3435 + $0x4] sm:$0xf]
  %v3438 = vld [vmem:[%s3435 + $0x8] sm:$0xf]
  %v3439 = vld [vmem:[%s3435 + $0xc] sm:$0xf]
  %v3440 = vpack.c.bf16 %v3434, %v3433
  %v3441 = vld [vmem:[%s6 + $0x24] sm:$0x1]
  %v3442 = vlaneseq
  %v3443 = vshrl.u32 %v3442, 7
  %v3444 = vsub.s32 0, %v3443
  %v3445 = vrot.slane %v3441, %v3444
  %v3450 = vunpack.c.l.b16 %v3436
  %v3451 = vunpack.c.l.b16 %v3437
  %v3452 = vunpack.c.l.b16 %v3438
  %v3453 = vunpack.c.l.b16 %v3439
  %v3454 = vpack.c.b16 %v3451, %v3450
  %v3455 = vpack.c.b16 %v3453, %v3452
  %v3459 = vsel %vm636, %v3440, 0
  %3461 = vmatprep.subr.bf16.mxu0 0
  %3462 = vmatpush1.bf16.msra.mxu0 0
  %3463 = vmatprep.subr.bf16.mxu0 0
  %3464 = vmatpush1.bf16.msra.mxu0 0
  %3465 = vmatprep.subr.bf16.mxu0 0
  %3466 = vmatpush1.bf16.msra.mxu0 0
  %3467 = vmatprep.subr.bf16.mxu0 0
  %3468 = vmatpush1.bf16.msra.mxu0 0
  %3469 = vmatprep.subr.bf16.mxu0 0
  %3470 = vmatpush1.bf16.msra.mxu0 0
  %3471 = vmatprep.subr.bf16.mxu0 0
  %3472 = vmatpush1.bf16.msra.mxu0 0
  %3473 = vmatprep.subr.bf16.mxu0 0
  %3474 = vmatpush1.bf16.msra.mxu0 %v3455
  %3475 = vmatprep.subr.bf16.mxu0 0
  %3476 = vmatpush1.bf16.msra.mxu0 %v3454
  %3477 = vmatprep.subr.bf16.mxu0 0
  %3478 = vmatpush2.bf16.msra.mxu0 0
  %3479 = vmatprep.subr.bf16.mxu0 0
  %3480 = vmatpush2.bf16.msra.mxu0 0
  %3481 = vmatprep.subr.bf16.mxu0 0
  %3482 = vmatpush2.bf16.msra.mxu0 0
  %3483 = vmatprep.subr.bf16.mxu0 0
  %3484 = vmatpush2.bf16.msra.mxu0 0
  %3485 = vmatprep.subr.bf16.mxu0 0
  %3486 = vmatpush2.bf16.msra.mxu0 0
  %3487 = vmatprep.subr.bf16.mxu0 0
  %3488 = vmatpush2.bf16.msra.mxu0 0
  %3489 = vmatprep.subr.bf16.mxu0 0
  %3490 = vmatpush2.bf16.msra.mxu0 0
  %3491 = vmatprep.subr.bf16.mxu0 0
  %3492 = vmatpush2.bf16.msra.mxu0 0
  %3493 = vmatprep.mubr.bf16.mxu0 0
  %3494 = vmatmul.mubr.bf16.gmra.mxu0 %v3459
  %v3495 = vpop.f32.mrf.mxu0
  %v3496 = vadd.f32 %v3445, %v3495
  %v3497 = vpop.f32.mrf.mxu0
  %v3498 = vpop.f32.mrf.mxu0
  %v3499 = vadd.f32 %v3445, %v3498
  %v3500 = vpop.f32.mrf.mxu0
  %3501 = vdwg.mxu0
  %v3504 = vrot.slane %v3496, 6
  %v3505 = vrot.slane %v3499, 6
  %v3506 = vsel %vm57, %v3504, %v3505
  %v3509 = vrot.slane %v3496, 4
  %v3510 = vrot.slane %v3499, 4
  %v3511 = vsel %vm59, %v3509, %v3510
  %v3514 = vrot.slane %v3496, 2
  %v3515 = vrot.slane %v3499, 2
  %v3516 = vsel %vm61, %v3514, %v3515
  %v3519 = vsel %vm57, %v3499, %v3504
  %v3520 = vsel %vm59, %v3506, %v3509
  %v3521 = vsel %vm61, %v3511, %v3514
  %v3522 = vmul.f32 %v3496, %v41
  %v3523 = vmul.f32 %v3519, %v58
  %v3524 = vmul.f32 %v3520, %v60
  %v3525 = vmul.f32 %v3521, %v62
  %v3526 = vmul.f32 %v3516, %v56
  %v3527 = vpack.c.bf16 %v3523, %v3522
  %v3528 = vpack.c.bf16 %v3525, %v3524
  %v3529 = vpack.c.bf16 %v3526, %v3526
  %v3530 = vpack.c.bf16 %v3499, %v3496
  %3532 = vrot.lane.b32.xlu0 %v3530, 96
  %v3533 = vpop.permute.xlu0 %3532
  %v3535 = vsel %vm636, %v3527, 0
  %v3538 = vsel %vm636, %v3528, 0
  %v3541 = vsel %vm636, %v3529, 0
  %v3544 = vsel %vm636, %v3533, 0
  %3546 = vmatprep.subr.bf16.mxu0 0
  %3547 = vmatpush1.bf16.xpose.msra.mxu0 0
  %3548 = vmatprep.subr.bf16.mxu0 0
  %3549 = vmatpush1.bf16.xpose.msra.mxu0 0
  %3550 = vmatprep.subr.bf16.mxu0 0
  %3551 = vmatpush1.bf16.xpose.msra.mxu0 0
  %3552 = vmatprep.subr.bf16.mxu0 0
  %3553 = vmatpush1.bf16.xpose.msra.mxu0 0
  %3554 = vmatprep.subr.bf16.mxu0 0
  %3555 = vmatpush1.bf16.xpose.msra.mxu0 0
  %3556 = vmatprep.subr.bf16.mxu0 0
  %3557 = vmatpush1.bf16.xpose.msra.mxu0 0
  %3558 = vmatprep.subr.bf16.mxu0 0
  %3559 = vmatpush1.bf16.xpose.msra.mxu0 0
  %3560 = vmatprep.subr.bf16.mxu0 0
  %3561 = vmatpush1.bf16.xpose.msra.mxu0 %v3544
  %3562 = vmatprep.subr.bf16.mxu0 0
  %3563 = vmatpush2.bf16.xpose.msra.mxu0 0
  %3564 = vmatprep.subr.bf16.mxu0 0
  %3565 = vmatpush2.bf16.xpose.msra.mxu0 0
  %3566 = vmatprep.subr.bf16.mxu0 0
  %3567 = vmatpush2.bf16.xpose.msra.mxu0 0
  %3568 = vmatprep.subr.bf16.mxu0 0
  %3569 = vmatpush2.bf16.xpose.msra.mxu0 0
  %3570 = vmatprep.subr.bf16.mxu0 0
  %3571 = vmatpush2.bf16.xpose.msra.mxu0 0
  %3572 = vmatprep.subr.bf16.mxu0 0
  %3573 = vmatpush2.bf16.xpose.msra.mxu0 0
  %3574 = vmatprep.subr.bf16.mxu0 0
  %3575 = vmatpush2.bf16.xpose.msra.mxu0 0
  %3576 = vmatprep.subr.bf16.mxu0 0
  %3577 = vmatpush2.bf16.xpose.msra.mxu0 0
  %3578 = vmatprep.mubr.bf16.mxu0 0
  %3579 = vmatmul.mubr.bf16.gmra.mxu0 %v3535
  %v3580 = vpop.f32.mrf.mxu0
  %v3581 = vadd.f32 0.0, %v3580
  %v3582 = vpop.f32.mrf.mxu0
  %v3583 = vpop.f32.mrf.mxu0
  %v3584 = vadd.f32 0.0, %v3583
  %v3585 = vpop.f32.mrf.mxu0
  %3586 = vmatprep.mubr.bf16.mxu0 0
  %3587 = vmatmul.mubr.bf16.gmra.mxu0 %v3538
  %v3588 = vpop.f32.mrf.mxu0
  %v3589 = vadd.f32 0.0, %v3588
  %v3590 = vpop.f32.mrf.mxu0
  %v3591 = vpop.f32.mrf.mxu0
  %v3592 = vadd.f32 0.0, %v3591
  %v3593 = vpop.f32.mrf.mxu0
  %3594 = vmatprep.mubr.bf16.mxu0 0
  %3595 = vmatmul.mubr.bf16.gmra.mxu0 %v3541
  %v3596 = vpop.f32.mrf.mxu0
  %v3597 = vadd.f32 0.0, %v3596
  %v3598 = vpop.f32.mrf.mxu0
  %v3599 = vpop.f32.mrf.mxu0
  %v3600 = vpop.f32.mrf.mxu0
  %3601 = vdwg.mxu0
  %v3602 = vmul.f32 %v3581, 0.35355338
  %v3603 = vmul.f32 %v3584, 0.35355338
  %v3604 = vmul.f32 %v3589, 0.35355338
  %v3605 = vmul.f32 %v3592, 0.35355338
  %v3606 = vmul.f32 %v3597, 0.35355338
  %v3607 = vadd.f32 %v3602, %v72
  %v3608 = vadd.f32 %v3603, %v89
  %v3609 = vadd.f32 %v3604, %v90
  %v3610 = vadd.f32 %v3605, %v91
  %v3611 = vadd.f32 %v3606, %v86
  %v3612 = vsel %vm853, %v3607, -inf
  %3613 = vmax.xlane.f32.xlu0 %v3612
  %v3614 = vpop.xlane.xlu0 %3613
  %v3615 = vsel %vm853, %v3608, -inf
  %3616 = vmax.xlane.f32.xlu0 %v3615
  %v3617 = vpop.xlane.xlu0 %3616
  %v3618 = vsel %vm853, %v3609, -inf
  %3619 = vmax.xlane.f32.xlu0 %v3618
  %v3620 = vpop.xlane.xlu0 %3619
  %v3621 = vsel %vm853, %v3610, -inf
  %3622 = vmax.xlane.f32.xlu0 %v3621
  %v3623 = vpop.xlane.xlu0 %3622
  %v3624 = vsel %vm853, %v3611, -inf
  %3625 = vmax.xlane.f32.xlu0 %v3624
  %v3626 = vpop.xlane.xlu0 %3625
  %v3627 = vsub.f32 %v3607, %v3614
  %v3628 = vsub.f32 %v3608, %v3617
  %v3629 = vsub.f32 %v3609, %v3620
  %v3630 = vsub.f32 %v3610, %v3623
  %v3631 = vsub.f32 %v3611, %v3626
  %v3632 = vmul.f32 %v3627, 1.442695
  %v3633 = vpow.pop %v3632
  %v3634 = vmul.f32 %v3628, 1.442695
  %v3635 = vpow.pop %v3634
  %v3636 = vmul.f32 %v3629, 1.442695
  %v3637 = vpow.pop %v3636
  %v3638 = vmul.f32 %v3630, 1.442695
  %v3639 = vpow.pop %v3638
  %v3640 = vmul.f32 %v3631, 1.442695
  %v3641 = vpow.pop %v3640
  %v3642 = vsel %vm853, %v3633, 0.0
  %3643 = vadd.xlane.f32.xlu0 %v3642
  %v3644 = vpop.xlane.xlu0 %3643
  %v3645 = vsel %vm853, %v3635, 0.0
  %3646 = vadd.xlane.f32.xlu0 %v3645
  %v3647 = vpop.xlane.xlu0 %3646
  %v3648 = vsel %vm853, %v3637, 0.0
  %3649 = vadd.xlane.f32.xlu0 %v3648
  %v3650 = vpop.xlane.xlu0 %3649
  %v3651 = vsel %vm853, %v3639, 0.0
  %3652 = vadd.xlane.f32.xlu0 %v3651
  %v3653 = vpop.xlane.xlu0 %3652
  %v3654 = vsel %vm853, %v3641, 0.0
  %3655 = vadd.xlane.f32.xlu0 %v3654
  %v3656 = vpop.xlane.xlu0 %3655
  %v3657 = vrcp.pop %v3644
  %v3658 = vrcp.pop %v3647
  %v3659 = vrcp.pop %v3650
  %v3660 = vrcp.pop %v3653
  %v3661 = vrcp.pop %v3656
  %v3662 = vmul.f32 %v3633, %v3657
  %v3663 = vmul.f32 %v3635, %v3658
  %v3664 = vmul.f32 %v3637, %v3659
  %v3665 = vmul.f32 %v3639, %v3660
  %v3666 = vmul.f32 %v3641, %v3661
  %v3667 = vpack.c.bf16 %v3663, %v3662
  %v3668 = vpack.c.bf16 %v3665, %v3664
  %v3669 = vpack.c.bf16 %v3666, %v3666
  %3670 = vrot.lane.b32.xlu0 %v3530, 64
  %v3671 = vpop.permute.xlu0 %3670
  %v3673 = vsel %vm853, %v3667, 0
  %v3676 = vsel %vm853, %v3668, 0
  %v3679 = vsel %vm853, %v3669, 0
  %v3682 = vsel %vm71, %v3671, 0
  %3684 = vmatprep.subr.bf16.mxu0 0
  %3685 = vmatpush1.bf16.msra.mxu0 0
  %3686 = vmatprep.subr.bf16.mxu0 0
  %3687 = vmatpush1.bf16.msra.mxu0 0
  %3688 = vmatprep.subr.bf16.mxu0 0
  %3689 = vmatpush1.bf16.msra.mxu0 0
  %3690 = vmatprep.subr.bf16.mxu0 0
  %3691 = vmatpush1.bf16.msra.mxu0 0
  %3692 = vmatprep.subr.bf16.mxu0 0
  %3693 = vmatpush1.bf16.msra.mxu0 0
  %3694 = vmatprep.subr.bf16.mxu0 0
  %3695 = vmatpush1.bf16.msra.mxu0 0
  %3696 = vmatprep.subr.bf16.mxu0 0
  %3697 = vmatpush1.bf16.msra.mxu0 0
  %3698 = vmatprep.subr.bf16.mxu0 0
  %3699 = vmatpush1.bf16.msra.mxu0 %v3682
  %3700 = vmatprep.subr.bf16.mxu0 0
  %3701 = vmatpush2.bf16.msra.mxu0 0
  %3702 = vmatprep.subr.bf16.mxu0 0
  %3703 = vmatpush2.bf16.msra.mxu0 0
  %3704 = vmatprep.subr.bf16.mxu0 0
  %3705 = vmatpush2.bf16.msra.mxu0 0
  %3706 = vmatprep.subr.bf16.mxu0 0
  %3707 = vmatpush2.bf16.msra.mxu0 0
  %3708 = vmatprep.subr.bf16.mxu0 0
  %3709 = vmatpush2.bf16.msra.mxu0 0
  %3710 = vmatprep.subr.bf16.mxu0 0
  %3711 = vmatpush2.bf16.msra.mxu0 0
  %3712 = vmatprep.subr.bf16.mxu0 0
  %3713 = vmatpush2.bf16.msra.mxu0 0
  %3714 = vmatprep.subr.bf16.mxu0 0
  %3715 = vmatpush2.bf16.msra.mxu0 0
  %3716 = vmatprep.mubr.bf16.mxu0 0
  %3717 = vmatmul.mubr.bf16.gmra.mxu0 %v3673
  %v3718 = vpop.f32.mrf.mxu0
  %v3719 = vadd.f32 0.0, %v3718
  %v3720 = vpop.f32.mrf.mxu0
  %v3721 = vpop.f32.mrf.mxu0
  %v3722 = vadd.f32 0.0, %v3721
  %v3723 = vpop.f32.mrf.mxu0
  %3724 = vmatprep.mubr.bf16.mxu0 0
  %3725 = vmatmul.mubr.bf16.gmra.mxu0 %v3676
  %v3726 = vpop.f32.mrf.mxu0
  %v3727 = vadd.f32 0.0, %v3726
  %v3728 = vpop.f32.mrf.mxu0
  %v3729 = vpop.f32.mrf.mxu0
  %v3730 = vadd.f32 0.0, %v3729
  %v3731 = vpop.f32.mrf.mxu0
  %3732 = vmatprep.mubr.bf16.mxu0 0
  %3733 = vmatmul.mubr.bf16.gmra.mxu0 %v3679
  %v3734 = vpop.f32.mrf.mxu0
  %v3735 = vadd.f32 0.0, %v3734
  %v3736 = vpop.f32.mrf.mxu0
  %v3737 = vpop.f32.mrf.mxu0
  %v3738 = vpop.f32.mrf.mxu0
  %3739 = vdwg.mxu0
  %v3740 = vmul.f32 %v3719, %v41
  %v3741 = vmul.f32 %v3722, %v58
  %v3742 = vmul.f32 %v3727, %v60
  %v3743 = vmul.f32 %v3730, %v62
  %v3744 = vmul.f32 %v3735, %v56
  %v3747 = vrot.slane %v3741, 2
  %v3748 = vrot.slane %v3742, 2
  %v3749 = vsel %vm61, %v3747, %v3748
  %v3752 = vadd.f32 %v3740, %v3749
  %v3753 = vadd.f32 %v3741, %v3748
  %v3755 = vrot.slane %v3742, 4
  %v3756 = vrot.slane %v3743, 4
  %v3757 = vsel %vm59, %v3755, %v3756
  %v3760 = vadd.f32 %v3752, %v3757
  %v3761 = vadd.f32 %v3753, %v3756
  %v3763 = vrot.slane %v3743, 6
  %v3764 = vrot.slane %v3744, 6
  %v3765 = vsel %vm57, %v3763, %v3764
  %v3768 = vadd.f32 %v3760, %v3765
  %v3769 = vadd.f32 %v3761, %v3764
  %s3770 = scalar_lea.vmem %s2, 32
  %v3771 = vld [vmem:[%s3770] sm:$0xf]
  %v3772 = vld [vmem:[%s3770 + $0x4] sm:$0xf]
  %v3773 = vld [vmem:[%s3770 + $0x8] sm:$0xf]
  %v3774 = vld [vmem:[%s3770 + $0xc] sm:$0xf]
  %v3775 = vpack.c.bf16 %v3769, %v3768
  %v3780 = vunpack.c.l.b16 %v3771
  %v3781 = vunpack.c.l.b16 %v3772
  %v3782 = vunpack.c.l.b16 %v3773
  %v3783 = vunpack.c.l.b16 %v3774
  %v3784 = vpack.c.b16 %v3781, %v3780
  %v3785 = vpack.c.b16 %v3783, %v3782
  %v3789 = vsel %vm636, %v3775, 0
  %3791 = vmatprep.subr.bf16.mxu0 0
  %3792 = vmatpush1.bf16.msra.mxu0 0
  %3793 = vmatprep.subr.bf16.mxu0 0
  %3794 = vmatpush1.bf16.msra.mxu0 0
  %3795 = vmatprep.subr.bf16.mxu0 0
  %3796 = vmatpush1.bf16.msra.mxu0 0
  %3797 = vmatprep.subr.bf16.mxu0 0
  %3798 = vmatpush1.bf16.msra.mxu0 0
  %3799 = vmatprep.subr.bf16.mxu0 0
  %3800 = vmatpush1.bf16.msra.mxu0 0
  %3801 = vmatprep.subr.bf16.mxu0 0
  %3802 = vmatpush1.bf16.msra.mxu0 0
  %3803 = vmatprep.subr.bf16.mxu0 0
  %3804 = vmatpush1.bf16.msra.mxu0 %v3785
  %3805 = vmatprep.subr.bf16.mxu0 0
  %3806 = vmatpush1.bf16.msra.mxu0 %v3784
  %3807 = vmatprep.subr.bf16.mxu0 0
  %3808 = vmatpush2.bf16.msra.mxu0 0
  %3809 = vmatprep.subr.bf16.mxu0 0
  %3810 = vmatpush2.bf16.msra.mxu0 0
  %3811 = vmatprep.subr.bf16.mxu0 0
  %3812 = vmatpush2.bf16.msra.mxu0 0
  %3813 = vmatprep.subr.bf16.mxu0 0
  %3814 = vmatpush2.bf16.msra.mxu0 0
  %3815 = vmatprep.subr.bf16.mxu0 0
  %3816 = vmatpush2.bf16.msra.mxu0 0
  %3817 = vmatprep.subr.bf16.mxu0 0
  %3818 = vmatpush2.bf16.msra.mxu0 0
  %3819 = vmatprep.subr.bf16.mxu0 0
  %3820 = vmatpush2.bf16.msra.mxu0 0
  %3821 = vmatprep.subr.bf16.mxu0 0
  %3822 = vmatpush2.bf16.msra.mxu0 0
  %3823 = vmatprep.mubr.bf16.mxu0 0
  %3824 = vmatmul.mubr.bf16.gmra.mxu0 %v3789
  %v3825 = vpop.f32.mrf.mxu0
  %v3826 = vadd.f32 0.0, %v3825
  %v3827 = vpop.f32.mrf.mxu0
  %v3828 = vpop.f32.mrf.mxu0
  %v3829 = vadd.f32 0.0, %v3828
  %v3830 = vpop.f32.mrf.mxu0
  %3831 = vdwg.mxu0
  %v3832 = vadd.f32 %v3393, %v3826
  %v3833 = vadd.f32 %v3394, %v3829
  %v3834 = vld [vmem:[%s6 + $0x25] sm:$0x1]
  %v3835 = vlaneseq
  %v3836 = vshrl.u32 %v3835, 7
  %v3837 = vsub.s32 0, %v3836
  %v3838 = vrot.slane %v3834, %v3837
  %v3839 = vadd.f32 %v3832, %v3838
  %v3840 = vadd.f32 %v3833, %v3838
  %v3841 = vld [vmem:[%s6 + $0x26] sm:$0x1]
  %v3842 = vld [vmem:[%s6 + $0x27] sm:$0x1]
  %v3843 = vsel %vm636, %v3839, 0.0
  %3844 = vadd.xlane.f32.xlu0 %v3843
  %v3845 = vpop.xlane.xlu0 %3844
  %v3846 = vsel %vm640, %v3840, 0.0
  %3847 = vadd.xlane.f32.xlu0 %v3846
  %v3848 = vpop.xlane.xlu0 %3847
  %v3849 = vmul.f32 %v3845, %v644
  %v3850 = vmul.f32 %v3848, %v644
  %v3851 = vsub.f32 %v3839, %v3849
  %v3852 = vsub.f32 %v3840, %v3850
  %v3853 = vmul.f32 %v3851, %v3851
  %v3854 = vmul.f32 %v3852, %v3852
  %v3855 = vsel %vm636, %v3853, 0.0
  %3856 = vadd.xlane.f32.xlu0 %v3855
  %v3857 = vpop.xlane.xlu0 %3856
  %v3858 = vsel %vm640, %v3854, 0.0
  %3859 = vadd.xlane.f32.xlu0 %v3858
  %v3860 = vpop.xlane.xlu0 %3859
  %v3861 = vmul.f32 %v3857, %v644
  %v3862 = vmul.f32 %v3860, %v644
  %v3863 = vadd.f32 %v3861, 1e-06
  %v3864 = vadd.f32 %v3862, 1e-06
  %v3865 = vrsqrt.pop %v3863
  %v3866 = vrsqrt.pop %v3864
  %v3867 = vmul.f32 %v3851, %v3865
  %v3868 = vmul.f32 %v3852, %v3866
  %v3869 = vlaneseq
  %v3870 = vshrl.u32 %v3869, 7
  %v3871 = vsub.s32 0, %v3870
  %v3872 = vrot.slane %v3841, %v3871
  %v3873 = vmul.f32 %v3867, %v3872
  %v3874 = vmul.f32 %v3868, %v3872
  %v3875 = vlaneseq
  %v3876 = vshrl.u32 %v3875, 7
  %v3877 = vsub.s32 0, %v3876
  %v3878 = vrot.slane %v3842, %v3877
  %v3879 = vadd.f32 %v3873, %v3878
  %v3880 = vadd.f32 %v3874, %v3878
  %s3881 = scalar_lea.vmem %s3, 32
  %v3882 = vld [vmem:[%s3881] sm:$0xf]
  %v3883 = vld [vmem:[%s3881 + $0x4] sm:$0xf]
  %v3884 = vld [vmem:[%s3881 + $0x8] sm:$0xf]
  %v3885 = vld [vmem:[%s3881 + $0xc] sm:$0xf]
  %v3886 = vpack.c.bf16 %v3880, %v3879
  %v3887 = vld [vmem:[%s6 + $0x28] sm:$0x1]
  %v3888 = vlaneseq
  %v3889 = vshrl.u32 %v3888, 7
  %v3890 = vsub.s32 0, %v3889
  %v3891 = vrot.slane %v3887, %v3890
  %v3896 = vunpack.c.l.b16 %v3882
  %v3897 = vunpack.c.l.b16 %v3883
  %v3898 = vunpack.c.l.b16 %v3884
  %v3899 = vunpack.c.l.b16 %v3885
  %v3900 = vpack.c.b16 %v3897, %v3896
  %v3901 = vpack.c.b16 %v3899, %v3898
  %v3905 = vsel %vm636, %v3886, 0
  %3907 = vmatprep.subr.bf16.mxu0 0
  %3908 = vmatpush1.bf16.msra.mxu0 0
  %3909 = vmatprep.subr.bf16.mxu0 0
  %3910 = vmatpush1.bf16.msra.mxu0 0
  %3911 = vmatprep.subr.bf16.mxu0 0
  %3912 = vmatpush1.bf16.msra.mxu0 0
  %3913 = vmatprep.subr.bf16.mxu0 0
  %3914 = vmatpush1.bf16.msra.mxu0 0
  %3915 = vmatprep.subr.bf16.mxu0 0
  %3916 = vmatpush1.bf16.msra.mxu0 0
  %3917 = vmatprep.subr.bf16.mxu0 0
  %3918 = vmatpush1.bf16.msra.mxu0 0
  %3919 = vmatprep.subr.bf16.mxu0 0
  %3920 = vmatpush1.bf16.msra.mxu0 %v3901
  %3921 = vmatprep.subr.bf16.mxu0 0
  %3922 = vmatpush1.bf16.msra.mxu0 %v3900
  %3923 = vmatprep.subr.bf16.mxu0 0
  %3924 = vmatpush2.bf16.msra.mxu0 0
  %3925 = vmatprep.subr.bf16.mxu0 0
  %3926 = vmatpush2.bf16.msra.mxu0 0
  %3927 = vmatprep.subr.bf16.mxu0 0
  %3928 = vmatpush2.bf16.msra.mxu0 0
  %3929 = vmatprep.subr.bf16.mxu0 0
  %3930 = vmatpush2.bf16.msra.mxu0 0
  %3931 = vmatprep.subr.bf16.mxu0 0
  %3932 = vmatpush2.bf16.msra.mxu0 0
  %3933 = vmatprep.subr.bf16.mxu0 0
  %3934 = vmatpush2.bf16.msra.mxu0 0
  %3935 = vmatprep.subr.bf16.mxu0 0
  %3936 = vmatpush2.bf16.msra.mxu0 0
  %3937 = vmatprep.subr.bf16.mxu0 0
  %3938 = vmatpush2.bf16.msra.mxu0 0
  %3939 = vmatprep.mubr.bf16.mxu0 0
  %3940 = vmatmul.mubr.bf16.gmra.mxu0 %v3905
  %v3941 = vpop.f32.mrf.mxu0
  %v3942 = vadd.f32 %v3891, %v3941
  %v3943 = vpop.f32.mrf.mxu0
  %v3944 = vpop.f32.mrf.mxu0
  %v3945 = vadd.f32 %v3891, %v3944
  %v3946 = vpop.f32.mrf.mxu0
  %3947 = vdwg.mxu0
  %v3948 = vmul.f32 %v3942, %v3942
  %v3949 = vmul.f32 %v3945, %v3945
  %v3950 = vmul.f32 %v3942, %v3948
  %v3951 = vmul.f32 %v3945, %v3949
  %v3952 = vmul.f32 %v3950, 0.044715
  %v3953 = vmul.f32 %v3951, 0.044715
  %v3954 = vadd.f32 %v3942, %v3952
  %v3955 = vadd.f32 %v3945, %v3953
  %v3956 = vmul.f32 %v3954, 0.7978846
  %v3957 = vmul.f32 %v3955, 0.7978846
  %v3958 = vtanh.pop %v3956
  %v3959 = vtanh.pop %v3957
  %v3960 = vadd.f32 %v3958, 1.0
  %v3961 = vadd.f32 %v3959, 1.0
  %v3962 = vmul.f32 %v3960, 0.5
  %v3963 = vmul.f32 %v3961, 0.5
  %v3964 = vmul.f32 %v3942, %v3962
  %v3965 = vmul.f32 %v3945, %v3963
  %s3966 = scalar_lea.vmem %s4, 128
  %v3967 = vld [vmem:[%s3966] sm:$0xf]
  %v3968 = vld [vmem:[%s3966 + $0x4] sm:$0xf]
  %v3969 = vld [vmem:[%s3966 + $0x8] sm:$0xf]
  %v3970 = vld [vmem:[%s3966 + $0xc] sm:$0xf]
  %v3971 = vld [vmem:[%s3966 + $0x10] sm:$0xf]
  %v3972 = vld [vmem:[%s3966 + $0x14] sm:$0xf]
  %v3973 = vld [vmem:[%s3966 + $0x18] sm:$0xf]
  %v3974 = vld [vmem:[%s3966 + $0x1c] sm:$0xf]
  %v3975 = vld [vmem:[%s3966 + $0x20] sm:$0xf]
  %v3976 = vld [vmem:[%s3966 + $0x24] sm:$0xf]
  %v3977 = vld [vmem:[%s3966 + $0x28] sm:$0xf]
  %v3978 = vld [vmem:[%s3966 + $0x2c] sm:$0xf]
  %v3979 = vld [vmem:[%s3966 + $0x30] sm:$0xf]
  %v3980 = vld [vmem:[%s3966 + $0x34] sm:$0xf]
  %v3981 = vld [vmem:[%s3966 + $0x38] sm:$0xf]
  %v3982 = vld [vmem:[%s3966 + $0x3c] sm:$0xf]
  %v3983 = vpack.c.bf16 %v3965, %v3964
  %v4000 = vunpack.c.l.b16 %v3967
  %v4001 = vunpack.c.l.b16 %v3968
  %v4002 = vunpack.c.l.b16 %v3969
  %v4003 = vunpack.c.l.b16 %v3970
  %v4004 = vunpack.c.l.b16 %v3971
  %v4005 = vunpack.c.l.b16 %v3972
  %v4006 = vunpack.c.l.b16 %v3973
  %v4007 = vunpack.c.l.b16 %v3974
  %v4008 = vunpack.c.l.b16 %v3975
  %v4009 = vunpack.c.l.b16 %v3976
  %v4010 = vunpack.c.l.b16 %v3977
  %v4011 = vunpack.c.l.b16 %v3978
  %v4012 = vunpack.c.l.b16 %v3979
  %v4013 = vunpack.c.l.b16 %v3980
  %v4014 = vunpack.c.l.b16 %v3981
  %v4015 = vunpack.c.l.b16 %v3982
  %v4016 = vpack.c.b16 %v4001, %v4000
  %v4017 = vpack.c.b16 %v4003, %v4002
  %v4018 = vpack.c.b16 %v4005, %v4004
  %v4019 = vpack.c.b16 %v4007, %v4006
  %v4020 = vpack.c.b16 %v4009, %v4008
  %v4021 = vpack.c.b16 %v4011, %v4010
  %v4022 = vpack.c.b16 %v4013, %v4012
  %v4023 = vpack.c.b16 %v4015, %v4014
  %4032 = vmatprep.subr.bf16.mxu0 0
  %4033 = vmatpush1.bf16.msra.mxu0 %v4023
  %4034 = vmatprep.subr.bf16.mxu0 0
  %4035 = vmatpush1.bf16.msra.mxu0 %v4022
  %4036 = vmatprep.subr.bf16.mxu0 0
  %4037 = vmatpush1.bf16.msra.mxu0 %v4021
  %4038 = vmatprep.subr.bf16.mxu0 0
  %4039 = vmatpush1.bf16.msra.mxu0 %v4020
  %4040 = vmatprep.subr.bf16.mxu0 0
  %4041 = vmatpush1.bf16.msra.mxu0 %v4019
  %4042 = vmatprep.subr.bf16.mxu0 0
  %4043 = vmatpush1.bf16.msra.mxu0 %v4018
  %4044 = vmatprep.subr.bf16.mxu0 0
  %4045 = vmatpush1.bf16.msra.mxu0 %v4017
  %4046 = vmatprep.subr.bf16.mxu0 0
  %4047 = vmatpush1.bf16.msra.mxu0 %v4016
  %4048 = vmatprep.subr.bf16.mxu0 0
  %4049 = vmatpush2.bf16.msra.mxu0 0
  %4050 = vmatprep.subr.bf16.mxu0 0
  %4051 = vmatpush2.bf16.msra.mxu0 0
  %4052 = vmatprep.subr.bf16.mxu0 0
  %4053 = vmatpush2.bf16.msra.mxu0 0
  %4054 = vmatprep.subr.bf16.mxu0 0
  %4055 = vmatpush2.bf16.msra.mxu0 0
  %4056 = vmatprep.subr.bf16.mxu0 0
  %4057 = vmatpush2.bf16.msra.mxu0 0
  %4058 = vmatprep.subr.bf16.mxu0 0
  %4059 = vmatpush2.bf16.msra.mxu0 0
  %4060 = vmatprep.subr.bf16.mxu0 0
  %4061 = vmatpush2.bf16.msra.mxu0 0
  %4062 = vmatprep.subr.bf16.mxu0 0
  %4063 = vmatpush2.bf16.msra.mxu0 0
  %4064 = vmatprep.mubr.bf16.mxu0 0
  %4065 = vmatmul.mubr.bf16.gmra.mxu0 %v3983
  %v4066 = vpop.f32.mrf.mxu0
  %v4067 = vadd.f32 0.0, %v4066
  %v4068 = vpop.f32.mrf.mxu0
  %v4069 = vpop.f32.mrf.mxu0
  %v4070 = vadd.f32 0.0, %v4069
  %v4071 = vpop.f32.mrf.mxu0
  %4072 = vdwg.mxu0
  %v4073 = vadd.f32 %v3839, %v4067
  %v4074 = vadd.f32 %v3840, %v4070
  %v4075 = vld [vmem:[%s6 + $0x29] sm:$0x1]
  %v4076 = vlaneseq
  %v4077 = vshrl.u32 %v4076, 7
  %v4078 = vsub.s32 0, %v4077
  %v4079 = vrot.slane %v4075, %v4078
  %v4080 = vadd.f32 %v4073, %v4079
  %v4081 = vadd.f32 %v4074, %v4079
  %v4082 = vld [vmem:[%s6 + $0x2a] sm:$0x1]
  %v4083 = vld [vmem:[%s6 + $0x2b] sm:$0x1]
  %v4084 = vsel %vm636, %v4080, 0.0
  %4085 = vadd.xlane.f32.xlu0 %v4084
  %v4086 = vpop.xlane.xlu0 %4085
  %v4087 = vsel %vm640, %v4081, 0.0
  %4088 = vadd.xlane.f32.xlu0 %v4087
  %v4089 = vpop.xlane.xlu0 %4088
  %v4090 = vmul.f32 %v4086, %v644
  %v4091 = vmul.f32 %v4089, %v644
  %v4092 = vsub.f32 %v4080, %v4090
  %v4093 = vsub.f32 %v4081, %v4091
  %v4094 = vmul.f32 %v4092, %v4092
  %v4095 = vmul.f32 %v4093, %v4093
  %v4096 = vsel %vm636, %v4094, 0.0
  %4097 = vadd.xlane.f32.xlu0 %v4096
  %v4098 = vpop.xlane.xlu0 %4097
  %v4099 = vsel %vm640, %v4095, 0.0
  %4100 = vadd.xlane.f32.xlu0 %v4099
  %v4101 = vpop.xlane.xlu0 %4100
  %v4102 = vmul.f32 %v4098, %v644
  %v4103 = vmul.f32 %v4101, %v644
  %v4104 = vadd.f32 %v4102, 1e-06
  %v4105 = vadd.f32 %v4103, 1e-06
  %v4106 = vrsqrt.pop %v4104
  %v4107 = vrsqrt.pop %v4105
  %v4108 = vmul.f32 %v4092, %v4106
  %v4109 = vmul.f32 %v4093, %v4107
  %v4110 = vlaneseq
  %v4111 = vshrl.u32 %v4110, 7
  %v4112 = vsub.s32 0, %v4111
  %v4113 = vrot.slane %v4082, %v4112
  %v4114 = vmul.f32 %v4108, %v4113
  %v4115 = vmul.f32 %v4109, %v4113
  %v4116 = vlaneseq
  %v4117 = vshrl.u32 %v4116, 7
  %v4118 = vsub.s32 0, %v4117
  %v4119 = vrot.slane %v4083, %v4118
  %v4120 = vadd.f32 %v4114, %v4119
  %v4121 = vadd.f32 %v4115, %v4119
  %s4122 = scalar_lea.vmem %s1, 48
  %v4123 = vld [vmem:[%s4122] sm:$0xf]
  %v4124 = vld [vmem:[%s4122 + $0x4] sm:$0xf]
  %v4125 = vld [vmem:[%s4122 + $0x8] sm:$0xf]
  %v4126 = vld [vmem:[%s4122 + $0xc] sm:$0xf]
  %v4127 = vpack.c.bf16 %v4121, %v4120
  %v4128 = vld [vmem:[%s6 + $0x2c] sm:$0x1]
  %v4129 = vlaneseq
  %v4130 = vshrl.u32 %v4129, 7
  %v4131 = vsub.s32 0, %v4130
  %v4132 = vrot.slane %v4128, %v4131
  %v4137 = vunpack.c.l.b16 %v4123
  %v4138 = vunpack.c.l.b16 %v4124
  %v4139 = vunpack.c.l.b16 %v4125
  %v4140 = vunpack.c.l.b16 %v4126
  %v4141 = vpack.c.b16 %v4138, %v4137
  %v4142 = vpack.c.b16 %v4140, %v4139
  %v4146 = vsel %vm636, %v4127, 0
  %4148 = vmatprep.subr.bf16.mxu0 0
  %4149 = vmatpush1.bf16.msra.mxu0 0
  %4150 = vmatprep.subr.bf16.mxu0 0
  %4151 = vmatpush1.bf16.msra.mxu0 0
  %4152 = vmatprep.subr.bf16.mxu0 0
  %4153 = vmatpush1.bf16.msra.mxu0 0
  %4154 = vmatprep.subr.bf16.mxu0 0
  %4155 = vmatpush1.bf16.msra.mxu0 0
  %4156 = vmatprep.subr.bf16.mxu0 0
  %4157 = vmatpush1.bf16.msra.mxu0 0
  %4158 = vmatprep.subr.bf16.mxu0 0
  %4159 = vmatpush1.bf16.msra.mxu0 0
  %4160 = vmatprep.subr.bf16.mxu0 0
  %4161 = vmatpush1.bf16.msra.mxu0 %v4142
  %4162 = vmatprep.subr.bf16.mxu0 0
  %4163 = vmatpush1.bf16.msra.mxu0 %v4141
  %4164 = vmatprep.subr.bf16.mxu0 0
  %4165 = vmatpush2.bf16.msra.mxu0 0
  %4166 = vmatprep.subr.bf16.mxu0 0
  %4167 = vmatpush2.bf16.msra.mxu0 0
  %4168 = vmatprep.subr.bf16.mxu0 0
  %4169 = vmatpush2.bf16.msra.mxu0 0
  %4170 = vmatprep.subr.bf16.mxu0 0
  %4171 = vmatpush2.bf16.msra.mxu0 0
  %4172 = vmatprep.subr.bf16.mxu0 0
  %4173 = vmatpush2.bf16.msra.mxu0 0
  %4174 = vmatprep.subr.bf16.mxu0 0
  %4175 = vmatpush2.bf16.msra.mxu0 0
  %4176 = vmatprep.subr.bf16.mxu0 0
  %4177 = vmatpush2.bf16.msra.mxu0 0
  %4178 = vmatprep.subr.bf16.mxu0 0
  %4179 = vmatpush2.bf16.msra.mxu0 0
  %4180 = vmatprep.mubr.bf16.mxu0 0
  %4181 = vmatmul.mubr.bf16.gmra.mxu0 %v4146
  %v4182 = vpop.f32.mrf.mxu0
  %v4183 = vadd.f32 %v4132, %v4182
  %v4184 = vpop.f32.mrf.mxu0
  %v4185 = vpop.f32.mrf.mxu0
  %v4186 = vadd.f32 %v4132, %v4185
  %v4187 = vpop.f32.mrf.mxu0
  %4188 = vdwg.mxu0
  %v4191 = vrot.slane %v4183, 6
  %v4192 = vrot.slane %v4186, 6
  %v4193 = vsel %vm57, %v4191, %v4192
  %v4196 = vrot.slane %v4183, 4
  %v4197 = vrot.slane %v4186, 4
  %v4198 = vsel %vm59, %v4196, %v4197
  %v4201 = vrot.slane %v4183, 2
  %v4202 = vrot.slane %v4186, 2
  %v4203 = vsel %vm61, %v4201, %v4202
  %v4206 = vsel %vm57, %v4186, %v4191
  %v4207 = vsel %vm59, %v4193, %v4196
  %v4208 = vsel %vm61, %v4198, %v4201
  %v4209 = vmul.f32 %v4183, %v41
  %v4210 = vmul.f32 %v4206, %v58
  %v4211 = vmul.f32 %v4207, %v60
  %v4212 = vmul.f32 %v4208, %v62
  %v4213 = vmul.f32 %v4203, %v56
  %v4214 = vpack.c.bf16 %v4210, %v4209
  %v4215 = vpack.c.bf16 %v4212, %v4211
  %v4216 = vpack.c.bf16 %v4213, %v4213
  %v4217 = vpack.c.bf16 %v4186, %v4183
  %4219 = vrot.lane.b32.xlu0 %v4217, 96
  %v4220 = vpop.permute.xlu0 %4219
  %v4222 = vsel %vm636, %v4214, 0
  %v4225 = vsel %vm636, %v4215, 0
  %v4228 = vsel %vm636, %v4216, 0
  %v4231 = vsel %vm636, %v4220, 0
  %4233 = vmatprep.subr.bf16.mxu0 0
  %4234 = vmatpush1.bf16.xpose.msra.mxu0 0
  %4235 = vmatprep.subr.bf16.mxu0 0
  %4236 = vmatpush1.bf16.xpose.msra.mxu0 0
  %4237 = vmatprep.subr.bf16.mxu0 0
  %4238 = vmatpush1.bf16.xpose.msra.mxu0 0
  %4239 = vmatprep.subr.bf16.mxu0 0
  %4240 = vmatpush1.bf16.xpose.msra.mxu0 0
  %4241 = vmatprep.subr.bf16.mxu0 0
  %4242 = vmatpush1.bf16.xpose.msra.mxu0 0
  %4243 = vmatprep.subr.bf16.mxu0 0
  %4244 = vmatpush1.bf16.xpose.msra.mxu0 0
  %4245 = vmatprep.subr.bf16.mxu0 0
  %4246 = vmatpush1.bf16.xpose.msra.mxu0 0
  %4247 = vmatprep.subr.bf16.mxu0 0
  %4248 = vmatpush1.bf16.xpose.msra.mxu0 %v4231
  %4249 = vmatprep.subr.bf16.mxu0 0
  %4250 = vmatpush2.bf16.xpose.msra.mxu0 0
  %4251 = vmatprep.subr.bf16.mxu0 0
  %4252 = vmatpush2.bf16.xpose.msra.mxu0 0
  %4253 = vmatprep.subr.bf16.mxu0 0
  %4254 = vmatpush2.bf16.xpose.msra.mxu0 0
  %4255 = vmatprep.subr.bf16.mxu0 0
  %4256 = vmatpush2.bf16.xpose.msra.mxu0 0
  %4257 = vmatprep.subr.bf16.mxu0 0
  %4258 = vmatpush2.bf16.xpose.msra.mxu0 0
  %4259 = vmatprep.subr.bf16.mxu0 0
  %4260 = vmatpush2.bf16.xpose.msra.mxu0 0
  %4261 = vmatprep.subr.bf16.mxu0 0
  %4262 = vmatpush2.bf16.xpose.msra.mxu0 0
  %4263 = vmatprep.subr.bf16.mxu0 0
  %4264 = vmatpush2.bf16.xpose.msra.mxu0 0
  %4265 = vmatprep.mubr.bf16.mxu0 0
  %4266 = vmatmul.mubr.bf16.gmra.mxu0 %v4222
  %v4267 = vpop.f32.mrf.mxu0
  %v4268 = vadd.f32 0.0, %v4267
  %v4269 = vpop.f32.mrf.mxu0
  %v4270 = vpop.f32.mrf.mxu0
  %v4271 = vadd.f32 0.0, %v4270
  %v4272 = vpop.f32.mrf.mxu0
  %4273 = vmatprep.mubr.bf16.mxu0 0
  %4274 = vmatmul.mubr.bf16.gmra.mxu0 %v4225
  %v4275 = vpop.f32.mrf.mxu0
  %v4276 = vadd.f32 0.0, %v4275
  %v4277 = vpop.f32.mrf.mxu0
  %v4278 = vpop.f32.mrf.mxu0
  %v4279 = vadd.f32 0.0, %v4278
  %v4280 = vpop.f32.mrf.mxu0
  %4281 = vmatprep.mubr.bf16.mxu0 0
  %4282 = vmatmul.mubr.bf16.gmra.mxu0 %v4228
  %v4283 = vpop.f32.mrf.mxu0
  %v4284 = vadd.f32 0.0, %v4283
  %v4285 = vpop.f32.mrf.mxu0
  %v4286 = vpop.f32.mrf.mxu0
  %v4287 = vpop.f32.mrf.mxu0
  %4288 = vdwg.mxu0
  %v4289 = vmul.f32 %v4268, 0.35355338
  %v4290 = vmul.f32 %v4271, 0.35355338
  %v4291 = vmul.f32 %v4276, 0.35355338
  %v4292 = vmul.f32 %v4279, 0.35355338
  %v4293 = vmul.f32 %v4284, 0.35355338
  %v4294 = vadd.f32 %v4289, %v72
  %v4295 = vadd.f32 %v4290, %v89
  %v4296 = vadd.f32 %v4291, %v90
  %v4297 = vadd.f32 %v4292, %v91
  %v4298 = vadd.f32 %v4293, %v86
  %v4299 = vsel %vm853, %v4294, -inf
  %4300 = vmax.xlane.f32.xlu0 %v4299
  %v4301 = vpop.xlane.xlu0 %4300
  %v4302 = vsel %vm853, %v4295, -inf
  %4303 = vmax.xlane.f32.xlu0 %v4302
  %v4304 = vpop.xlane.xlu0 %4303
  %v4305 = vsel %vm853, %v4296, -inf
  %4306 = vmax.xlane.f32.xlu0 %v4305
  %v4307 = vpop.xlane.xlu0 %4306
  %v4308 = vsel %vm853, %v4297, -inf
  %4309 = vmax.xlane.f32.xlu0 %v4308
  %v4310 = vpop.xlane.xlu0 %4309
  %v4311 = vsel %vm853, %v4298, -inf
  %4312 = vmax.xlane.f32.xlu0 %v4311
  %v4313 = vpop.xlane.xlu0 %4312
  %v4314 = vsub.f32 %v4294, %v4301
  %v4315 = vsub.f32 %v4295, %v4304
  %v4316 = vsub.f32 %v4296, %v4307
  %v4317 = vsub.f32 %v4297, %v4310
  %v4318 = vsub.f32 %v4298, %v4313
  %v4319 = vmul.f32 %v4314, 1.442695
  %v4320 = vpow.pop %v4319
  %v4321 = vmul.f32 %v4315, 1.442695
  %v4322 = vpow.pop %v4321
  %v4323 = vmul.f32 %v4316, 1.442695
  %v4324 = vpow.pop %v4323
  %v4325 = vmul.f32 %v4317, 1.442695
  %v4326 = vpow.pop %v4325
  %v4327 = vmul.f32 %v4318, 1.442695
  %v4328 = vpow.pop %v4327
  %v4329 = vsel %vm853, %v4320, 0.0
  %4330 = vadd.xlane.f32.xlu0 %v4329
  %v4331 = vpop.xlane.xlu0 %4330
  %v4332 = vsel %vm853, %v4322, 0.0
  %4333 = vadd.xlane.f32.xlu0 %v4332
  %v4334 = vpop.xlane.xlu0 %4333
  %v4335 = vsel %vm853, %v4324, 0.0
  %4336 = vadd.xlane.f32.xlu0 %v4335
  %v4337 = vpop.xlane.xlu0 %4336
  %v4338 = vsel %vm853, %v4326, 0.0
  %4339 = vadd.xlane.f32.xlu0 %v4338
  %v4340 = vpop.xlane.xlu0 %4339
  %v4341 = vsel %vm853, %v4328, 0.0
  %4342 = vadd.xlane.f32.xlu0 %v4341
  %v4343 = vpop.xlane.xlu0 %4342
  %v4344 = vrcp.pop %v4331
  %v4345 = vrcp.pop %v4334
  %v4346 = vrcp.pop %v4337
  %v4347 = vrcp.pop %v4340
  %v4348 = vrcp.pop %v4343
  %v4349 = vmul.f32 %v4320, %v4344
  %v4350 = vmul.f32 %v4322, %v4345
  %v4351 = vmul.f32 %v4324, %v4346
  %v4352 = vmul.f32 %v4326, %v4347
  %v4353 = vmul.f32 %v4328, %v4348
  %v4354 = vpack.c.bf16 %v4350, %v4349
  %v4355 = vpack.c.bf16 %v4352, %v4351
  %v4356 = vpack.c.bf16 %v4353, %v4353
  %4357 = vrot.lane.b32.xlu0 %v4217, 64
  %v4358 = vpop.permute.xlu0 %4357
  %v4360 = vsel %vm853, %v4354, 0
  %v4363 = vsel %vm853, %v4355, 0
  %v4366 = vsel %vm853, %v4356, 0
  %v4369 = vsel %vm71, %v4358, 0
  %4371 = vmatprep.subr.bf16.mxu0 0
  %4372 = vmatpush1.bf16.msra.mxu0 0
  %4373 = vmatprep.subr.bf16.mxu0 0
  %4374 = vmatpush1.bf16.msra.mxu0 0
  %4375 = vmatprep.subr.bf16.mxu0 0
  %4376 = vmatpush1.bf16.msra.mxu0 0
  %4377 = vmatprep.subr.bf16.mxu0 0
  %4378 = vmatpush1.bf16.msra.mxu0 0
  %4379 = vmatprep.subr.bf16.mxu0 0
  %4380 = vmatpush1.bf16.msra.mxu0 0
  %4381 = vmatprep.subr.bf16.mxu0 0
  %4382 = vmatpush1.bf16.msra.mxu0 0
  %4383 = vmatprep.subr.bf16.mxu0 0
  %4384 = vmatpush1.bf16.msra.mxu0 0
  %4385 = vmatprep.subr.bf16.mxu0 0
  %4386 = vmatpush1.bf16.msra.mxu0 %v4369
  %4387 = vmatprep.subr.bf16.mxu0 0
  %4388 = vmatpush2.bf16.msra.mxu0 0
  %4389 = vmatprep.subr.bf16.mxu0 0
  %4390 = vmatpush2.bf16.msra.mxu0 0
  %4391 = vmatprep.subr.bf16.mxu0 0
  %4392 = vmatpush2.bf16.msra.mxu0 0
  %4393 = vmatprep.subr.bf16.mxu0 0
  %4394 = vmatpush2.bf16.msra.mxu0 0
  %4395 = vmatprep.subr.bf16.mxu0 0
  %4396 = vmatpush2.bf16.msra.mxu0 0
  %4397 = vmatprep.subr.bf16.mxu0 0
  %4398 = vmatpush2.bf16.msra.mxu0 0
  %4399 = vmatprep.subr.bf16.mxu0 0
  %4400 = vmatpush2.bf16.msra.mxu0 0
  %4401 = vmatprep.subr.bf16.mxu0 0
  %4402 = vmatpush2.bf16.msra.mxu0 0
  %4403 = vmatprep.mubr.bf16.mxu0 0
  %4404 = vmatmul.mubr.bf16.gmra.mxu0 %v4360
  %v4405 = vpop.f32.mrf.mxu0
  %v4406 = vadd.f32 0.0, %v4405
  %v4407 = vpop.f32.mrf.mxu0
  %v4408 = vpop.f32.mrf.mxu0
  %v4409 = vadd.f32 0.0, %v4408
  %v4410 = vpop.f32.mrf.mxu0
  %4411 = vmatprep.mubr.bf16.mxu0 0
  %4412 = vmatmul.mubr.bf16.gmra.mxu0 %v4363
  %v4413 = vpop.f32.mrf.mxu0
  %v4414 = vadd.f32 0.0, %v4413
  %v4415 = vpop.f32.mrf.mxu0
  %v4416 = vpop.f32.mrf.mxu0
  %v4417 = vadd.f32 0.0, %v4416
  %v4418 = vpop.f32.mrf.mxu0
  %4419 = vmatprep.mubr.bf16.mxu0 0
  %4420 = vmatmul.mubr.bf16.gmra.mxu0 %v4366
  %v4421 = vpop.f32.mrf.mxu0
  %v4422 = vadd.f32 0.0, %v4421
  %v4423 = vpop.f32.mrf.mxu0
  %v4424 = vpop.f32.mrf.mxu0
  %v4425 = vpop.f32.mrf.mxu0
  %4426 = vdwg.mxu0
  %v4427 = vmul.f32 %v4406, %v41
  %v4428 = vmul.f32 %v4409, %v58
  %v4429 = vmul.f32 %v4414, %v60
  %v4430 = vmul.f32 %v4417, %v62
  %v4431 = vmul.f32 %v4422, %v56
  %v4434 = vrot.slane %v4428, 2
  %v4435 = vrot.slane %v4429, 2
  %v4436 = vsel %vm61, %v4434, %v4435
  %v4439 = vadd.f32 %v4427, %v4436
  %v4440 = vadd.f32 %v4428, %v4435
  %v4442 = vrot.slane %v4429, 4
  %v4443 = vrot.slane %v4430, 4
  %v4444 = vsel %vm59, %v4442, %v4443
  %v4447 = vadd.f32 %v4439, %v4444
  %v4448 = vadd.f32 %v4440, %v4443
  %v4450 = vrot.slane %v4430, 6
  %v4451 = vrot.slane %v4431, 6
  %v4452 = vsel %vm57, %v4450, %v4451
  %v4455 = vadd.f32 %v4447, %v4452
  %v4456 = vadd.f32 %v4448, %v4451
  %s4457 = scalar_lea.vmem %s2, 48
  %v4458 = vld [vmem:[%s4457] sm:$0xf]
  %v4459 = vld [vmem:[%s4457 + $0x4] sm:$0xf]
  %v4460 = vld [vmem:[%s4457 + $0x8] sm:$0xf]
  %v4461 = vld [vmem:[%s4457 + $0xc] sm:$0xf]
  %v4462 = vpack.c.bf16 %v4456, %v4455
  %v4467 = vunpack.c.l.b16 %v4458
  %v4468 = vunpack.c.l.b16 %v4459
  %v4469 = vunpack.c.l.b16 %v4460
  %v4470 = vunpack.c.l.b16 %v4461
  %v4471 = vpack.c.b16 %v4468, %v4467
  %v4472 = vpack.c.b16 %v4470, %v4469
  %v4476 = vsel %vm636, %v4462, 0
  %4478 = vmatprep.subr.bf16.mxu0 0
  %4479 = vmatpush1.bf16.msra.mxu0 0
  %4480 = vmatprep.subr.bf16.mxu0 0
  %4481 = vmatpush1.bf16.msra.mxu0 0
  %4482 = vmatprep.subr.bf16.mxu0 0
  %4483 = vmatpush1.bf16.msra.mxu0 0
  %4484 = vmatprep.subr.bf16.mxu0 0
  %4485 = vmatpush1.bf16.msra.mxu0 0
  %4486 = vmatprep.subr.bf16.mxu0 0
  %4487 = vmatpush1.bf16.msra.mxu0 0
  %4488 = vmatprep.subr.bf16.mxu0 0
  %4489 = vmatpush1.bf16.msra.mxu0 0
  %4490 = vmatprep.subr.bf16.mxu0 0
  %4491 = vmatpush1.bf16.msra.mxu0 %v4472
  %4492 = vmatprep.subr.bf16.mxu0 0
  %4493 = vmatpush1.bf16.msra.mxu0 %v4471
  %4494 = vmatprep.subr.bf16.mxu0 0
  %4495 = vmatpush2.bf16.msra.mxu0 0
  %4496 = vmatprep.subr.bf16.mxu0 0
  %4497 = vmatpush2.bf16.msra.mxu0 0
  %4498 = vmatprep.subr.bf16.mxu0 0
  %4499 = vmatpush2.bf16.msra.mxu0 0
  %4500 = vmatprep.subr.bf16.mxu0 0
  %4501 = vmatpush2.bf16.msra.mxu0 0
  %4502 = vmatprep.subr.bf16.mxu0 0
  %4503 = vmatpush2.bf16.msra.mxu0 0
  %4504 = vmatprep.subr.bf16.mxu0 0
  %4505 = vmatpush2.bf16.msra.mxu0 0
  %4506 = vmatprep.subr.bf16.mxu0 0
  %4507 = vmatpush2.bf16.msra.mxu0 0
  %4508 = vmatprep.subr.bf16.mxu0 0
  %4509 = vmatpush2.bf16.msra.mxu0 0
  %4510 = vmatprep.mubr.bf16.mxu0 0
  %4511 = vmatmul.mubr.bf16.gmra.mxu0 %v4476
  %v4512 = vpop.f32.mrf.mxu0
  %v4513 = vadd.f32 0.0, %v4512
  %v4514 = vpop.f32.mrf.mxu0
  %v4515 = vpop.f32.mrf.mxu0
  %v4516 = vadd.f32 0.0, %v4515
  %v4517 = vpop.f32.mrf.mxu0
  %4518 = vdwg.mxu0
  %v4519 = vadd.f32 %v4080, %v4513
  %v4520 = vadd.f32 %v4081, %v4516
  %v4521 = vld [vmem:[%s6 + $0x2d] sm:$0x1]
  %v4522 = vlaneseq
  %v4523 = vshrl.u32 %v4522, 7
  %v4524 = vsub.s32 0, %v4523
  %v4525 = vrot.slane %v4521, %v4524
  %v4526 = vadd.f32 %v4519, %v4525
  %v4527 = vadd.f32 %v4520, %v4525
  %v4528 = vld [vmem:[%s6 + $0x2e] sm:$0x1]
  %v4529 = vld [vmem:[%s6 + $0x2f] sm:$0x1]
  %v4530 = vsel %vm636, %v4526, 0.0
  %4531 = vadd.xlane.f32.xlu0 %v4530
  %v4532 = vpop.xlane.xlu0 %4531
  %v4533 = vsel %vm640, %v4527, 0.0
  %4534 = vadd.xlane.f32.xlu0 %v4533
  %v4535 = vpop.xlane.xlu0 %4534
  %v4536 = vmul.f32 %v4532, %v644
  %v4537 = vmul.f32 %v4535, %v644
  %v4538 = vsub.f32 %v4526, %v4536
  %v4539 = vsub.f32 %v4527, %v4537
  %v4540 = vmul.f32 %v4538, %v4538
  %v4541 = vmul.f32 %v4539, %v4539
  %v4542 = vsel %vm636, %v4540, 0.0
  %4543 = vadd.xlane.f32.xlu0 %v4542
  %v4544 = vpop.xlane.xlu0 %4543
  %v4545 = vsel %vm640, %v4541, 0.0
  %4546 = vadd.xlane.f32.xlu0 %v4545
  %v4547 = vpop.xlane.xlu0 %4546
  %v4548 = vmul.f32 %v4544, %v644
  %v4549 = vmul.f32 %v4547, %v644
  %v4550 = vadd.f32 %v4548, 1e-06
  %v4551 = vadd.f32 %v4549, 1e-06
  %v4552 = vrsqrt.pop %v4550
  %v4553 = vrsqrt.pop %v4551
  %v4554 = vmul.f32 %v4538, %v4552
  %v4555 = vmul.f32 %v4539, %v4553
  %v4556 = vlaneseq
  %v4557 = vshrl.u32 %v4556, 7
  %v4558 = vsub.s32 0, %v4557
  %v4559 = vrot.slane %v4528, %v4558
  %v4560 = vmul.f32 %v4554, %v4559
  %v4561 = vmul.f32 %v4555, %v4559
  %v4562 = vlaneseq
  %v4563 = vshrl.u32 %v4562, 7
  %v4564 = vsub.s32 0, %v4563
  %v4565 = vrot.slane %v4529, %v4564
  %v4566 = vadd.f32 %v4560, %v4565
  %v4567 = vadd.f32 %v4561, %v4565
  %s4568 = scalar_lea.vmem %s3, 48
  %v4569 = vld [vmem:[%s4568] sm:$0xf]
  %v4570 = vld [vmem:[%s4568 + $0x4] sm:$0xf]
  %v4571 = vld [vmem:[%s4568 + $0x8] sm:$0xf]
  %v4572 = vld [vmem:[%s4568 + $0xc] sm:$0xf]
  %v4573 = vpack.c.bf16 %v4567, %v4566
  %v4574 = vld [vmem:[%s6 + $0x30] sm:$0x1]
  %v4575 = vlaneseq
  %v4576 = vshrl.u32 %v4575, 7
  %v4577 = vsub.s32 0, %v4576
  %v4578 = vrot.slane %v4574, %v4577
  %v4583 = vunpack.c.l.b16 %v4569
  %v4584 = vunpack.c.l.b16 %v4570
  %v4585 = vunpack.c.l.b16 %v4571
  %v4586 = vunpack.c.l.b16 %v4572
  %v4587 = vpack.c.b16 %v4584, %v4583
  %v4588 = vpack.c.b16 %v4586, %v4585
  %v4592 = vsel %vm636, %v4573, 0
  %4594 = vmatprep.subr.bf16.mxu0 0
  %4595 = vmatpush1.bf16.msra.mxu0 0
  %4596 = vmatprep.subr.bf16.mxu0 0
  %4597 = vmatpush1.bf16.msra.mxu0 0
  %4598 = vmatprep.subr.bf16.mxu0 0
  %4599 = vmatpush1.bf16.msra.mxu0 0
  %4600 = vmatprep.subr.bf16.mxu0 0
  %4601 = vmatpush1.bf16.msra.mxu0 0
  %4602 = vmatprep.subr.bf16.mxu0 0
  %4603 = vmatpush1.bf16.msra.mxu0 0
  %4604 = vmatprep.subr.bf16.mxu0 0
  %4605 = vmatpush1.bf16.msra.mxu0 0
  %4606 = vmatprep.subr.bf16.mxu0 0
  %4607 = vmatpush1.bf16.msra.mxu0 %v4588
  %4608 = vmatprep.subr.bf16.mxu0 0
  %4609 = vmatpush1.bf16.msra.mxu0 %v4587
  %4610 = vmatprep.subr.bf16.mxu0 0
  %4611 = vmatpush2.bf16.msra.mxu0 0
  %4612 = vmatprep.subr.bf16.mxu0 0
  %4613 = vmatpush2.bf16.msra.mxu0 0
  %4614 = vmatprep.subr.bf16.mxu0 0
  %4615 = vmatpush2.bf16.msra.mxu0 0
  %4616 = vmatprep.subr.bf16.mxu0 0
  %4617 = vmatpush2.bf16.msra.mxu0 0
  %4618 = vmatprep.subr.bf16.mxu0 0
  %4619 = vmatpush2.bf16.msra.mxu0 0
  %4620 = vmatprep.subr.bf16.mxu0 0
  %4621 = vmatpush2.bf16.msra.mxu0 0
  %4622 = vmatprep.subr.bf16.mxu0 0
  %4623 = vmatpush2.bf16.msra.mxu0 0
  %4624 = vmatprep.subr.bf16.mxu0 0
  %4625 = vmatpush2.bf16.msra.mxu0 0
  %4626 = vmatprep.mubr.bf16.mxu0 0
  %4627 = vmatmul.mubr.bf16.gmra.mxu0 %v4592
  %v4628 = vpop.f32.mrf.mxu0
  %v4629 = vadd.f32 %v4578, %v4628
  %v4630 = vpop.f32.mrf.mxu0
  %v4631 = vpop.f32.mrf.mxu0
  %v4632 = vadd.f32 %v4578, %v4631
  %v4633 = vpop.f32.mrf.mxu0
  %4634 = vdwg.mxu0
  %v4635 = vmul.f32 %v4629, %v4629
  %v4636 = vmul.f32 %v4632, %v4632
  %v4637 = vmul.f32 %v4629, %v4635
  %v4638 = vmul.f32 %v4632, %v4636
  %v4639 = vmul.f32 %v4637, 0.044715
  %v4640 = vmul.f32 %v4638, 0.044715
  %v4641 = vadd.f32 %v4629, %v4639
  %v4642 = vadd.f32 %v4632, %v4640
  %v4643 = vmul.f32 %v4641, 0.7978846
  %v4644 = vmul.f32 %v4642, 0.7978846
  %v4645 = vtanh.pop %v4643
  %v4646 = vtanh.pop %v4644
  %v4647 = vadd.f32 %v4645, 1.0
  %v4648 = vadd.f32 %v4646, 1.0
  %v4649 = vmul.f32 %v4647, 0.5
  %v4650 = vmul.f32 %v4648, 0.5
  %v4651 = vmul.f32 %v4629, %v4649
  %v4652 = vmul.f32 %v4632, %v4650
  %s4653 = scalar_lea.vmem %s4, 192
  %v4654 = vld [vmem:[%s4653] sm:$0xf]
  %v4655 = vld [vmem:[%s4653 + $0x4] sm:$0xf]
  %v4656 = vld [vmem:[%s4653 + $0x8] sm:$0xf]
  %v4657 = vld [vmem:[%s4653 + $0xc] sm:$0xf]
  %v4658 = vld [vmem:[%s4653 + $0x10] sm:$0xf]
  %v4659 = vld [vmem:[%s4653 + $0x14] sm:$0xf]
  %v4660 = vld [vmem:[%s4653 + $0x18] sm:$0xf]
  %v4661 = vld [vmem:[%s4653 + $0x1c] sm:$0xf]
  %v4662 = vld [vmem:[%s4653 + $0x20] sm:$0xf]
  %v4663 = vld [vmem:[%s4653 + $0x24] sm:$0xf]
  %v4664 = vld [vmem:[%s4653 + $0x28] sm:$0xf]
  %v4665 = vld [vmem:[%s4653 + $0x2c] sm:$0xf]
  %v4666 = vld [vmem:[%s4653 + $0x30] sm:$0xf]
  %v4667 = vld [vmem:[%s4653 + $0x34] sm:$0xf]
  %v4668 = vld [vmem:[%s4653 + $0x38] sm:$0xf]
  %v4669 = vld [vmem:[%s4653 + $0x3c] sm:$0xf]
  %v4670 = vpack.c.bf16 %v4652, %v4651
  %v4687 = vunpack.c.l.b16 %v4654
  %v4688 = vunpack.c.l.b16 %v4655
  %v4689 = vunpack.c.l.b16 %v4656
  %v4690 = vunpack.c.l.b16 %v4657
  %v4691 = vunpack.c.l.b16 %v4658
  %v4692 = vunpack.c.l.b16 %v4659
  %v4693 = vunpack.c.l.b16 %v4660
  %v4694 = vunpack.c.l.b16 %v4661
  %v4695 = vunpack.c.l.b16 %v4662
  %v4696 = vunpack.c.l.b16 %v4663
  %v4697 = vunpack.c.l.b16 %v4664
  %v4698 = vunpack.c.l.b16 %v4665
  %v4699 = vunpack.c.l.b16 %v4666
  %v4700 = vunpack.c.l.b16 %v4667
  %v4701 = vunpack.c.l.b16 %v4668
  %v4702 = vunpack.c.l.b16 %v4669
  %v4703 = vpack.c.b16 %v4688, %v4687
  %v4704 = vpack.c.b16 %v4690, %v4689
  %v4705 = vpack.c.b16 %v4692, %v4691
  %v4706 = vpack.c.b16 %v4694, %v4693
  %v4707 = vpack.c.b16 %v4696, %v4695
  %v4708 = vpack.c.b16 %v4698, %v4697
  %v4709 = vpack.c.b16 %v4700, %v4699
  %v4710 = vpack.c.b16 %v4702, %v4701
  %4719 = vmatprep.subr.bf16.mxu0 0
  %4720 = vmatpush1.bf16.msra.mxu0 %v4710
  %4721 = vmatprep.subr.bf16.mxu0 0
  %4722 = vmatpush1.bf16.msra.mxu0 %v4709
  %4723 = vmatprep.subr.bf16.mxu0 0
  %4724 = vmatpush1.bf16.msra.mxu0 %v4708
  %4725 = vmatprep.subr.bf16.mxu0 0
  %4726 = vmatpush1.bf16.msra.mxu0 %v4707
  %4727 = vmatprep.subr.bf16.mxu0 0
  %4728 = vmatpush1.bf16.msra.mxu0 %v4706
  %4729 = vmatprep.subr.bf16.mxu0 0
  %4730 = vmatpush1.bf16.msra.mxu0 %v4705
  %4731 = vmatprep.subr.bf16.mxu0 0
  %4732 = vmatpush1.bf16.msra.mxu0 %v4704
  %4733 = vmatprep.subr.bf16.mxu0 0
  %4734 = vmatpush1.bf16.msra.mxu0 %v4703
  %4735 = vmatprep.subr.bf16.mxu0 0
  %4736 = vmatpush2.bf16.msra.mxu0 0
  %4737 = vmatprep.subr.bf16.mxu0 0
  %4738 = vmatpush2.bf16.msra.mxu0 0
  %4739 = vmatprep.subr.bf16.mxu0 0
  %4740 = vmatpush2.bf16.msra.mxu0 0
  %4741 = vmatprep.subr.bf16.mxu0 0
  %4742 = vmatpush2.bf16.msra.mxu0 0
  %4743 = vmatprep.subr.bf16.mxu0 0
  %4744 = vmatpush2.bf16.msra.mxu0 0
  %4745 = vmatprep.subr.bf16.mxu0 0
  %4746 = vmatpush2.bf16.msra.mxu0 0
  %4747 = vmatprep.subr.bf16.mxu0 0
  %4748 = vmatpush2.bf16.msra.mxu0 0
  %4749 = vmatprep.subr.bf16.mxu0 0
  %4750 = vmatpush2.bf16.msra.mxu0 0
  %4751 = vmatprep.mubr.bf16.mxu0 0
  %4752 = vmatmul.mubr.bf16.gmra.mxu0 %v4670
  %v4753 = vpop.f32.mrf.mxu0
  %v4754 = vadd.f32 0.0, %v4753
  %v4755 = vpop.f32.mrf.mxu0
  %v4756 = vpop.f32.mrf.mxu0
  %v4757 = vadd.f32 0.0, %v4756
  %v4758 = vpop.f32.mrf.mxu0
  %4759 = vdwg.mxu0
  %v4760 = vadd.f32 %v4526, %v4754
  %v4761 = vadd.f32 %v4527, %v4757
  %v4762 = vld [vmem:[%s6 + $0x31] sm:$0x1]
  %v4763 = vlaneseq
  %v4764 = vshrl.u32 %v4763, 7
  %v4765 = vsub.s32 0, %v4764
  %v4766 = vrot.slane %v4762, %v4765
  %v4767 = vadd.f32 %v4760, %v4766
  %v4768 = vadd.f32 %v4761, %v4766
  %v4769 = vld [vmem:[%s6 + $0xf] sm:$0x1]
  %v4770 = vld [vmem:[%s6 + $0x10] sm:$0x1]
  %v4771 = vsel %vm636, %v4767, 0.0
  %4772 = vadd.xlane.f32.xlu0 %v4771
  %v4773 = vpop.xlane.xlu0 %4772
  %v4774 = vsel %vm640, %v4768, 0.0
  %4775 = vadd.xlane.f32.xlu0 %v4774
  %v4776 = vpop.xlane.xlu0 %4775
  %v4777 = vmul.f32 %v4773, %v644
  %v4778 = vmul.f32 %v4776, %v644
  %v4779 = vsub.f32 %v4767, %v4777
  %v4780 = vsub.f32 %v4768, %v4778
  %v4781 = vmul.f32 %v4779, %v4779
  %v4782 = vmul.f32 %v4780, %v4780
  %v4783 = vsel %vm636, %v4781, 0.0
  %4784 = vadd.xlane.f32.xlu0 %v4783
  %v4785 = vpop.xlane.xlu0 %4784
  %v4786 = vsel %vm640, %v4782, 0.0
  %4787 = vadd.xlane.f32.xlu0 %v4786
  %v4788 = vpop.xlane.xlu0 %4787
  %v4789 = vmul.f32 %v4785, %v644
  %v4790 = vmul.f32 %v4788, %v644
  %v4791 = vadd.f32 %v4789, 1e-06
  %v4792 = vadd.f32 %v4790, 1e-06
  %v4793 = vrsqrt.pop %v4791
  %v4794 = vrsqrt.pop %v4792
  %v4795 = vmul.f32 %v4779, %v4793
  %v4796 = vmul.f32 %v4780, %v4794
  %v4797 = vlaneseq
  %v4798 = vshrl.u32 %v4797, 7
  %v4799 = vsub.s32 0, %v4798
  %v4800 = vrot.slane %v4769, %v4799
  %v4801 = vmul.f32 %v4795, %v4800
  %v4802 = vmul.f32 %v4796, %v4800
  %v4803 = vlaneseq
  %v4804 = vshrl.u32 %v4803, 7
  %v4805 = vsub.s32 0, %v4804
  %v4806 = vrot.slane %v4770, %v4805
  %v4807 = vadd.f32 %v4801, %v4806
  %v4808 = vadd.f32 %v4802, %v4806
  %s4809 = scalar_lea.vmem %s5, 384
  %v4810 = vld [vmem:[%s4809] sm:$0xf]
  %v4811 = vld [vmem:[%s4809 + $0x4] sm:$0xf]
  %v4812 = vld [vmem:[%s4809 + $0x8] sm:$0xf]
  %v4813 = vld [vmem:[%s4809 + $0xc] sm:$0xf]
  %v4814 = vld [vmem:[%s4809 + $0x10] sm:$0xf]
  %v4815 = vld [vmem:[%s4809 + $0x14] sm:$0xf]
  %v4816 = vld [vmem:[%s4809 + $0x18] sm:$0xf]
  %v4817 = vld [vmem:[%s4809 + $0x1c] sm:$0xf]
  %v4818 = vld [vmem:[%s4809 + $0x20] sm:$0xf]
  %v4819 = vld [vmem:[%s4809 + $0x24] sm:$0xf]
  %v4820 = vld [vmem:[%s4809 + $0x28] sm:$0xf]
  %v4821 = vld [vmem:[%s4809 + $0x2c] sm:$0xf]
  %v4822 = vld [vmem:[%s4809 + $0x30] sm:$0xf]
  %v4823 = vld [vmem:[%s4809 + $0x34] sm:$0xf]
  %v4824 = vld [vmem:[%s4809 + $0x38] sm:$0xf]
  %v4825 = vld [vmem:[%s4809 + $0x3c] sm:$0xf]
  %v4826 = vld [vmem:[%s4809 + $0x40] sm:$0xf]
  %v4827 = vld [vmem:[%s4809 + $0x44] sm:$0xf]
  %v4828 = vld [vmem:[%s4809 + $0x48] sm:$0xf]
  %v4829 = vld [vmem:[%s4809 + $0x4c] sm:$0xf]
  %v4830 = vld [vmem:[%s4809 + $0x50] sm:$0xf]
  %v4831 = vld [vmem:[%s4809 + $0x54] sm:$0xf]
  %v4832 = vld [vmem:[%s4809 + $0x58] sm:$0xf]
  %v4833 = vld [vmem:[%s4809 + $0x5c] sm:$0xf]
  %v4834 = vld [vmem:[%s4809 + $0x60] sm:$0xf]
  %v4835 = vld [vmem:[%s4809 + $0x64] sm:$0xf]
  %v4836 = vld [vmem:[%s4809 + $0x68] sm:$0xf]
  %v4837 = vld [vmem:[%s4809 + $0x6c] sm:$0xf]
  %v4838 = vld [vmem:[%s4809 + $0x70] sm:$0xf]
  %v4839 = vld [vmem:[%s4809 + $0x74] sm:$0xf]
  %v4840 = vld [vmem:[%s4809 + $0x78] sm:$0xf]
  %v4841 = vld [vmem:[%s4809 + $0x7c] sm:$0xf]
  %v4842 = vld [vmem:[%s4809 + $0x80] sm:$0xf]
  %v4843 = vld [vmem:[%s4809 + $0x84] sm:$0xf]
  %v4844 = vld [vmem:[%s4809 + $0x88] sm:$0xf]
  %v4845 = vld [vmem:[%s4809 + $0x8c] sm:$0xf]
  %v4846 = vld [vmem:[%s4809 + $0x90] sm:$0xf]
  %v4847 = vld [vmem:[%s4809 + $0x94] sm:$0xf]
  %v4848 = vld [vmem:[%s4809 + $0x98] sm:$0xf]
  %v4849 = vld [vmem:[%s4809 + $0x9c] sm:$0xf]
  %v4850 = vld [vmem:[%s4809 + $0xa0] sm:$0xf]
  %v4851 = vld [vmem:[%s4809 + $0xa4] sm:$0xf]
  %v4852 = vld [vmem:[%s4809 + $0xa8] sm:$0xf]
  %v4853 = vld [vmem:[%s4809 + $0xac] sm:$0xf]
  %v4854 = vld [vmem:[%s4809 + $0xb0] sm:$0xf]
  %v4855 = vld [vmem:[%s4809 + $0xb4] sm:$0xf]
  %v4856 = vld [vmem:[%s4809 + $0xb8] sm:$0xf]
  %v4857 = vld [vmem:[%s4809 + $0xbc] sm:$0xf]
  %v4858 = vld [vmem:[%s4809 + $0xc0] sm:$0xf]
  %v4859 = vld [vmem:[%s4809 + $0xc4] sm:$0xf]
  %v4860 = vld [vmem:[%s4809 + $0xc8] sm:$0xf]
  %v4861 = vld [vmem:[%s4809 + $0xcc] sm:$0xf]
  %v4862 = vld [vmem:[%s4809 + $0xd0] sm:$0xf]
  %v4863 = vld [vmem:[%s4809 + $0xd4] sm:$0xf]
  %v4864 = vld [vmem:[%s4809 + $0xd8] sm:$0xf]
  %v4865 = vld [vmem:[%s4809 + $0xdc] sm:$0xf]
  %v4866 = vld [vmem:[%s4809 + $0xe0] sm:$0xf]
  %v4867 = vld [vmem:[%s4809 + $0xe4] sm:$0xf]
  %v4868 = vld [vmem:[%s4809 + $0xe8] sm:$0xf]
  %v4869 = vld [vmem:[%s4809 + $0xec] sm:$0xf]
  %v4870 = vld [vmem:[%s4809 + $0xf0] sm:$0xf]
  %v4871 = vld [vmem:[%s4809 + $0xf4] sm:$0xf]
  %v4872 = vld [vmem:[%s4809 + $0xf8] sm:$0xf]
  %v4873 = vld [vmem:[%s4809 + $0xfc] sm:$0xf]
  %v4874 = vld [vmem:[%s4809 + $0x100] sm:$0xf]
  %v4875 = vld [vmem:[%s4809 + $0x104] sm:$0xf]
  %v4876 = vld [vmem:[%s4809 + $0x108] sm:$0xf]
  %v4877 = vld [vmem:[%s4809 + $0x10c] sm:$0xf]
  %v4878 = vld [vmem:[%s4809 + $0x110] sm:$0xf]
  %v4879 = vld [vmem:[%s4809 + $0x114] sm:$0xf]
  %v4880 = vld [vmem:[%s4809 + $0x118] sm:$0xf]
  %v4881 = vld [vmem:[%s4809 + $0x11c] sm:$0xf]
  %v4882 = vld [vmem:[%s4809 + $0x120] sm:$0xf]
  %v4883 = vld [vmem:[%s4809 + $0x124] sm:$0xf]
  %v4884 = vld [vmem:[%s4809 + $0x128] sm:$0xf]
  %v4885 = vld [vmem:[%s4809 + $0x12c] sm:$0xf]
  %v4886 = vld [vmem:[%s4809 + $0x130] sm:$0xf]
  %v4887 = vld [vmem:[%s4809 + $0x134] sm:$0xf]
  %v4888 = vld [vmem:[%s4809 + $0x138] sm:$0xf]
  %v4889 = vld [vmem:[%s4809 + $0x13c] sm:$0xf]
  %v4890 = vld [vmem:[%s4809 + $0x140] sm:$0xf]
  %v4891 = vld [vmem:[%s4809 + $0x144] sm:$0xf]
  %v4892 = vld [vmem:[%s4809 + $0x148] sm:$0xf]
  %v4893 = vld [vmem:[%s4809 + $0x14c] sm:$0xf]
  %v4894 = vld [vmem:[%s4809 + $0x150] sm:$0xf]
  %v4895 = vld [vmem:[%s4809 + $0x154] sm:$0xf]
  %v4896 = vld [vmem:[%s4809 + $0x158] sm:$0xf]
  %v4897 = vld [vmem:[%s4809 + $0x15c] sm:$0xf]
  %v4898 = vld [vmem:[%s4809 + $0x160] sm:$0xf]
  %v4899 = vld [vmem:[%s4809 + $0x164] sm:$0xf]
  %v4900 = vld [vmem:[%s4809 + $0x168] sm:$0xf]
  %v4901 = vld [vmem:[%s4809 + $0x16c] sm:$0xf]
  %v4902 = vld [vmem:[%s4809 + $0x170] sm:$0xf]
  %v4903 = vld [vmem:[%s4809 + $0x174] sm:$0xf]
  %v4904 = vld [vmem:[%s4809 + $0x178] sm:$0xf]
  %v4905 = vld [vmem:[%s4809 + $0x17c] sm:$0xf]
  %v4906 = vpack.c.bf16 %v4808, %v4807
  %v4907 = vld [vmem:[%s8] sm:$0x3f]
  %v4909 = vlaneseq
  %v4910 = vshrl.u32 %v4909, 7
  %v4911 = vsub.s32 0, %v4910
  %v4912 = vrot.slane %v4907, %v4911
  %v4913 = vlaneseq
  %v4914 = vshrl.u32 %v4913, 7
  %v4915 = vsub.s32 1, %v4914
  %v4916 = vrot.slane %v4907, %v4915
  %v4917 = vlaneseq
  %v4918 = vshrl.u32 %v4917, 7
  %v4919 = vsub.s32 2, %v4918
  %v4920 = vrot.slane %v4907, %v4919
  %v4921 = vlaneseq
  %v4922 = vshrl.u32 %v4921, 7
  %v4923 = vsub.s32 3, %v4922
  %v4924 = vrot.slane %v4907, %v4923
  %v4925 = vlaneseq
  %v4926 = vshrl.u32 %v4925, 7
  %v4927 = vsub.s32 4, %v4926
  %v4928 = vrot.slane %v4907, %v4927
  %v4929 = vlaneseq
  %v4930 = vshrl.u32 %v4929, 7
  %v4931 = vsub.s32 5, %v4930
  %v4932 = vrot.slane %v4907, %v4931
  %v5035 = vunpack.c.l.b16 %v4810
  %v5036 = vunpack.c.l.b16 %v4811
  %v5037 = vunpack.c.l.b16 %v4812
  %v5038 = vunpack.c.l.b16 %v4813
  %v5039 = vunpack.c.l.b16 %v4814
  %v5040 = vunpack.c.l.b16 %v4815
  %v5041 = vunpack.c.l.b16 %v4816
  %v5042 = vunpack.c.l.b16 %v4817
  %v5043 = vunpack.c.l.b16 %v4818
  %v5044 = vunpack.c.l.b16 %v4819
  %v5045 = vunpack.c.l.b16 %v4820
  %v5046 = vunpack.c.l.b16 %v4821
  %v5047 = vunpack.c.l.b16 %v4822
  %v5048 = vunpack.c.l.b16 %v4823
  %v5049 = vunpack.c.l.b16 %v4824
  %v5050 = vunpack.c.l.b16 %v4825
  %v5051 = vunpack.c.l.b16 %v4826
  %v5052 = vunpack.c.l.b16 %v4827
  %v5053 = vunpack.c.l.b16 %v4828
  %v5054 = vunpack.c.l.b16 %v4829
  %v5055 = vunpack.c.l.b16 %v4830
  %v5056 = vunpack.c.l.b16 %v4831
  %v5057 = vunpack.c.l.b16 %v4832
  %v5058 = vunpack.c.l.b16 %v4833
  %v5059 = vunpack.c.l.b16 %v4834
  %v5060 = vunpack.c.l.b16 %v4835
  %v5061 = vunpack.c.l.b16 %v4836
  %v5062 = vunpack.c.l.b16 %v4837
  %v5063 = vunpack.c.l.b16 %v4838
  %v5064 = vunpack.c.l.b16 %v4839
  %v5065 = vunpack.c.l.b16 %v4840
  %v5066 = vunpack.c.l.b16 %v4841
  %v5067 = vunpack.c.l.b16 %v4842
  %v5068 = vunpack.c.l.b16 %v4843
  %v5069 = vunpack.c.l.b16 %v4844
  %v5070 = vunpack.c.l.b16 %v4845
  %v5071 = vunpack.c.l.b16 %v4846
  %v5072 = vunpack.c.l.b16 %v4847
  %v5073 = vunpack.c.l.b16 %v4848
  %v5074 = vunpack.c.l.b16 %v4849
  %v5075 = vunpack.c.l.b16 %v4850
  %v5076 = vunpack.c.l.b16 %v4851
  %v5077 = vunpack.c.l.b16 %v4852
  %v5078 = vunpack.c.l.b16 %v4853
  %v5079 = vunpack.c.l.b16 %v4854
  %v5080 = vunpack.c.l.b16 %v4855
  %v5081 = vunpack.c.l.b16 %v4856
  %v5082 = vunpack.c.l.b16 %v4857
  %v5083 = vunpack.c.l.b16 %v4858
  %v5084 = vunpack.c.l.b16 %v4859
  %v5085 = vunpack.c.l.b16 %v4860
  %v5086 = vunpack.c.l.b16 %v4861
  %v5087 = vunpack.c.l.b16 %v4862
  %v5088 = vunpack.c.l.b16 %v4863
  %v5089 = vunpack.c.l.b16 %v4864
  %v5090 = vunpack.c.l.b16 %v4865
  %v5091 = vunpack.c.l.b16 %v4866
  %v5092 = vunpack.c.l.b16 %v4867
  %v5093 = vunpack.c.l.b16 %v4868
  %v5094 = vunpack.c.l.b16 %v4869
  %v5095 = vunpack.c.l.b16 %v4870
  %v5096 = vunpack.c.l.b16 %v4871
  %v5097 = vunpack.c.l.b16 %v4872
  %v5098 = vunpack.c.l.b16 %v4873
  %v5099 = vunpack.c.l.b16 %v4874
  %v5100 = vunpack.c.l.b16 %v4875
  %v5101 = vunpack.c.l.b16 %v4876
  %v5102 = vunpack.c.l.b16 %v4877
  %v5103 = vunpack.c.l.b16 %v4878
  %v5104 = vunpack.c.l.b16 %v4879
  %v5105 = vunpack.c.l.b16 %v4880
  %v5106 = vunpack.c.l.b16 %v4881
  %v5107 = vunpack.c.l.b16 %v4882
  %v5108 = vunpack.c.l.b16 %v4883
  %v5109 = vunpack.c.l.b16 %v4884
  %v5110 = vunpack.c.l.b16 %v4885
  %v5111 = vunpack.c.l.b16 %v4886
  %v5112 = vunpack.c.l.b16 %v4887
  %v5113 = vunpack.c.l.b16 %v4888
  %v5114 = vunpack.c.l.b16 %v4889
  %v5115 = vunpack.c.l.b16 %v4890
  %v5116 = vunpack.c.l.b16 %v4891
  %v5117 = vunpack.c.l.b16 %v4892
  %v5118 = vunpack.c.l.b16 %v4893
  %v5119 = vunpack.c.l.b16 %v4894
  %v5120 = vunpack.c.l.b16 %v4895
  %v5121 = vunpack.c.l.b16 %v4896
  %v5122 = vunpack.c.l.b16 %v4897
  %v5123 = vunpack.c.l.b16 %v4898
  %v5124 = vunpack.c.l.b16 %v4899
  %v5125 = vunpack.c.l.b16 %v4900
  %v5126 = vunpack.c.l.b16 %v4901
  %v5127 = vunpack.c.l.b16 %v4902
  %v5128 = vunpack.c.l.b16 %v4903
  %v5129 = vunpack.c.l.b16 %v4904
  %v5130 = vunpack.c.l.b16 %v4905
  %v5131 = vpack.c.b16 %v5036, %v5035
  %v5132 = vpack.c.b16 %v5038, %v5037
  %v5133 = vpack.c.b16 %v5040, %v5039
  %v5134 = vpack.c.b16 %v5042, %v5041
  %v5135 = vpack.c.b16 %v5044, %v5043
  %v5136 = vpack.c.b16 %v5046, %v5045
  %v5137 = vpack.c.b16 %v5048, %v5047
  %v5138 = vpack.c.b16 %v5050, %v5049
  %v5139 = vpack.c.b16 %v5052, %v5051
  %v5140 = vpack.c.b16 %v5054, %v5053
  %v5141 = vpack.c.b16 %v5056, %v5055
  %v5142 = vpack.c.b16 %v5058, %v5057
  %v5143 = vpack.c.b16 %v5060, %v5059
  %v5144 = vpack.c.b16 %v5062, %v5061
  %v5145 = vpack.c.b16 %v5064, %v5063
  %v5146 = vpack.c.b16 %v5066, %v5065
  %v5147 = vpack.c.b16 %v5068, %v5067
  %v5148 = vpack.c.b16 %v5070, %v5069
  %v5149 = vpack.c.b16 %v5072, %v5071
  %v5150 = vpack.c.b16 %v5074, %v5073
  %v5151 = vpack.c.b16 %v5076, %v5075
  %v5152 = vpack.c.b16 %v5078, %v5077
  %v5153 = vpack.c.b16 %v5080, %v5079
  %v5154 = vpack.c.b16 %v5082, %v5081
  %v5155 = vpack.c.b16 %v5084, %v5083
  %v5156 = vpack.c.b16 %v5086, %v5085
  %v5157 = vpack.c.b16 %v5088, %v5087
  %v5158 = vpack.c.b16 %v5090, %v5089
  %v5159 = vpack.c.b16 %v5092, %v5091
  %v5160 = vpack.c.b16 %v5094, %v5093
  %v5161 = vpack.c.b16 %v5096, %v5095
  %v5162 = vpack.c.b16 %v5098, %v5097
  %v5163 = vpack.c.b16 %v5100, %v5099
  %v5164 = vpack.c.b16 %v5102, %v5101
  %v5165 = vpack.c.b16 %v5104, %v5103
  %v5166 = vpack.c.b16 %v5106, %v5105
  %v5167 = vpack.c.b16 %v5108, %v5107
  %v5168 = vpack.c.b16 %v5110, %v5109
  %v5169 = vpack.c.b16 %v5112, %v5111
  %v5170 = vpack.c.b16 %v5114, %v5113
  %v5171 = vpack.c.b16 %v5116, %v5115
  %v5172 = vpack.c.b16 %v5118, %v5117
  %v5173 = vpack.c.b16 %v5120, %v5119
  %v5174 = vpack.c.b16 %v5122, %v5121
  %v5175 = vpack.c.b16 %v5124, %v5123
  %v5176 = vpack.c.b16 %v5126, %v5125
  %v5177 = vpack.c.b16 %v5128, %v5127
  %v5178 = vpack.c.b16 %v5130, %v5129
  %v5180 = vsel %vm636, %v4906, 0
  %v5183 = vsel %vm636, %v5131, 0
  %v5186 = vsel %vm636, %v5132, 0
  %v5189 = vsel %vm636, %v5133, 0
  %v5192 = vsel %vm636, %v5134, 0
  %v5195 = vsel %vm636, %v5135, 0
  %v5198 = vsel %vm636, %v5136, 0
  %v5201 = vsel %vm636, %v5137, 0
  %v5204 = vsel %vm636, %v5138, 0
  %v5207 = vsel %vm636, %v5139, 0
  %v5210 = vsel %vm636, %v5140, 0
  %v5213 = vsel %vm636, %v5141, 0
  %v5216 = vsel %vm636, %v5142, 0
  %v5219 = vsel %vm636, %v5143, 0
  %v5222 = vsel %vm636, %v5144, 0
  %v5225 = vsel %vm636, %v5145, 0
  %v5228 = vsel %vm636, %v5146, 0
  %v5231 = vsel %vm636, %v5147, 0
  %v5234 = vsel %vm636, %v5148, 0
  %v5237 = vsel %vm636, %v5149, 0
  %v5240 = vsel %vm636, %v5150, 0
  %v5243 = vsel %vm636, %v5151, 0
  %v5246 = vsel %vm636, %v5152, 0
  %v5249 = vsel %vm636, %v5153, 0
  %v5252 = vsel %vm636, %v5154, 0
  %v5255 = vsel %vm636, %v5155, 0
  %v5258 = vsel %vm636, %v5156, 0
  %v5261 = vsel %vm636, %v5157, 0
  %v5264 = vsel %vm636, %v5158, 0
  %v5267 = vsel %vm636, %v5159, 0
  %v5270 = vsel %vm636, %v5160, 0
  %v5273 = vsel %vm636, %v5161, 0
  %v5276 = vsel %vm636, %v5162, 0
  %v5279 = vsel %vm636, %v5163, 0
  %v5282 = vsel %vm636, %v5164, 0
  %v5285 = vsel %vm636, %v5165, 0
  %v5288 = vsel %vm636, %v5166, 0
  %v5291 = vsel %vm636, %v5167, 0
  %v5294 = vsel %vm636, %v5168, 0
  %v5297 = vsel %vm636, %v5169, 0
  %v5300 = vsel %vm636, %v5170, 0
  %v5303 = vsel %vm636, %v5171, 0
  %v5306 = vsel %vm636, %v5172, 0
  %v5309 = vsel %vm636, %v5173, 0
  %v5312 = vsel %vm636, %v5174, 0
  %v5315 = vsel %vm636, %v5175, 0
  %v5318 = vsel %vm636, %v5176, 0
  %v5321 = vsel %vm636, %v5177, 0
  %v5324 = vsel %vm636, %v5178, 0
  %5326 = vmatprep.subr.bf16.mxu0 0
  %5327 = vmatpush1.bf16.xpose.msra.mxu0 %v5204
  %5328 = vmatprep.subr.bf16.mxu0 0
  %5329 = vmatpush1.bf16.xpose.msra.mxu0 %v5201
  %5330 = vmatprep.subr.bf16.mxu0 0
  %5331 = vmatpush1.bf16.xpose.msra.mxu0 %v5198
  %5332 = vmatprep.subr.bf16.mxu0 0
  %5333 = vmatpush1.bf16.xpose.msra.mxu0 %v5195
  %5334 = vmatprep.subr.bf16.mxu0 0
  %5335 = vmatpush1.bf16.xpose.msra.mxu0 %v5192
  %5336 = vmatprep.subr.bf16.mxu0 0
  %5337 = vmatpush1.bf16.xpose.msra.mxu0 %v5189
  %5338 = vmatprep.subr.bf16.mxu0 0
  %5339 = vmatpush1.bf16.xpose.msra.mxu0 %v5186
  %5340 = vmatprep.subr.bf16.mxu0 0
  %5341 = vmatpush1.bf16.xpose.msra.mxu0 %v5183
  %5342 = vmatprep.subr.bf16.mxu0 0
  %5343 = vmatpush2.bf16.xpose.msra.mxu0 %v5228
  %5344 = vmatprep.subr.bf16.mxu0 0
  %5345 = vmatpush2.bf16.xpose.msra.mxu0 %v5225
  %5346 = vmatprep.subr.bf16.mxu0 0
  %5347 = vmatpush2.bf16.xpose.msra.mxu0 %v5222
  %5348 = vmatprep.subr.bf16.mxu0 0
  %5349 = vmatpush2.bf16.xpose.msra.mxu0 %v5219
  %5350 = vmatprep.subr.bf16.mxu0 0
  %5351 = vmatpush2.bf16.xpose.msra.mxu0 %v5216
  %5352 = vmatprep.subr.bf16.mxu0 0
  %5353 = vmatpush2.bf16.xpose.msra.mxu0 %v5213
  %5354 = vmatprep.subr.bf16.mxu0 0
  %5355 = vmatpush2.bf16.xpose.msra.mxu0 %v5210
  %5356 = vmatprep.subr.bf16.mxu0 0
  %5357 = vmatpush2.bf16.xpose.msra.mxu0 %v5207
  %5358 = vmatprep.mubr.bf16.mxu0 0
  %5359 = vmatmul.mubr.bf16.gmra.mxu0 %v5180
  %v5360 = vpop.f32.mrf.mxu0
  %v5361 = vadd.f32 %v4912, %v5360
  %v5362 = vpop.f32.mrf.mxu0
  %v5363 = vadd.f32 %v4916, %v5362
  %v5364 = vpop.f32.mrf.mxu0
  %v5365 = vadd.f32 %v4912, %v5364
  %v5366 = vpop.f32.mrf.mxu0
  %v5367 = vadd.f32 %v4916, %v5366
  %5368 = vdwg.mxu0
  %5369 = vmatprep.subr.bf16.mxu0 0
  %5370 = vmatpush1.bf16.xpose.msra.mxu0 %v5252
  %5371 = vmatprep.subr.bf16.mxu0 0
  %5372 = vmatpush1.bf16.xpose.msra.mxu0 %v5249
  %5373 = vmatprep.subr.bf16.mxu0 0
  %5374 = vmatpush1.bf16.xpose.msra.mxu0 %v5246
  %5375 = vmatprep.subr.bf16.mxu0 0
  %5376 = vmatpush1.bf16.xpose.msra.mxu0 %v5243
  %5377 = vmatprep.subr.bf16.mxu0 0
  %5378 = vmatpush1.bf16.xpose.msra.mxu0 %v5240
  %5379 = vmatprep.subr.bf16.mxu0 0
  %5380 = vmatpush1.bf16.xpose.msra.mxu0 %v5237
  %5381 = vmatprep.subr.bf16.mxu0 0
  %5382 = vmatpush1.bf16.xpose.msra.mxu0 %v5234
  %5383 = vmatprep.subr.bf16.mxu0 0
  %5384 = vmatpush1.bf16.xpose.msra.mxu0 %v5231
  %5385 = vmatprep.subr.bf16.mxu0 0
  %5386 = vmatpush2.bf16.xpose.msra.mxu0 %v5276
  %5387 = vmatprep.subr.bf16.mxu0 0
  %5388 = vmatpush2.bf16.xpose.msra.mxu0 %v5273
  %5389 = vmatprep.subr.bf16.mxu0 0
  %5390 = vmatpush2.bf16.xpose.msra.mxu0 %v5270
  %5391 = vmatprep.subr.bf16.mxu0 0
  %5392 = vmatpush2.bf16.xpose.msra.mxu0 %v5267
  %5393 = vmatprep.subr.bf16.mxu0 0
  %5394 = vmatpush2.bf16.xpose.msra.mxu0 %v5264
  %5395 = vmatprep.subr.bf16.mxu0 0
  %5396 = vmatpush2.bf16.xpose.msra.mxu0 %v5261
  %5397 = vmatprep.subr.bf16.mxu0 0
  %5398 = vmatpush2.bf16.xpose.msra.mxu0 %v5258
  %5399 = vmatprep.subr.bf16.mxu0 0
  %5400 = vmatpush2.bf16.xpose.msra.mxu0 %v5255
  %5401 = vmatprep.mubr.bf16.mxu0 0
  %5402 = vmatmul.mubr.bf16.gmra.mxu0 %v5180
  %v5403 = vpop.f32.mrf.mxu0
  %v5404 = vadd.f32 %v4920, %v5403
  %v5405 = vpop.f32.mrf.mxu0
  %v5406 = vadd.f32 %v4924, %v5405
  %v5407 = vpop.f32.mrf.mxu0
  %v5408 = vadd.f32 %v4920, %v5407
  %v5409 = vpop.f32.mrf.mxu0
  %v5410 = vadd.f32 %v4924, %v5409
  %5411 = vdwg.mxu0
  %5412 = vmatprep.subr.bf16.mxu0 0
  %5413 = vmatpush1.bf16.xpose.msra.mxu0 %v5300
  %5414 = vmatprep.subr.bf16.mxu0 0
  %5415 = vmatpush1.bf16.xpose.msra.mxu0 %v5297
  %5416 = vmatprep.subr.bf16.mxu0 0
  %5417 = vmatpush1.bf16.xpose.msra.mxu0 %v5294
  %5418 = vmatprep.subr.bf16.mxu0 0
  %5419 = vmatpush1.bf16.xpose.msra.mxu0 %v5291
  %5420 = vmatprep.subr.bf16.mxu0 0
  %5421 = vmatpush1.bf16.xpose.msra.mxu0 %v5288
  %5422 = vmatprep.subr.bf16.mxu0 0
  %5423 = vmatpush1.bf16.xpose.msra.mxu0 %v5285
  %5424 = vmatprep.subr.bf16.mxu0 0
  %5425 = vmatpush1.bf16.xpose.msra.mxu0 %v5282
  %5426 = vmatprep.subr.bf16.mxu0 0
  %5427 = vmatpush1.bf16.xpose.msra.mxu0 %v5279
  %5428 = vmatprep.subr.bf16.mxu0 0
  %5429 = vmatpush2.bf16.xpose.msra.mxu0 %v5324
  %5430 = vmatprep.subr.bf16.mxu0 0
  %5431 = vmatpush2.bf16.xpose.msra.mxu0 %v5321
  %5432 = vmatprep.subr.bf16.mxu0 0
  %5433 = vmatpush2.bf16.xpose.msra.mxu0 %v5318
  %5434 = vmatprep.subr.bf16.mxu0 0
  %5435 = vmatpush2.bf16.xpose.msra.mxu0 %v5315
  %5436 = vmatprep.subr.bf16.mxu0 0
  %5437 = vmatpush2.bf16.xpose.msra.mxu0 %v5312
  %5438 = vmatprep.subr.bf16.mxu0 0
  %5439 = vmatpush2.bf16.xpose.msra.mxu0 %v5309
  %5440 = vmatprep.subr.bf16.mxu0 0
  %5441 = vmatpush2.bf16.xpose.msra.mxu0 %v5306
  %5442 = vmatprep.subr.bf16.mxu0 0
  %5443 = vmatpush2.bf16.xpose.msra.mxu0 %v5303
  %5444 = vmatprep.mubr.bf16.mxu0 0
  %5445 = vmatmul.mubr.bf16.gmra.mxu0 %v5180
  %v5446 = vpop.f32.mrf.mxu0
  %v5447 = vadd.f32 %v4928, %v5446
  %v5448 = vpop.f32.mrf.mxu0
  %v5449 = vadd.f32 %v4932, %v5448
  %v5450 = vpop.f32.mrf.mxu0
  %v5451 = vadd.f32 %v4928, %v5450
  %v5452 = vpop.f32.mrf.mxu0
  %v5453 = vadd.f32 %v4932, %v5452
  %5454 = vdwg.mxu0
  %5455 = vst [vmem:[%s9] sm:$0xff] %v5361
  %5456 = vst [vmem:[%s9 + $0x8] sm:$0xff] %v5363
  %5457 = vst [vmem:[%s9 + $0x10] sm:$0xff] %v5404
  %5458 = vst [vmem:[%s9 + $0x18] sm:$0xff] %v5406
  %5459 = vst [vmem:[%s9 + $0x20] sm:$0xff] %v5447
  %5460 = vst [vmem:[%s9 + $0x28] sm:$0xff] %v5449
  %5461 = vst [vmem:[%s9 + $0x30] sm:$0x3] %v5365
  %5462 = vst [vmem:[%s9 + $0x38] sm:$0x3] %v5367
  %5463 = vst [vmem:[%s9 + $0x40] sm:$0x3] %v5408
  %5464 = vst [vmem:[%s9 + $0x48] sm:$0x3] %v5410
  %5465 = vst [vmem:[%s9 + $0x50] sm:$0x3] %v5451
  %5466 = vst [vmem:[%s9 + $0x58] sm:$0x3] %v5453
  // Predicated region
  $region38: #{vqvae_forward.1} parent=0 // pred_check
    _
  $region39: #{vqvae_forward.1} parent=0 // pred_check_branch
    %5468 = sbr.rel (0) target = $region41
  $region40: #{vqvae_forward.1} parent=0 // pred_region
    _
  $region41: #{vqvae_forward.1} parent=0 // pred_fallthru
    _
  // Predicated region
  $region42: #{vqvae_forward.1} parent=0 // pred_check
    _
  $region43: #{vqvae_forward.1} parent=0 // pred_check_branch
    %5470 = sbr.rel (0) target = $region45
  $region44: #{vqvae_forward.1} parent=0 // pred_region
    _
  $region45: #{vqvae_forward.1} parent=0 // pred_fallthru
    _
  // Predicated region
  $region46: #{vqvae_forward.1} parent=0 // pred_check
    _
  $region47: #{vqvae_forward.1} parent=0 // pred_check_branch
    %5472 = sbr.rel (0) target = $region49
  $region48: #{vqvae_forward.1} parent=0 // pred_region
    _
  $region49: #{vqvae_forward.1} parent=0 // pred_fallthru
    _
  // Predicated region
  $region50: #{vqvae_forward.1} parent=0 // pred_check
    _
  $region51: #{vqvae_forward.1} parent=0 // pred_check_branch
    %5474 = sbr.rel (0) target = $region53
  $region52: #{vqvae_forward.1} parent=0 // pred_region
    _
  $region53: #{vqvae_forward.1} parent=0 // pred_fallthru
    _

</llo_original>
